<compile_context>
chip_gen: v6e
topology: v6e:2x2x1
jax: 0.10.0
libtpu: 0.0.40
codegen_flags: <defaults>
</compile_context>

<pallas_src>
import math

import jax
import jax.numpy as jnp
from jax.experimental import pallas as pl
from jax.experimental.pallas import tpu as pltpu

_SQRT_HALF = 1.0 / math.sqrt(2.0)
_HIGHEST = jax.lax.Precision.HIGHEST


def _erf_approx(x):
    # Abramowitz & Stegun 7.1.26 rational approximation (max abs err ~1.5e-7).
    # Exact VPU divide: the kernel is nowhere near VALU/EUP bound, and the
    # approx reciprocal leaked ~2^-12 error into GELU -> w_e -> edge weights.
    p = 0.3275911
    a1, a2, a3, a4, a5 = (0.254829592, -0.284496736, 1.421413741,
                          -1.453152027, 1.061405429)
    ax = jnp.abs(x)
    t = 1.0 / (1.0 + p * ax)
    poly = ((((a5 * t + a4) * t + a3) * t + a2) * t + a1) * t
    y = 1.0 - poly * jnp.exp(-ax * ax)
    return jnp.where(x >= 0.0, y, -y)


def _gelu_exact(x):
    # matches torch.nn.GELU() (approximate='none') to f32 tolerance
    return 0.5 * x * (1.0 + _erf_approx(x * _SQRT_HALF))


def _slab_layout(edge_dim, hidden):
    """Row offsets inside the single packed f32 weight slab (sublane aligned)."""
    r_w1 = 0
    r_w2 = -(-edge_dim // 8) * 8          # w1 rows, padded up to a sublane tile
    r_wg = r_w2 + hidden
    r_b = r_wg + hidden                   # 4 rows: b1, b2, bg, wm^T
    r_s = r_b + 4                         # 1 row : [wf0, wf1, wf2, bf, bm]
    rows = -(-(r_s + 1) // 8) * 8
    return r_w1, r_w2, r_wg, r_b, r_s, rows


def gat_kernel(nv_ref, src_ref, dst_ref, eattr_ref, wslab_ref, out_ref):
    f32 = jnp.float32
    N = nv_ref.shape[1] // 2
    L = nv_ref.shape[2]
    E = src_ref.shape[1]
    edge_dim = eattr_ref.shape[2]
    H = wslab_ref.shape[1]
    r_w1, r_w2, r_wg, r_b, r_s, _ = _slab_layout(edge_dim, H)

    # ---- unpack the single weight slab (static slices, no extra DMAs) -----
    w1 = wslab_ref[r_w1:r_w1 + edge_dim, :]
    w2 = wslab_ref[r_w2:r_w2 + H, :]
    wg = wslab_ref[r_wg:r_wg + H, :]
    b1 = wslab_ref[r_b + 0:r_b + 1, :]
    b2 = wslab_ref[r_b + 1:r_b + 2, :]
    bg = wslab_ref[r_b + 2:r_b + 3, :]
    wm_row = wslab_ref[r_b + 3:r_b + 4, :]
    wf0 = wslab_ref[r_s:r_s + 1, 0:1]      # fuse_mlp params as (1,1) broadcasts
    wf1 = wslab_ref[r_s:r_s + 1, 1:2]
    wf2 = wslab_ref[r_s:r_s + 1, 2:3]
    bf = wslab_ref[r_s:r_s + 1, 3:4]
    bm = wslab_ref[r_s:r_s + 1, 4:5]

    nv = nv_ref[0]                          # (2N, L): rows [nodes ; valid]
    valid = nv[N:, :]
    nodes = nv[:N, :] * valid               # no_grad preamble: nodes * valid
    original_nodes = nodes

    # ---- edge-attr path (loop invariant): lin_edge -> gru -> weight_mlp ---
    # precision=HIGHEST: faithful f32 GEMMs (default MXU f32 rounds through
    # bf16 passes).
    ea = eattr_ref[0]                       # (E, edge_dim)
    h = jnp.dot(ea, w1, precision=_HIGHEST, preferred_element_type=f32) + b1
    h = _gelu_exact(h)
    h = jnp.dot(h, w2, precision=_HIGHEST, preferred_element_type=f32) + b2
    h = jnp.maximum(h, 0.0)                                            # ReLU
    g = jnp.dot(h, wg, precision=_HIGHEST, preferred_element_type=f32) + bg
    g = _gelu_exact(g)                                                 # gru
    w_e = jnp.sum(g * wm_row, axis=-1, keepdims=True) + bm             # (E, 1)

    # ---- gather/scatter one-hot masks built in-kernel from int32 ids ------
    # With precision=HIGHEST these dots are exact f32 row selects / adds.
    src_col = src_ref[0]                    # (E, 1) int32
    dst_row = dst_ref[0]                    # (1, E) int32
    G = (jax.lax.broadcasted_iota(jnp.int32, (E, N), 1) == src_col).astype(f32)
    D = (jax.lax.broadcasted_iota(jnp.int32, (N, E), 0) == dst_row).astype(f32)
    # TODO(synk): for large graphs, tile E on an 'arbitrary' grid axis with
    # scalar-prefetched edge_index instead of dense (E,N)/(N,E) masks in VMEM.

    col0 = jax.lax.broadcasted_iota(jnp.int32, (N, L), 1) == 0

    for _ in range(3):
        not_valid = 1.0 - valid             # (N, L); C == 1

        # message passing: x = cat([nodes, valid], -1); x_j = x[src].
        # vmean rides as one extra lane column so a single MXU pass does both
        # the node gather and the mean(valid[src]) gather.
        vmean = jnp.mean(valid, axis=-1, keepdims=True)                # (N, 1)
        xa = jnp.concatenate([nodes, vmean], axis=-1)                  # (N, L+1)
        xj = jnp.dot(G, xa, precision=_HIGHEST,
                     preferred_element_type=f32)                       # (E, L+1)
        weights = jax.nn.sigmoid(xj[:, L:L + 1] * w_e)                 # (E, 1)
        msg = xj[:, :L] * weights                                      # (E, L)
        new_half = jnp.dot(D, msg, precision=_HIGHEST,
                           preferred_element_type=f32)                 # (N, L)

        # fuse: sigmoid(Linear(3,1)([new_half, nodes, not_valid]))
        mask = jax.nn.sigmoid(new_half * wf0 + nodes * wf1
                              + not_valid * wf2 + bf)
        nodes_new = (1.0 - mask) * nodes + not_valid * mask * new_half

        changed = (original_nodes != nodes_new).astype(f32)
        valid = jnp.maximum(changed, (valid > 0.0).astype(f32))        # bool OR
        valid = jnp.where(col0, 0.0, valid)                            # valid[:,0]=0
        nodes = nodes_new

    # only row 0 is consumed: nodes[0].unsqueeze(0).squeeze(-1) -> (1, L)
    out_ref[...] = nodes[0:1, :].reshape(1, 1, L)


def _build_weight_slab(params, edge_dim, hidden):
    r_w1, r_w2, r_wg, r_b, r_s, rows = _slab_layout(edge_dim, hidden)
    f32 = jnp.float32
    slab = jnp.zeros((rows, hidden), f32)
    slab = slab.at[r_w1:r_w1 + edge_dim, :].set(params["w1"].astype(f32))
    slab = slab.at[r_w2:r_w2 + hidden, :].set(params["w2"].astype(f32))
    slab = slab.at[r_wg:r_wg + hidden, :].set(params["wg"].astype(f32))
    slab = slab.at[r_b + 0, :].set(params["b1"].reshape(-1).astype(f32))
    slab = slab.at[r_b + 1, :].set(params["b2"].reshape(-1).astype(f32))
    slab = slab.at[r_b + 2, :].set(params["bg"].reshape(-1).astype(f32))
    slab = slab.at[r_b + 3, :].set(params["wm"].reshape(-1).astype(f32))
    scal = jnp.stack([params["wf0"].reshape(()), params["wf1"].reshape(()),
                      params["wf2"].reshape(()), params["bf"].reshape(()),
                      params["bm"].reshape(())]).astype(f32)
    slab = slab.at[r_s, 0:5].set(scal)
    return slab


def gat_with_edge_attr_batched(nodes, edge_index, edge_attr, valid, params):
    """B independent graphs per pallas_call (grid axis marked 'parallel').

    nodes (B,N,L,1) f32, edge_index (B,2,E) int, edge_attr (B,E,edge_dim) f32,
    valid (B,1,N,L) f32.  Returns (B,1,L): per-graph nodes[0] row.
    """
    B, N, L, C = nodes.shape
    assert C == 1, "fuse_mlp = Linear(3,1) implies C == 1"
    E = edge_index.shape[-1]
    edge_dim = edge_attr.shape[-1]
    hidden = params["w1"].shape[-1]
    f32 = jnp.float32

    # nodes + valid stacked into one slab; edge ids as two tiny int arrays.
    nv = jnp.concatenate([nodes.reshape(B, N, L).astype(f32),
                          valid.reshape(B, N, L).astype(f32)], axis=1)  # (B,2N,L)
    src = edge_index[:, 0, :].astype(jnp.int32).reshape(B, E, 1)
    dst = edge_index[:, 1, :].astype(jnp.int32).reshape(B, 1, E)
    ea = edge_attr.astype(f32)
    wslab = _build_weight_slab(params, edge_dim, hidden)                # (rows,H)

    # advisory cost so XLA schedules surrounding HLO around this tiny call
    flops = B * (2 * E * hidden * (edge_dim + 2 * hidden)
                 + 3 * 2 * E * N * (2 * L + 1) + 3 * 14 * N * L)
    transcendentals = B * (2 * E * hidden + E + 3 * (E + N * L))
    bytes_accessed = 4 * (B * (2 * N * L + 2 * E + E * edge_dim + L)
                          + int(wslab.size))

    out = pl.pallas_call(
        gat_kernel,
        out_shape=jax.ShapeDtypeStruct((B, 1, L), f32),
        grid=(B,),
        in_specs=[
            pl.BlockSpec((1, 2 * N, L), lambda b: (b, 0, 0)),
            pl.BlockSpec((1, E, 1), lambda b: (b, 0, 0)),
            pl.BlockSpec((1, 1, E), lambda b: (b, 0, 0)),
            pl.BlockSpec((1, E, edge_dim), lambda b: (b, 0, 0)),
            pl.BlockSpec(wslab.shape, lambda b: (0, 0)),   # shared weights
        ],
        out_specs=pl.BlockSpec((1, 1, L), lambda b: (b, 0, 0)),
        compiler_params=pltpu.CompilerParams(
            dimension_semantics=("parallel",)),            # v7x: both TCs
        cost_estimate=pl.CostEstimate(flops=int(flops),
                                      transcendentals=int(transcendentals),
                                      bytes_accessed=int(bytes_accessed)),
    )(nv, src, dst, ea, wslab)
    return out


def gat_with_edge_attr(nodes, edge_index, edge_attr, valid, r, fx, params):
    """Single graph, matching GATWithEdgeAttr.forward.
    nodes (N,L,1) f32, edge_index (2,E) int, edge_attr (E,17) f32,
    valid (1,N,L) f32.  r, fx are unused by the reference forward."""
    del r, fx
    out = gat_with_edge_attr_batched(nodes[None], edge_index[None],
                                     edge_attr[None], valid[None], params)
    return out[0]                 # (1, L) == nodes[0].unsqueeze(0).squeeze(-1)


def _reference_forward(nodes, edge_index, edge_attr, valid, params):
    """Pure-JAX mirror of the PyTorch forward (single graph), for checking."""
    hp = jax.lax.Precision.HIGHEST
    N, L, _ = nodes.shape
    v = valid[0].astype(jnp.float32)                        # (N, L)
    x = nodes.reshape(N, L).astype(jnp.float32) * v
    original = x
    src, dst = edge_index[0], edge_index[1]

    h = jnp.dot(edge_attr, params["w1"], precision=hp) + params["b1"]
    h = jax.nn.gelu(h, approximate=False)
    h = jnp.dot(h, params["w2"], precision=hp) + params["b2"]
    h = jnp.maximum(h, 0.0)
    g = jnp.dot(h, params["wg"], precision=hp) + params["bg"]
    g = jax.nn.gelu(g, approximate=False)
    w_e = jnp.dot(g, params["wm"], precision=hp) + params["bm"]        # (E, 1)

    for _ in range(3):
        not_valid = 1.0 - v
        xj, vj = x[src], v[src]
        weights = jax.nn.sigmoid(jnp.mean(vj, axis=-1, keepdims=True) * w_e)
        msg = xj * weights
        new_half = jax.ops.segment_sum(msg, dst, num_segments=N)
        mask = jax.nn.sigmoid(new_half * params["wf0"] + x * params["wf1"]
                              + not_valid * params["wf2"] + params["bf"])
        x_new = (1.0 - mask) * x + not_valid * mask * new_half
        v = jnp.where((original != x_new) | (v > 0), 1.0, 0.0)
        v = v.at[:, 0].set(0.0)
        x = x_new
    return x[0:1, :]


if __name__ == "__main__":
    key = jax.random.PRNGKey(0)
    B, N, L, C, E, edge_dim, hidden = 2, 16, 8, 1, 32, 17, 48
    keys = jax.random.split(key, 16)

    nodes_b = jax.random.normal(keys[0], (B, N, L, C), dtype=jnp.float32)
    edge_index_b = jax.random.randint(keys[1], (B, 2, E), 0, N, dtype=jnp.int32)
    edge_attr_b = jax.random.normal(keys[2], (B, E, edge_dim), dtype=jnp.float32)
    valid_b = (jax.random.uniform(keys[3], (B, 1, N, L)) > 0.3).astype(jnp.float32)
    r = jnp.zeros((1,), jnp.float32)    # unused by forward
    fx = jnp.zeros((1,), jnp.float32)   # unused by forward

    def u(k, shape, fan_in):
        bnd = 1.0 / math.sqrt(fan_in)
        return jax.random.uniform(k, shape, jnp.float32, -bnd, bnd)

    params = dict(
        # lin_edge: Linear(17,48) -> GELU -> Linear(48,48) -> ReLU
        w1=u(keys[4], (edge_dim, hidden), edge_dim), b1=u(keys[5], (1, hidden), edge_dim),
        w2=u(keys[6], (hidden, hidden), hidden),     b2=u(keys[7], (1, hidden), hidden),
        # gru: Linear(48,48) -> GELU
        wg=u(keys[8], (hidden, hidden), hidden),     bg=u(keys[9], (1, hidden), hidden),
        # weight_mlp: Linear(48,1)
        wm=u(keys[10], (hidden, 1), hidden),         bm=u(keys[11], (1, 1), hidden),
        # fuse_mlp: Linear(3,1)
        wf0=u(keys[12], (1, 1), 3), wf1=u(keys[13], (1, 1), 3),
        wf2=u(keys[14], (1, 1), 3), bf=u(keys[15], (1, 1), 3),
    )

    # single-graph call (the module's forward contract)
    out1 = gat_with_edge_attr(nodes_b[0], edge_index_b[0], edge_attr_b[0],
                              valid_b[0], r, fx, params)
    jax.block_until_ready(out1)
    assert out1.shape == (1, L)

    # batched call: B independent graphs in one pallas_call ("parallel" grid)
    outB = gat_with_edge_attr_batched(nodes_b, edge_index_b, edge_attr_b,
                                      valid_b, params)
    jax.block_until_ready(outB)
    assert outB.shape == (B, 1, L)

    # numeric check against a pure-JAX mirror of the PyTorch forward
    ref0 = _reference_forward(nodes_b[0], edge_index_b[0], edge_attr_b[0],
                              valid_b[0], params)
    assert jnp.allclose(out1, ref0, rtol=2e-3, atol=2e-3)
    for b in range(B):
        refb = _reference_forward(nodes_b[b], edge_index_b[b], edge_attr_b[b],
                                  valid_b[b], params)
        assert jnp.allclose(outB[b], refb, rtol=2e-3, atol=2e-3)

    print("KERNEL_OK")
</pallas_src>

<mosaic_0001>
module attributes {stable_mosaic.version = 11 : i64} {
  func.func @gat_kernel(%arg0: i32, %arg1: memref<1x32x8xf32, #tpu.memory_space<vmem>>, %arg2: memref<1x32x1xi32, #tpu.memory_space<vmem>>, %arg3: memref<1x1x32xi32, #tpu.memory_space<vmem>>, %arg4: memref<1x32x17xf32, #tpu.memory_space<vmem>>, %arg5: memref<128x48xf32, #tpu.memory_space<vmem>>, %arg6: memref<1x1x8xf32, #tpu.memory_space<vmem>>) attributes {dimension_semantics = [#tpu.dimension_semantics<parallel>], iteration_bounds = array<i64: 1>, scalar_prefetch = 0 : i64, scratch_operands = 0 : i64, tpu.core_type = #tpu.core_type<tc>, window_params = [{transform_indices = @transform_0, window_bounds = array<i64: 1, 32, 8>}, {transform_indices = @transform_1, window_bounds = array<i64: 1, 32, 1>}, {transform_indices = @transform_2, window_bounds = array<i64: 1, 1, 32>}, {transform_indices = @transform_3, window_bounds = array<i64: 1, 32, 17>}, {pipeline_mode = #tpu.pipeline_mode<synchronous>, transform_indices = @transform_4, window_bounds = array<i64: 128, 48>}, {transform_indices = @transform_5, window_bounds = array<i64: 1, 1, 8>}]} {
    %c0 = arith.constant 0 : index
    %c0_0 = arith.constant 0 : index
    %0 = vector.load %arg5[%c0, %c0_0] : memref<128x48xf32, #tpu.memory_space<vmem>>, vector<17x48xf32>
    %c24 = arith.constant 24 : index
    %c0_1 = arith.constant 0 : index
    %1 = vector.load %arg5[%c24, %c0_1] : memref<128x48xf32, #tpu.memory_space<vmem>>, vector<48x48xf32>
    %c72 = arith.constant 72 : index
    %c0_2 = arith.constant 0 : index
    %2 = vector.load %arg5[%c72, %c0_2] : memref<128x48xf32, #tpu.memory_space<vmem>>, vector<48x48xf32>
    %c120 = arith.constant 120 : index
    %c0_3 = arith.constant 0 : index
    %3 = vector.load %arg5[%c120, %c0_3] : memref<128x48xf32, #tpu.memory_space<vmem>>, vector<1x48xf32>
    %c121 = arith.constant 121 : index
    %c0_4 = arith.constant 0 : index
    %4 = vector.load %arg5[%c121, %c0_4] : memref<128x48xf32, #tpu.memory_space<vmem>>, vector<1x48xf32>
    %c122 = arith.constant 122 : index
    %c0_5 = arith.constant 0 : index
    %5 = vector.load %arg5[%c122, %c0_5] : memref<128x48xf32, #tpu.memory_space<vmem>>, vector<1x48xf32>
    %c123 = arith.constant 123 : index
    %c0_6 = arith.constant 0 : index
    %6 = vector.load %arg5[%c123, %c0_6] : memref<128x48xf32, #tpu.memory_space<vmem>>, vector<1x48xf32>
    %c124 = arith.constant 124 : index
    %c0_7 = arith.constant 0 : index
    %7 = vector.load %arg5[%c124, %c0_7] : memref<128x48xf32, #tpu.memory_space<vmem>>, vector<1x1xf32>
    %c124_8 = arith.constant 124 : index
    %c1 = arith.constant 1 : index
    %8 = vector.load %arg5[%c124_8, %c1] : memref<128x48xf32, #tpu.memory_space<vmem>>, vector<1x1xf32>
    %c124_9 = arith.constant 124 : index
    %c2 = arith.constant 2 : index
    %9 = vector.load %arg5[%c124_9, %c2] : memref<128x48xf32, #tpu.memory_space<vmem>>, vector<1x1xf32>
    %c124_10 = arith.constant 124 : index
    %c3 = arith.constant 3 : index
    %10 = vector.load %arg5[%c124_10, %c3] : memref<128x48xf32, #tpu.memory_space<vmem>>, vector<1x1xf32>
    %c124_11 = arith.constant 124 : index
    %c4 = arith.constant 4 : index
    %11 = vector.load %arg5[%c124_11, %c4] : memref<128x48xf32, #tpu.memory_space<vmem>>, vector<1x1xf32>
    %c0_12 = arith.constant 0 : index
    %c0_13 = arith.constant 0 : index
    %c0_14 = arith.constant 0 : index
    %12 = vector.load %arg1[%c0_12, %c0_13, %c0_14] : memref<1x32x8xf32, #tpu.memory_space<vmem>>, vector<1x32x8xf32>
    %13 = vector.shape_cast %12 : vector<1x32x8xf32> to vector<32x8xf32>
    %14 = vector.extract_strided_slice %13 {offsets = [16, 0], sizes = [16, 8], strides = [1, 1]} : vector<32x8xf32> to vector<16x8xf32>
    %15 = vector.extract_strided_slice %13 {offsets = [0, 0], sizes = [16, 8], strides = [1, 1]} : vector<32x8xf32> to vector<16x8xf32>
    %16 = arith.mulf %15, %14 : vector<16x8xf32>
    %c0_15 = arith.constant 0 : index
    %c0_16 = arith.constant 0 : index
    %c0_17 = arith.constant 0 : index
    %17 = vector.load %arg4[%c0_15, %c0_16, %c0_17] : memref<1x32x17xf32, #tpu.memory_space<vmem>>, vector<1x32x17xf32>
    %18 = vector.shape_cast %17 : vector<1x32x17xf32> to vector<32x17xf32>
    %cst = arith.constant dense<0.000000e+00> : vector<32x48xf32>
    %19 = tpu.matmul %18, %0, %cst {dimension_numbers = #tpu.dot_dimension_numbers<[1], [0], [0], [1], [0, 0, 1, 1], [], []>, precision = #tpu.contract_precision<fp32>} : vector<32x17xf32>, vector<17x48xf32>, vector<32x48xf32> -> vector<32x48xf32>
    %20 = vector.broadcast %3 : vector<1x48xf32> to vector<32x48xf32>
    %21 = arith.addf %19, %20 : vector<32x48xf32>
    %cst_18 = arith.constant 5.000000e-01 : f32
    %22 = vector.broadcast %cst_18 : f32 to vector<32x48xf32>
    %23 = arith.mulf %22, %21 : vector<32x48xf32>
    %cst_19 = arith.constant 0.707106769 : f32
    %24 = vector.broadcast %cst_19 : f32 to vector<32x48xf32>
    %25 = arith.mulf %21, %24 : vector<32x48xf32>
    %26 = math.absf %25 : vector<32x48xf32>
    %cst_20 = arith.constant 0.327591091 : f32
    %27 = vector.broadcast %cst_20 : f32 to vector<32x48xf32>
    %28 = arith.mulf %27, %26 : vector<32x48xf32>
    %cst_21 = arith.constant 1.000000e+00 : f32
    %29 = vector.broadcast %cst_21 : f32 to vector<32x48xf32>
    %30 = arith.addf %29, %28 : vector<32x48xf32>
    %cst_22 = arith.constant 1.000000e+00 : f32
    %31 = vector.broadcast %cst_22 : f32 to vector<32x48xf32>
    %32 = arith.divf %31, %30 : vector<32x48xf32>
    %cst_23 = arith.constant 1.06140542 : f32
    %33 = vector.broadcast %cst_23 : f32 to vector<32x48xf32>
    %34 = arith.mulf %33, %32 : vector<32x48xf32>
    %cst_24 = arith.constant -1.45315206 : f32
    %35 = vector.broadcast %cst_24 : f32 to vector<32x48xf32>
    %36 = arith.addf %34, %35 : vector<32x48xf32>
    %37 = arith.mulf %36, %32 : vector<32x48xf32>
    %cst_25 = arith.constant 1.42141378 : f32
    %38 = vector.broadcast %cst_25 : f32 to vector<32x48xf32>
    %39 = arith.addf %37, %38 : vector<32x48xf32>
    %40 = arith.mulf %39, %32 : vector<32x48xf32>
    %cst_26 = arith.constant -0.284496725 : f32
    %41 = vector.broadcast %cst_26 : f32 to vector<32x48xf32>
    %42 = arith.addf %40, %41 : vector<32x48xf32>
    %43 = arith.mulf %42, %32 : vector<32x48xf32>
    %cst_27 = arith.constant 0.254829586 : f32
    %44 = vector.broadcast %cst_27 : f32 to vector<32x48xf32>
    %45 = arith.addf %43, %44 : vector<32x48xf32>
    %46 = arith.mulf %45, %32 : vector<32x48xf32>
    %cst_28 = arith.constant 0.000000e+00 : f32
    %47 = vector.broadcast %cst_28 : f32 to vector<32x48xf32>
    %48 = arith.subf %47, %26 : vector<32x48xf32>
    %49 = arith.mulf %48, %26 : vector<32x48xf32>
    %50 = math.exp %49 : vector<32x48xf32>
    %51 = arith.mulf %46, %50 : vector<32x48xf32>
    %cst_29 = arith.constant 1.000000e+00 : f32
    %52 = vector.broadcast %cst_29 : f32 to vector<32x48xf32>
    %53 = arith.subf %52, %51 : vector<32x48xf32>
    %cst_30 = arith.constant 0.000000e+00 : f32
    %54 = vector.broadcast %cst_30 : f32 to vector<32x48xf32>
    %55 = arith.cmpf oge, %25, %54 : vector<32x48xf32>
    %cst_31 = arith.constant 0.000000e+00 : f32
    %56 = vector.broadcast %cst_31 : f32 to vector<32x48xf32>
    %57 = arith.subf %56, %53 : vector<32x48xf32>
    %58 = arith.select %55, %53, %57 : vector<32x48xi1>, vector<32x48xf32>
    %cst_32 = arith.constant 1.000000e+00 : f32
    %59 = vector.broadcast %cst_32 : f32 to vector<32x48xf32>
    %60 = arith.addf %59, %58 : vector<32x48xf32>
    %61 = arith.mulf %23, %60 : vector<32x48xf32>
    %cst_33 = arith.constant dense<0.000000e+00> : vector<32x48xf32>
    %62 = tpu.matmul %61, %1, %cst_33 {dimension_numbers = #tpu.dot_dimension_numbers<[1], [0], [0], [1], [0, 0, 1, 1], [], []>, precision = #tpu.contract_precision<fp32>} : vector<32x48xf32>, vector<48x48xf32>, vector<32x48xf32> -> vector<32x48xf32>
    %63 = vector.broadcast %4 : vector<1x48xf32> to vector<32x48xf32>
    %64 = arith.addf %62, %63 : vector<32x48xf32>
    %cst_34 = arith.constant 0.000000e+00 : f32
    %65 = vector.broadcast %cst_34 : f32 to vector<32x48xf32>
    %66 = arith.maximumf %64, %65 : vector<32x48xf32>
    %cst_35 = arith.constant dense<0.000000e+00> : vector<32x48xf32>
    %67 = tpu.matmul %66, %2, %cst_35 {dimension_numbers = #tpu.dot_dimension_numbers<[1], [0], [0], [1], [0, 0, 1, 1], [], []>, precision = #tpu.contract_precision<fp32>} : vector<32x48xf32>, vector<48x48xf32>, vector<32x48xf32> -> vector<32x48xf32>
    %68 = vector.broadcast %5 : vector<1x48xf32> to vector<32x48xf32>
    %69 = arith.addf %67, %68 : vector<32x48xf32>
    %cst_36 = arith.constant 5.000000e-01 : f32
    %70 = vector.broadcast %cst_36 : f32 to vector<32x48xf32>
    %71 = arith.mulf %70, %69 : vector<32x48xf32>
    %cst_37 = arith.constant 0.707106769 : f32
    %72 = vector.broadcast %cst_37 : f32 to vector<32x48xf32>
    %73 = arith.mulf %69, %72 : vector<32x48xf32>
    %74 = math.absf %73 : vector<32x48xf32>
    %cst_38 = arith.constant 0.327591091 : f32
    %75 = vector.broadcast %cst_38 : f32 to vector<32x48xf32>
    %76 = arith.mulf %75, %74 : vector<32x48xf32>
    %cst_39 = arith.constant 1.000000e+00 : f32
    %77 = vector.broadcast %cst_39 : f32 to vector<32x48xf32>
    %78 = arith.addf %77, %76 : vector<32x48xf32>
    %cst_40 = arith.constant 1.000000e+00 : f32
    %79 = vector.broadcast %cst_40 : f32 to vector<32x48xf32>
    %80 = arith.divf %79, %78 : vector<32x48xf32>
    %cst_41 = arith.constant 1.06140542 : f32
    %81 = vector.broadcast %cst_41 : f32 to vector<32x48xf32>
    %82 = arith.mulf %81, %80 : vector<32x48xf32>
    %cst_42 = arith.constant -1.45315206 : f32
    %83 = vector.broadcast %cst_42 : f32 to vector<32x48xf32>
    %84 = arith.addf %82, %83 : vector<32x48xf32>
    %85 = arith.mulf %84, %80 : vector<32x48xf32>
    %cst_43 = arith.constant 1.42141378 : f32
    %86 = vector.broadcast %cst_43 : f32 to vector<32x48xf32>
    %87 = arith.addf %85, %86 : vector<32x48xf32>
    %88 = arith.mulf %87, %80 : vector<32x48xf32>
    %cst_44 = arith.constant -0.284496725 : f32
    %89 = vector.broadcast %cst_44 : f32 to vector<32x48xf32>
    %90 = arith.addf %88, %89 : vector<32x48xf32>
    %91 = arith.mulf %90, %80 : vector<32x48xf32>
    %cst_45 = arith.constant 0.254829586 : f32
    %92 = vector.broadcast %cst_45 : f32 to vector<32x48xf32>
    %93 = arith.addf %91, %92 : vector<32x48xf32>
    %94 = arith.mulf %93, %80 : vector<32x48xf32>
    %cst_46 = arith.constant 0.000000e+00 : f32
    %95 = vector.broadcast %cst_46 : f32 to vector<32x48xf32>
    %96 = arith.subf %95, %74 : vector<32x48xf32>
    %97 = arith.mulf %96, %74 : vector<32x48xf32>
    %98 = math.exp %97 : vector<32x48xf32>
    %99 = arith.mulf %94, %98 : vector<32x48xf32>
    %cst_47 = arith.constant 1.000000e+00 : f32
    %100 = vector.broadcast %cst_47 : f32 to vector<32x48xf32>
    %101 = arith.subf %100, %99 : vector<32x48xf32>
    %cst_48 = arith.constant 0.000000e+00 : f32
    %102 = vector.broadcast %cst_48 : f32 to vector<32x48xf32>
    %103 = arith.cmpf oge, %73, %102 : vector<32x48xf32>
    %cst_49 = arith.constant 0.000000e+00 : f32
    %104 = vector.broadcast %cst_49 : f32 to vector<32x48xf32>
    %105 = arith.subf %104, %101 : vector<32x48xf32>
    %106 = arith.select %103, %101, %105 : vector<32x48xi1>, vector<32x48xf32>
    %cst_50 = arith.constant 1.000000e+00 : f32
    %107 = vector.broadcast %cst_50 : f32 to vector<32x48xf32>
    %108 = arith.addf %107, %106 : vector<32x48xf32>
    %109 = arith.mulf %71, %108 : vector<32x48xf32>
    %110 = vector.broadcast %6 : vector<1x48xf32> to vector<32x48xf32>
    %111 = arith.mulf %109, %110 : vector<32x48xf32>
    %cst_51 = arith.constant dense<0.000000e+00> : vector<32xf32>
    %112 = vector.multi_reduction <add>, %111, %cst_51 [1] : vector<32x48xf32> to vector<32xf32>
    %113 = vector.shape_cast %112 : vector<32xf32> to vector<32x1xf32>
    %114 = vector.broadcast %11 : vector<1x1xf32> to vector<32x1xf32>
    %115 = arith.addf %113, %114 : vector<32x1xf32>
    %c0_52 = arith.constant 0 : index
    %c0_53 = arith.constant 0 : index
    %c0_54 = arith.constant 0 : index
    %116 = vector.load %arg2[%c0_52, %c0_53, %c0_54] : memref<1x32x1xi32, #tpu.memory_space<vmem>>, vector<1x32x1xi32>
    %117 = vector.shape_cast %116 : vector<1x32x1xi32> to vector<32x1xi32>
    %c0_55 = arith.constant 0 : index
    %c0_56 = arith.constant 0 : index
    %c0_57 = arith.constant 0 : index
    %118 = vector.load %arg3[%c0_55, %c0_56, %c0_57] : memref<1x1x32xi32, #tpu.memory_space<vmem>>, vector<1x1x32xi32>
    %119 = vector.shape_cast %118 : vector<1x1x32xi32> to vector<1x32xi32>
    %120 = tpu.iota {dimensions = array<i32: 1>} : vector<32x16xi32>
    %121 = vector.broadcast %117 : vector<32x1xi32> to vector<32x16xi32>
    %122 = arith.cmpi eq, %120, %121 : vector<32x16xi32>
    %123 = arith.extui %122 : vector<32x16xi1> to vector<32x16xi32>
    %124 = arith.sitofp %123 : vector<32x16xi32> to vector<32x16xf32>
    %125 = tpu.iota {dimensions = array<i32: 0>} : vector<16x32xi32>
    %126 = vector.broadcast %119 : vector<1x32xi32> to vector<16x32xi32>
    %127 = arith.cmpi eq, %125, %126 : vector<16x32xi32>
    %128 = arith.extui %127 : vector<16x32xi1> to vector<16x32xi32>
    %129 = arith.sitofp %128 : vector<16x32xi32> to vector<16x32xf32>
    %130 = tpu.iota {dimensions = array<i32: 1>} : vector<16x8xi32>
    %c0_i32 = arith.constant 0 : i32
    %131 = vector.broadcast %c0_i32 : i32 to vector<16x8xi32>
    %132 = arith.cmpi eq, %130, %131 : vector<16x8xi32>
    %cst_58 = arith.constant 1.000000e+00 : f32
    %133 = vector.broadcast %cst_58 : f32 to vector<16x8xf32>
    %134 = arith.subf %133, %14 : vector<16x8xf32>
    %cst_59 = arith.constant dense<0.000000e+00> : vector<16xf32>
    %135 = vector.multi_reduction <add>, %14, %cst_59 [1] : vector<16x8xf32> to vector<16xf32>
    %136 = vector.shape_cast %135 : vector<16xf32> to vector<16x1xf32>
    %cst_60 = arith.constant 8.000000e+00 : f32
    %137 = vector.broadcast %cst_60 : f32 to vector<16x1xf32>
    %138 = arith.divf %136, %137 : vector<16x1xf32>
    %139 = tpu.concatenate %16, %138 in 1 : vector<16x8xf32>, vector<16x1xf32> -> vector<16x9xf32>
    %cst_61 = arith.constant dense<0.000000e+00> : vector<32x9xf32>
    %140 = tpu.matmul %124, %139, %cst_61 {dimension_numbers = #tpu.dot_dimension_numbers<[1], [0], [0], [1], [0, 0, 1, 1], [], []>, precision = #tpu.contract_precision<fp32>} : vector<32x16xf32>, vector<16x9xf32>, vector<32x9xf32> -> vector<32x9xf32>
    %141 = vector.extract_strided_slice %140 {offsets = [0, 8], sizes = [32, 1], strides = [1, 1]} : vector<32x9xf32> to vector<32x1xf32>
    %142 = arith.mulf %141, %115 : vector<32x1xf32>
    %143 = arith.negf %142 : vector<32x1xf32>
    %144 = math.exp %143 : vector<32x1xf32>
    %cst_62 = arith.constant 1.000000e+00 : f32
    %145 = vector.broadcast %cst_62 : f32 to vector<32x1xf32>
    %146 = arith.addf %145, %144 : vector<32x1xf32>
    %147 = arith.divf %145, %146 : vector<32x1xf32>
    %148 = vector.extract_strided_slice %140 {offsets = [0, 0], sizes = [32, 8], strides = [1, 1]} : vector<32x9xf32> to vector<32x8xf32>
    %149 = vector.broadcast %147 : vector<32x1xf32> to vector<32x8xf32>
    %150 = arith.mulf %148, %149 : vector<32x8xf32>
    %cst_63 = arith.constant dense<0.000000e+00> : vector<16x8xf32>
    %151 = tpu.matmul %129, %150, %cst_63 {dimension_numbers = #tpu.dot_dimension_numbers<[1], [0], [0], [1], [0, 0, 1, 1], [], []>, precision = #tpu.contract_precision<fp32>} : vector<16x32xf32>, vector<32x8xf32>, vector<16x8xf32> -> vector<16x8xf32>
    %152 = vector.broadcast %7 : vector<1x1xf32> to vector<16x8xf32>
    %153 = arith.mulf %151, %152 : vector<16x8xf32>
    %154 = vector.broadcast %8 : vector<1x1xf32> to vector<16x8xf32>
    %155 = arith.mulf %16, %154 : vector<16x8xf32>
    %156 = arith.addf %153, %155 : vector<16x8xf32>
    %157 = vector.broadcast %9 : vector<1x1xf32> to vector<16x8xf32>
    %158 = arith.mulf %134, %157 : vector<16x8xf32>
    %159 = arith.addf %156, %158 : vector<16x8xf32>
    %160 = vector.broadcast %10 : vector<1x1xf32> to vector<16x8xf32>
    %161 = arith.addf %159, %160 : vector<16x8xf32>
    %162 = arith.negf %161 : vector<16x8xf32>
    %163 = math.exp %162 : vector<16x8xf32>
    %cst_64 = arith.constant 1.000000e+00 : f32
    %164 = vector.broadcast %cst_64 : f32 to vector<16x8xf32>
    %165 = arith.addf %164, %163 : vector<16x8xf32>
    %166 = arith.divf %164, %165 : vector<16x8xf32>
    %cst_65 = arith.constant 1.000000e+00 : f32
    %167 = vector.broadcast %cst_65 : f32 to vector<16x8xf32>
    %168 = arith.subf %167, %166 : vector<16x8xf32>
    %169 = arith.mulf %168, %16 : vector<16x8xf32>
    %170 = arith.mulf %134, %166 : vector<16x8xf32>
    %171 = arith.mulf %170, %151 : vector<16x8xf32>
    %172 = arith.addf %169, %171 : vector<16x8xf32>
    %173 = arith.cmpf one, %16, %172 : vector<16x8xf32>
    %174 = arith.extui %173 : vector<16x8xi1> to vector<16x8xi32>
    %175 = arith.sitofp %174 : vector<16x8xi32> to vector<16x8xf32>
    %cst_66 = arith.constant 0.000000e+00 : f32
    %176 = vector.broadcast %cst_66 : f32 to vector<16x8xf32>
    %177 = arith.cmpf ogt, %14, %176 : vector<16x8xf32>
    %178 = arith.extui %177 : vector<16x8xi1> to vector<16x8xi32>
    %179 = arith.sitofp %178 : vector<16x8xi32> to vector<16x8xf32>
    %180 = arith.maximumf %175, %179 : vector<16x8xf32>
    %cst_67 = arith.constant 0.000000e+00 : f32
    %181 = vector.broadcast %cst_67 : f32 to vector<16x8xf32>
    %182 = arith.select %132, %181, %180 : vector<16x8xi1>, vector<16x8xf32>
    %cst_68 = arith.constant 1.000000e+00 : f32
    %183 = vector.broadcast %cst_68 : f32 to vector<16x8xf32>
    %184 = arith.subf %183, %182 : vector<16x8xf32>
    %cst_69 = arith.constant dense<0.000000e+00> : vector<16xf32>
    %185 = vector.multi_reduction <add>, %182, %cst_69 [1] : vector<16x8xf32> to vector<16xf32>
    %186 = vector.shape_cast %185 : vector<16xf32> to vector<16x1xf32>
    %cst_70 = arith.constant 8.000000e+00 : f32
    %187 = vector.broadcast %cst_70 : f32 to vector<16x1xf32>
    %188 = arith.divf %186, %187 : vector<16x1xf32>
    %189 = tpu.concatenate %172, %188 in 1 : vector<16x8xf32>, vector<16x1xf32> -> vector<16x9xf32>
    %cst_71 = arith.constant dense<0.000000e+00> : vector<32x9xf32>
    %190 = tpu.matmul %124, %189, %cst_71 {dimension_numbers = #tpu.dot_dimension_numbers<[1], [0], [0], [1], [0, 0, 1, 1], [], []>, precision = #tpu.contract_precision<fp32>} : vector<32x16xf32>, vector<16x9xf32>, vector<32x9xf32> -> vector<32x9xf32>
    %191 = vector.extract_strided_slice %190 {offsets = [0, 8], sizes = [32, 1], strides = [1, 1]} : vector<32x9xf32> to vector<32x1xf32>
    %192 = arith.mulf %191, %115 : vector<32x1xf32>
    %193 = arith.negf %192 : vector<32x1xf32>
    %194 = math.exp %193 : vector<32x1xf32>
    %cst_72 = arith.constant 1.000000e+00 : f32
    %195 = vector.broadcast %cst_72 : f32 to vector<32x1xf32>
    %196 = arith.addf %195, %194 : vector<32x1xf32>
    %197 = arith.divf %195, %196 : vector<32x1xf32>
    %198 = vector.extract_strided_slice %190 {offsets = [0, 0], sizes = [32, 8], strides = [1, 1]} : vector<32x9xf32> to vector<32x8xf32>
    %199 = vector.broadcast %197 : vector<32x1xf32> to vector<32x8xf32>
    %200 = arith.mulf %198, %199 : vector<32x8xf32>
    %cst_73 = arith.constant dense<0.000000e+00> : vector<16x8xf32>
    %201 = tpu.matmul %129, %200, %cst_73 {dimension_numbers = #tpu.dot_dimension_numbers<[1], [0], [0], [1], [0, 0, 1, 1], [], []>, precision = #tpu.contract_precision<fp32>} : vector<16x32xf32>, vector<32x8xf32>, vector<16x8xf32> -> vector<16x8xf32>
    %202 = vector.broadcast %7 : vector<1x1xf32> to vector<16x8xf32>
    %203 = arith.mulf %201, %202 : vector<16x8xf32>
    %204 = vector.broadcast %8 : vector<1x1xf32> to vector<16x8xf32>
    %205 = arith.mulf %172, %204 : vector<16x8xf32>
    %206 = arith.addf %203, %205 : vector<16x8xf32>
    %207 = vector.broadcast %9 : vector<1x1xf32> to vector<16x8xf32>
    %208 = arith.mulf %184, %207 : vector<16x8xf32>
    %209 = arith.addf %206, %208 : vector<16x8xf32>
    %210 = vector.broadcast %10 : vector<1x1xf32> to vector<16x8xf32>
    %211 = arith.addf %209, %210 : vector<16x8xf32>
    %212 = arith.negf %211 : vector<16x8xf32>
    %213 = math.exp %212 : vector<16x8xf32>
    %cst_74 = arith.constant 1.000000e+00 : f32
    %214 = vector.broadcast %cst_74 : f32 to vector<16x8xf32>
    %215 = arith.addf %214, %213 : vector<16x8xf32>
    %216 = arith.divf %214, %215 : vector<16x8xf32>
    %cst_75 = arith.constant 1.000000e+00 : f32
    %217 = vector.broadcast %cst_75 : f32 to vector<16x8xf32>
    %218 = arith.subf %217, %216 : vector<16x8xf32>
    %219 = arith.mulf %218, %172 : vector<16x8xf32>
    %220 = arith.mulf %184, %216 : vector<16x8xf32>
    %221 = arith.mulf %220, %201 : vector<16x8xf32>
    %222 = arith.addf %219, %221 : vector<16x8xf32>
    %223 = arith.cmpf one, %16, %222 : vector<16x8xf32>
    %224 = arith.extui %223 : vector<16x8xi1> to vector<16x8xi32>
    %225 = arith.sitofp %224 : vector<16x8xi32> to vector<16x8xf32>
    %cst_76 = arith.constant 0.000000e+00 : f32
    %226 = vector.broadcast %cst_76 : f32 to vector<16x8xf32>
    %227 = arith.cmpf ogt, %182, %226 : vector<16x8xf32>
    %228 = arith.extui %227 : vector<16x8xi1> to vector<16x8xi32>
    %229 = arith.sitofp %228 : vector<16x8xi32> to vector<16x8xf32>
    %230 = arith.maximumf %225, %229 : vector<16x8xf32>
    %cst_77 = arith.constant 0.000000e+00 : f32
    %231 = vector.broadcast %cst_77 : f32 to vector<16x8xf32>
    %232 = arith.select %132, %231, %230 : vector<16x8xi1>, vector<16x8xf32>
    %cst_78 = arith.constant 1.000000e+00 : f32
    %233 = vector.broadcast %cst_78 : f32 to vector<16x8xf32>
    %234 = arith.subf %233, %232 : vector<16x8xf32>
    %cst_79 = arith.constant dense<0.000000e+00> : vector<16xf32>
    %235 = vector.multi_reduction <add>, %232, %cst_79 [1] : vector<16x8xf32> to vector<16xf32>
    %236 = vector.shape_cast %235 : vector<16xf32> to vector<16x1xf32>
    %cst_80 = arith.constant 8.000000e+00 : f32
    %237 = vector.broadcast %cst_80 : f32 to vector<16x1xf32>
    %238 = arith.divf %236, %237 : vector<16x1xf32>
    %239 = tpu.concatenate %222, %238 in 1 : vector<16x8xf32>, vector<16x1xf32> -> vector<16x9xf32>
    %cst_81 = arith.constant dense<0.000000e+00> : vector<32x9xf32>
    %240 = tpu.matmul %124, %239, %cst_81 {dimension_numbers = #tpu.dot_dimension_numbers<[1], [0], [0], [1], [0, 0, 1, 1], [], []>, precision = #tpu.contract_precision<fp32>} : vector<32x16xf32>, vector<16x9xf32>, vector<32x9xf32> -> vector<32x9xf32>
    %241 = vector.extract_strided_slice %240 {offsets = [0, 8], sizes = [32, 1], strides = [1, 1]} : vector<32x9xf32> to vector<32x1xf32>
    %242 = arith.mulf %241, %115 : vector<32x1xf32>
    %243 = arith.negf %242 : vector<32x1xf32>
    %244 = math.exp %243 : vector<32x1xf32>
    %cst_82 = arith.constant 1.000000e+00 : f32
    %245 = vector.broadcast %cst_82 : f32 to vector<32x1xf32>
    %246 = arith.addf %245, %244 : vector<32x1xf32>
    %247 = arith.divf %245, %246 : vector<32x1xf32>
    %248 = vector.extract_strided_slice %240 {offsets = [0, 0], sizes = [32, 8], strides = [1, 1]} : vector<32x9xf32> to vector<32x8xf32>
    %249 = vector.broadcast %247 : vector<32x1xf32> to vector<32x8xf32>
    %250 = arith.mulf %248, %249 : vector<32x8xf32>
    %cst_83 = arith.constant dense<0.000000e+00> : vector<16x8xf32>
    %251 = tpu.matmul %129, %250, %cst_83 {dimension_numbers = #tpu.dot_dimension_numbers<[1], [0], [0], [1], [0, 0, 1, 1], [], []>, precision = #tpu.contract_precision<fp32>} : vector<16x32xf32>, vector<32x8xf32>, vector<16x8xf32> -> vector<16x8xf32>
    %252 = vector.broadcast %7 : vector<1x1xf32> to vector<16x8xf32>
    %253 = arith.mulf %251, %252 : vector<16x8xf32>
    %254 = vector.broadcast %8 : vector<1x1xf32> to vector<16x8xf32>
    %255 = arith.mulf %222, %254 : vector<16x8xf32>
    %256 = arith.addf %253, %255 : vector<16x8xf32>
    %257 = vector.broadcast %9 : vector<1x1xf32> to vector<16x8xf32>
    %258 = arith.mulf %234, %257 : vector<16x8xf32>
    %259 = arith.addf %256, %258 : vector<16x8xf32>
    %260 = vector.broadcast %10 : vector<1x1xf32> to vector<16x8xf32>
    %261 = arith.addf %259, %260 : vector<16x8xf32>
    %262 = arith.negf %261 : vector<16x8xf32>
    %263 = math.exp %262 : vector<16x8xf32>
    %cst_84 = arith.constant 1.000000e+00 : f32
    %264 = vector.broadcast %cst_84 : f32 to vector<16x8xf32>
    %265 = arith.addf %264, %263 : vector<16x8xf32>
    %266 = arith.divf %264, %265 : vector<16x8xf32>
    %cst_85 = arith.constant 1.000000e+00 : f32
    %267 = vector.broadcast %cst_85 : f32 to vector<16x8xf32>
    %268 = arith.subf %267, %266 : vector<16x8xf32>
    %269 = arith.mulf %268, %222 : vector<16x8xf32>
    %270 = arith.mulf %234, %266 : vector<16x8xf32>
    %271 = arith.mulf %270, %251 : vector<16x8xf32>
    %272 = arith.addf %269, %271 : vector<16x8xf32>
    %273 = vector.extract_strided_slice %272 {offsets = [0, 0], sizes = [1, 8], strides = [1, 1]} : vector<16x8xf32> to vector<1x8xf32>
    %274 = vector.shape_cast %273 : vector<1x8xf32> to vector<1x1x8xf32>
    %c0_86 = arith.constant 0 : index
    %c0_87 = arith.constant 0 : index
    %c0_88 = arith.constant 0 : index
    %275 = vector.load %arg6[%c0_86, %c0_87, %c0_88] : memref<1x1x8xf32, #tpu.memory_space<vmem>>, vector<1x1x8xf32>
    tpu.vector_store %arg6[%c0_86, %c0_87, %c0_88], %274 {strides = array<i32>} : memref<1x1x8xf32, #tpu.memory_space<vmem>>, vector<1x1x8xf32>,
    return
  }
  func.func @transform_0(%arg0: i32) -> (i32, i32, i32) {
    %c0_i32 = arith.constant 0 : i32
    %c0_i32_0 = arith.constant 0 : i32
    %c0_i32_1 = arith.constant 0 : i32
    return %arg0, %c0_i32, %c0_i32_0 : i32, i32, i32
  }
  func.func @transform_1(%arg0: i32) -> (i32, i32, i32) {
    %c0_i32 = arith.constant 0 : i32
    %c0_i32_0 = arith.constant 0 : i32
    %c0_i32_1 = arith.constant 0 : i32
    return %arg0, %c0_i32, %c0_i32_0 : i32, i32, i32
  }
  func.func @transform_2(%arg0: i32) -> (i32, i32, i32) {
    %c0_i32 = arith.constant 0 : i32
    %c0_i32_0 = arith.constant 0 : i32
    %c0_i32_1 = arith.constant 0 : i32
    return %arg0, %c0_i32, %c0_i32_0 : i32, i32, i32
  }
  func.func @transform_3(%arg0: i32) -> (i32, i32, i32) {
    %c0_i32 = arith.constant 0 : i32
    %c0_i32_0 = arith.constant 0 : i32
    %c0_i32_1 = arith.constant 0 : i32
    return %arg0, %c0_i32, %c0_i32_0 : i32, i32, i32
  }
  func.func @transform_4(%arg0: i32) -> (i32, i32) {
    %c0_i32 = arith.constant 0 : i32
    %c0_i32_0 = arith.constant 0 : i32
    %c0_i32_1 = arith.constant 0 : i32
    return %c0_i32, %c0_i32_0 : i32, i32
  }
  func.func @transform_5(%arg0: i32) -> (i32, i32, i32) {
    %c0_i32 = arith.constant 0 : i32
    %c0_i32_0 = arith.constant 0 : i32
    %c0_i32_1 = arith.constant 0 : i32
    return %arg0, %c0_i32, %c0_i32_0 : i32, i32, i32
  }
}

</mosaic_0001>

<llo_original>
// kernel: tpu_custom_call.1
$region0: #{tpu_custom_call.1}
  #allocation0 [shape = 'u32[]', space=smem, size = 0x4, offset = 0x4, fixed_abs, tag = 'smem constant byte address 0x4 - core index']
  #allocation1 [shape = 'u32[144,128]{1,0:T(1,128)}', space=vmem, size = 0x12000, scoped, tag = 'internal scratch']
  %s0 = inlined_call_operand.vmem [shape: f32[1,32,8], index: 0, kind: input, shape index: {}]
  %s1 = inlined_call_operand.vmem [shape: s32[1,32,1], index: 1, kind: input, shape index: {}]
  %s2 = inlined_call_operand.vmem [shape: s32[1,1,32], index: 2, kind: input, shape index: {}]
  %s3 = inlined_call_operand.vmem [shape: f32[1,32,17], index: 3, kind: input, shape index: {}]
  %s4 = inlined_call_operand.vmem [shape: f32[128,48], index: 4, kind: input, shape index: {}]
  %s5 = inlined_call_operand.hbm [shape: f32[1,1,8], index: 5, kind: output, shape index: {}]
  %s6 = sld [smem:[#allocation0]]
  $region30: #{tpu_custom_call.1} parent=0
    _
  %s8 = ssub.s32 1, %s6
  %s9 = scalar_select 0, %s8, %s6
  $region1: #{tpu_custom_call.1} parent=0
    #allocation2 [shape = 'u8[512]{0}', space=vmem, size = 0x400, scoped, tag = 'output window, operand 0, single buffered']
    #allocation3 [shape = 's32[1]{0}', space=sflag, size = 0x4, scoped, tag = 'scoped memory for tpu_custom_call.1']
    %10 = vsyncpa [#allocation3], 0
    // Predicated region
    $region2: #{tpu_custom_call.1} parent=1 // pred_check
      _
    $region3: #{tpu_custom_call.1} parent=1 // pred_check_branch
      %12 = sbr.rel (0) target = $region5
    $region4: #{tpu_custom_call.1} parent=1 // pred_region
      _
    $region5: #{tpu_custom_call.1} parent=1 // pred_fallthru
      _
    // Predicated region
    $region6: #{tpu_custom_call.1} parent=1 // pred_check
      _
    $region7: #{tpu_custom_call.1} parent=1 // pred_check_branch
      %14 = sbr.rel (0) target = $region9
    $region8: #{tpu_custom_call.1} parent=1 // pred_region
      _
    $region9: #{tpu_custom_call.1} parent=1 // pred_fallthru
      _
    // Predicated region
    $region10: #{tpu_custom_call.1} parent=1 // pred_check
      _
    $region11: #{tpu_custom_call.1} parent=1 // pred_check_branch
      %16 = sbr.rel (0) target = $region13
    $region12: #{tpu_custom_call.1} parent=1 // pred_region
      _
    $region13: #{tpu_custom_call.1} parent=1 // pred_fallthru
      _
    // Predicated region
    $region14: #{tpu_custom_call.1} parent=1 // pred_check
      _
    $region15: #{tpu_custom_call.1} parent=1 // pred_check_branch
      %18 = sbr.rel (0) target = $region17
    $region16: #{tpu_custom_call.1} parent=1 // pred_region
      _
    $region17: #{tpu_custom_call.1} parent=1 // pred_fallthru
      _
    // Predicated region
    $region18: #{tpu_custom_call.1} parent=1 // pred_check
      _
    $region19: #{tpu_custom_call.1} parent=1 // pred_check_branch
      %20 = sbr.rel (0) target = $region21
    $region20: #{tpu_custom_call.1} parent=1 // pred_region
      _
    $region21: #{tpu_custom_call.1} parent=1 // pred_fallthru
      _
    %v21 = vld [vmem:[%s4] sm:$0xff]
    %v22 = vld [vmem:[%s4 + $0x8] sm:$0xff]
    %v23 = vld [vmem:[%s4 + $0x10] sm:$0x1]
    %v24 = vld [vmem:[%s4 + $0x18] sm:$0xff]
    %v25 = vld [vmem:[%s4 + $0x20] sm:$0xff]
    %v26 = vld [vmem:[%s4 + $0x28] sm:$0xff]
    %v27 = vld [vmem:[%s4 + $0x30] sm:$0xff]
    %v28 = vld [vmem:[%s4 + $0x38] sm:$0xff]
    %v29 = vld [vmem:[%s4 + $0x40] sm:$0xff]
    %v30 = vld [vmem:[%s4 + $0x48] sm:$0xff]
    %v31 = vld [vmem:[%s4 + $0x50] sm:$0xff]
    %v32 = vld [vmem:[%s4 + $0x58] sm:$0xff]
    %v33 = vld [vmem:[%s4 + $0x60] sm:$0xff]
    %v34 = vld [vmem:[%s4 + $0x68] sm:$0xff]
    %v35 = vld [vmem:[%s4 + $0x70] sm:$0xff]
    %v36 = vld [vmem:[%s4 + $0x78] sm:$0x1]
    %v37 = vld [vmem:[%s4 + $0x79] sm:$0x1]
    %v38 = vld [vmem:[%s4 + $0x7a] sm:$0x1]
    %v39 = vld [vmem:[%s4 + $0x7b] sm:$0x1]
    %v40 = vld [vmem:[%s4 + $0x7c] sm:$0x1]
    %v41 = vld [vmem:[%s0] sm:$0xff]
    %v42 = vld [vmem:[%s0 + $0x8] sm:$0xff]
    %v43 = vld [vmem:[%s0 + $0x10] sm:$0xff]
    %v44 = vld [vmem:[%s0 + $0x18] sm:$0xff]
    %v45 = vmul.f32 %v41, %v43
    %v46 = vmul.f32 %v42, %v44
    %v47 = vld [vmem:[%s3] sm:$0xff]
    %v48 = vld [vmem:[%s3 + $0x8] sm:$0xff]
    %v49 = vld [vmem:[%s3 + $0x10] sm:$0xff]
    %v50 = vld [vmem:[%s3 + $0x18] sm:$0xff]
    %v51 = vlaneseq
    %v52 = vshrl.u32 %v51, 7
    %v53 = vsub.s32 0, %v52
    %v54 = vrot.slane %v36, %v53
    %vm55 = vcmask 138240
    %v57 = vsel %vm55, %v47, 0
    %v60 = vsel %vm55, %v48, 0
    %v63 = vsel %vm55, %v49, 0
    %v66 = vsel %vm55, %v50, 0
    %vm68 = vcmask 1040384
    %v70 = vsel %vm68, %v23, 0
    %72 = vmatprep.subr.mxu0 0.0
    %73 = vmatpush1.msra.mxu0 0.0
    %74 = vmatprep.subr.mxu0 0.0
    %75 = vmatpush1.msra.mxu0 0.0
    %76 = vmatprep.subr.mxu0 0.0
    %77 = vmatpush1.msra.mxu0 0.0
    %78 = vmatprep.subr.mxu0 0.0
    %79 = vmatpush1.msra.mxu0 0.0
    %80 = vmatprep.subr.mxu0 0.0
    %81 = vmatpush1.msra.mxu0 0.0
    %82 = vmatprep.subr.mxu0 0.0
    %83 = vmatpush1.msra.mxu0 0.0
    %84 = vmatprep.subr.mxu0 0.0
    %85 = vmatpush1.msra.mxu0 0.0
    %86 = vmatprep.subr.mxu0 0.0
    %87 = vmatpush1.msra.mxu0 0.0
    %88 = vmatprep.subr.mxu0 0.0
    %89 = vmatpush1.msra.mxu0 0.0
    %90 = vmatprep.subr.mxu0 0.0
    %91 = vmatpush1.msra.mxu0 0.0
    %92 = vmatprep.subr.mxu0 0.0
    %93 = vmatpush1.msra.mxu0 0.0
    %94 = vmatprep.subr.mxu0 0.0
    %95 = vmatpush1.msra.mxu0 0.0
    %96 = vmatprep.subr.mxu0 0.0
    %97 = vmatpush1.msra.mxu0 0.0
    %98 = vmatprep.subr.mxu0 0.0
    %v99 = vand.u32 %v70, 4294901760
    %100 = vmatpush1.msra.mxu0 %v99
    %101 = vmatprep.subr.mxu0 0.0
    %v102 = vand.u32 %v22, 4294901760
    %103 = vmatpush1.msra.mxu0 %v102
    %104 = vmatprep.subr.mxu0 0.0
    %v105 = vand.u32 %v21, 4294901760
    %106 = vmatpush1.msra.mxu0 %v105
    %107 = vmatprep.subr.mxu0 0.0
    %108 = vmatpush2.msra.mxu0 0.0
    %109 = vmatprep.subr.mxu0 0.0
    %110 = vmatpush2.msra.mxu0 0.0
    %111 = vmatprep.subr.mxu0 0.0
    %112 = vmatpush2.msra.mxu0 0.0
    %113 = vmatprep.subr.mxu0 0.0
    %114 = vmatpush2.msra.mxu0 0.0
    %115 = vmatprep.subr.mxu0 0.0
    %116 = vmatpush2.msra.mxu0 0.0
    %117 = vmatprep.subr.mxu0 0.0
    %118 = vmatpush2.msra.mxu0 0.0
    %119 = vmatprep.subr.mxu0 0.0
    %120 = vmatpush2.msra.mxu0 0.0
    %121 = vmatprep.subr.mxu0 0.0
    %122 = vmatpush2.msra.mxu0 0.0
    %123 = vmatprep.subr.mxu0 0.0
    %124 = vmatpush2.msra.mxu0 0.0
    %125 = vmatprep.subr.mxu0 0.0
    %126 = vmatpush2.msra.mxu0 0.0
    %127 = vmatprep.subr.mxu0 0.0
    %128 = vmatpush2.msra.mxu0 0.0
    %129 = vmatprep.subr.mxu0 0.0
    %130 = vmatpush2.msra.mxu0 0.0
    %131 = vmatprep.subr.mxu0 0.0
    %132 = vmatpush2.msra.mxu0 0.0
    %133 = vmatprep.subr.mxu0 0.0
    %134 = vmatpush2.msra.mxu0 0.0
    %135 = vmatprep.subr.mxu0 0.0
    %136 = vmatpush2.msra.mxu0 0.0
    %137 = vmatprep.subr.mxu0 0.0
    %138 = vmatpush2.msra.mxu0 0.0
    %139 = vmatprep.mubr.f32.mxu0 0.0
    %v140 = vand.u32 %v57, 4294901760
    %v141 = vsub.f32 %v57, %v140
    %v142 = vand.u32 %v141, 4294901760
    %v143 = vsub.f32 %v141, %v142
    %v144 = vand.u32 %v143, 4294901760
    %145 = vmatmul.mubr.f32.gmra.mxu0 %v144
    %v146 = vpop.f32.mrf.mxu0
    %v147 = vadd.f32 %v54, %v146
    %v148 = vpop.f32.mrf.mxu0
    %149 = vmatprep.mubr.f32.mxu0 0.0
    %v150 = vand.u32 %v60, 4294901760
    %v151 = vsub.f32 %v60, %v150
    %v152 = vand.u32 %v151, 4294901760
    %v153 = vsub.f32 %v151, %v152
    %v154 = vand.u32 %v153, 4294901760
    %155 = vmatmul.mubr.f32.gmra.mxu0 %v154
    %v156 = vpop.f32.mrf.mxu0
    %v157 = vadd.f32 %v54, %v156
    %v158 = vpop.f32.mrf.mxu0
    %159 = vmatprep.mubr.f32.mxu0 0.0
    %v160 = vand.u32 %v63, 4294901760
    %v161 = vsub.f32 %v63, %v160
    %v162 = vand.u32 %v161, 4294901760
    %v163 = vsub.f32 %v161, %v162
    %v164 = vand.u32 %v163, 4294901760
    %165 = vmatmul.mubr.f32.gmra.mxu0 %v164
    %v166 = vpop.f32.mrf.mxu0
    %v167 = vadd.f32 %v54, %v166
    %v168 = vpop.f32.mrf.mxu0
    %169 = vmatprep.mubr.f32.mxu0 0.0
    %v170 = vand.u32 %v66, 4294901760
    %v171 = vsub.f32 %v66, %v170
    %v172 = vand.u32 %v171, 4294901760
    %v173 = vsub.f32 %v171, %v172
    %v174 = vand.u32 %v173, 4294901760
    %175 = vmatmul.mubr.f32.gmra.mxu0 %v174
    %v176 = vpop.f32.mrf.mxu0
    %v177 = vadd.f32 %v54, %v176
    %v178 = vpop.f32.mrf.mxu0
    %179 = vdwg.mxu0
    %180 = vmatprep.subr.mxu0 0.0
    %181 = vmatpush1.msra.mxu0 0.0
    %182 = vmatprep.subr.mxu0 0.0
    %183 = vmatpush1.msra.mxu0 0.0
    %184 = vmatprep.subr.mxu0 0.0
    %185 = vmatpush1.msra.mxu0 0.0
    %186 = vmatprep.subr.mxu0 0.0
    %187 = vmatpush1.msra.mxu0 0.0
    %188 = vmatprep.subr.mxu0 0.0
    %189 = vmatpush1.msra.mxu0 0.0
    %190 = vmatprep.subr.mxu0 0.0
    %191 = vmatpush1.msra.mxu0 0.0
    %192 = vmatprep.subr.mxu0 0.0
    %193 = vmatpush1.msra.mxu0 0.0
    %194 = vmatprep.subr.mxu0 0.0
    %195 = vmatpush1.msra.mxu0 0.0
    %196 = vmatprep.subr.mxu0 0.0
    %197 = vmatpush1.msra.mxu0 0.0
    %198 = vmatprep.subr.mxu0 0.0
    %199 = vmatpush1.msra.mxu0 0.0
    %200 = vmatprep.subr.mxu0 0.0
    %201 = vmatpush1.msra.mxu0 0.0
    %202 = vmatprep.subr.mxu0 0.0
    %203 = vmatpush1.msra.mxu0 0.0
    %204 = vmatprep.subr.mxu0 0.0
    %205 = vmatpush1.msra.mxu0 0.0
    %206 = vmatprep.subr.mxu0 0.0
    %v207 = vand.u32 %v70, 4294901760
    %v208 = vsub.f32 %v70, %v207
    %v209 = vand.u32 %v208, 4294901760
    %v210 = vsub.f32 %v208, %v209
    %v211 = vand.u32 %v210, 4294901760
    %212 = vmatpush1.msra.mxu0 %v211
    %213 = vmatprep.subr.mxu0 0.0
    %v214 = vand.u32 %v22, 4294901760
    %v215 = vsub.f32 %v22, %v214
    %v216 = vand.u32 %v215, 4294901760
    %v217 = vsub.f32 %v215, %v216
    %v218 = vand.u32 %v217, 4294901760
    %219 = vmatpush1.msra.mxu0 %v218
    %220 = vmatprep.subr.mxu0 0.0
    %v221 = vand.u32 %v21, 4294901760
    %v222 = vsub.f32 %v21, %v221
    %v223 = vand.u32 %v222, 4294901760
    %v224 = vsub.f32 %v222, %v223
    %v225 = vand.u32 %v224, 4294901760
    %226 = vmatpush1.msra.mxu0 %v225
    %227 = vmatprep.subr.mxu0 0.0
    %228 = vmatpush2.msra.mxu0 0.0
    %229 = vmatprep.subr.mxu0 0.0
    %230 = vmatpush2.msra.mxu0 0.0
    %231 = vmatprep.subr.mxu0 0.0
    %232 = vmatpush2.msra.mxu0 0.0
    %233 = vmatprep.subr.mxu0 0.0
    %234 = vmatpush2.msra.mxu0 0.0
    %235 = vmatprep.subr.mxu0 0.0
    %236 = vmatpush2.msra.mxu0 0.0
    %237 = vmatprep.subr.mxu0 0.0
    %238 = vmatpush2.msra.mxu0 0.0
    %239 = vmatprep.subr.mxu0 0.0
    %240 = vmatpush2.msra.mxu0 0.0
    %241 = vmatprep.subr.mxu0 0.0
    %242 = vmatpush2.msra.mxu0 0.0
    %243 = vmatprep.subr.mxu0 0.0
    %244 = vmatpush2.msra.mxu0 0.0
    %245 = vmatprep.subr.mxu0 0.0
    %246 = vmatpush2.msra.mxu0 0.0
    %247 = vmatprep.subr.mxu0 0.0
    %248 = vmatpush2.msra.mxu0 0.0
    %249 = vmatprep.subr.mxu0 0.0
    %250 = vmatpush2.msra.mxu0 0.0
    %251 = vmatprep.subr.mxu0 0.0
    %252 = vmatpush2.msra.mxu0 0.0
    %253 = vmatprep.subr.mxu0 0.0
    %254 = vmatpush2.msra.mxu0 0.0
    %255 = vmatprep.subr.mxu0 0.0
    %256 = vmatpush2.msra.mxu0 0.0
    %257 = vmatprep.subr.mxu0 0.0
    %258 = vmatpush2.msra.mxu0 0.0
    %259 = vmatprep.mubr.f32.mxu0 0.0
    %v260 = vand.u32 %v57, 4294901760
    %261 = vmatmul.mubr.f32.gmra.mxu0 %v260
    %v262 = vpop.f32.mrf.mxu0
    %v263 = vadd.f32 %v147, %v262
    %v264 = vpop.f32.mrf.mxu0
    %265 = vmatprep.mubr.f32.mxu0 0.0
    %v266 = vand.u32 %v60, 4294901760
    %267 = vmatmul.mubr.f32.gmra.mxu0 %v266
    %v268 = vpop.f32.mrf.mxu0
    %v269 = vadd.f32 %v157, %v268
    %v270 = vpop.f32.mrf.mxu0
    %271 = vmatprep.mubr.f32.mxu0 0.0
    %v272 = vand.u32 %v63, 4294901760
    %273 = vmatmul.mubr.f32.gmra.mxu0 %v272
    %v274 = vpop.f32.mrf.mxu0
    %v275 = vadd.f32 %v167, %v274
    %v276 = vpop.f32.mrf.mxu0
    %277 = vmatprep.mubr.f32.mxu0 0.0
    %v278 = vand.u32 %v66, 4294901760
    %279 = vmatmul.mubr.f32.gmra.mxu0 %v278
    %v280 = vpop.f32.mrf.mxu0
    %v281 = vadd.f32 %v177, %v280
    %v282 = vpop.f32.mrf.mxu0
    %283 = vdwg.mxu0
    %284 = vmatprep.subr.mxu0 0.0
    %285 = vmatpush1.msra.mxu0 0.0
    %286 = vmatprep.subr.mxu0 0.0
    %287 = vmatpush1.msra.mxu0 0.0
    %288 = vmatprep.subr.mxu0 0.0
    %289 = vmatpush1.msra.mxu0 0.0
    %290 = vmatprep.subr.mxu0 0.0
    %291 = vmatpush1.msra.mxu0 0.0
    %292 = vmatprep.subr.mxu0 0.0
    %293 = vmatpush1.msra.mxu0 0.0
    %294 = vmatprep.subr.mxu0 0.0
    %295 = vmatpush1.msra.mxu0 0.0
    %296 = vmatprep.subr.mxu0 0.0
    %297 = vmatpush1.msra.mxu0 0.0
    %298 = vmatprep.subr.mxu0 0.0
    %299 = vmatpush1.msra.mxu0 0.0
    %300 = vmatprep.subr.mxu0 0.0
    %301 = vmatpush1.msra.mxu0 0.0
    %302 = vmatprep.subr.mxu0 0.0
    %303 = vmatpush1.msra.mxu0 0.0
    %304 = vmatprep.subr.mxu0 0.0
    %305 = vmatpush1.msra.mxu0 0.0
    %306 = vmatprep.subr.mxu0 0.0
    %307 = vmatpush1.msra.mxu0 0.0
    %308 = vmatprep.subr.mxu0 0.0
    %309 = vmatpush1.msra.mxu0 0.0
    %310 = vmatprep.subr.mxu0 0.0
    %v311 = vand.u32 %v70, 4294901760
    %v312 = vsub.f32 %v70, %v311
    %313 = vmatpush1.msra.mxu0 %v312
    %314 = vmatprep.subr.mxu0 0.0
    %v315 = vand.u32 %v22, 4294901760
    %v316 = vsub.f32 %v22, %v315
    %317 = vmatpush1.msra.mxu0 %v316
    %318 = vmatprep.subr.mxu0 0.0
    %v319 = vand.u32 %v21, 4294901760
    %v320 = vsub.f32 %v21, %v319
    %321 = vmatpush1.msra.mxu0 %v320
    %322 = vmatprep.subr.mxu0 0.0
    %323 = vmatpush2.msra.mxu0 0.0
    %324 = vmatprep.subr.mxu0 0.0
    %325 = vmatpush2.msra.mxu0 0.0
    %326 = vmatprep.subr.mxu0 0.0
    %327 = vmatpush2.msra.mxu0 0.0
    %328 = vmatprep.subr.mxu0 0.0
    %329 = vmatpush2.msra.mxu0 0.0
    %330 = vmatprep.subr.mxu0 0.0
    %331 = vmatpush2.msra.mxu0 0.0
    %332 = vmatprep.subr.mxu0 0.0
    %333 = vmatpush2.msra.mxu0 0.0
    %334 = vmatprep.subr.mxu0 0.0
    %335 = vmatpush2.msra.mxu0 0.0
    %336 = vmatprep.subr.mxu0 0.0
    %337 = vmatpush2.msra.mxu0 0.0
    %338 = vmatprep.subr.mxu0 0.0
    %339 = vmatpush2.msra.mxu0 0.0
    %340 = vmatprep.subr.mxu0 0.0
    %341 = vmatpush2.msra.mxu0 0.0
    %342 = vmatprep.subr.mxu0 0.0
    %343 = vmatpush2.msra.mxu0 0.0
    %344 = vmatprep.subr.mxu0 0.0
    %345 = vmatpush2.msra.mxu0 0.0
    %346 = vmatprep.subr.mxu0 0.0
    %347 = vmatpush2.msra.mxu0 0.0
    %348 = vmatprep.subr.mxu0 0.0
    %349 = vmatpush2.msra.mxu0 0.0
    %350 = vmatprep.subr.mxu0 0.0
    %351 = vmatpush2.msra.mxu0 0.0
    %352 = vmatprep.subr.mxu0 0.0
    %353 = vmatpush2.msra.mxu0 0.0
    %354 = vmatprep.mubr.f32.mxu0 0.0
    %v355 = vand.u32 %v57, 4294901760
    %v356 = vsub.f32 %v57, %v355
    %357 = vmatmul.mubr.f32.gmra.mxu0 %v356
    %v358 = vpop.f32.mrf.mxu0
    %v359 = vadd.f32 %v263, %v358
    %v360 = vpop.f32.mrf.mxu0
    %361 = vmatprep.mubr.f32.mxu0 0.0
    %v362 = vand.u32 %v60, 4294901760
    %v363 = vsub.f32 %v60, %v362
    %364 = vmatmul.mubr.f32.gmra.mxu0 %v363
    %v365 = vpop.f32.mrf.mxu0
    %v366 = vadd.f32 %v269, %v365
    %v367 = vpop.f32.mrf.mxu0
    %368 = vmatprep.mubr.f32.mxu0 0.0
    %v369 = vand.u32 %v63, 4294901760
    %v370 = vsub.f32 %v63, %v369
    %371 = vmatmul.mubr.f32.gmra.mxu0 %v370
    %v372 = vpop.f32.mrf.mxu0
    %v373 = vadd.f32 %v275, %v372
    %v374 = vpop.f32.mrf.mxu0
    %375 = vmatprep.mubr.f32.mxu0 0.0
    %v376 = vand.u32 %v66, 4294901760
    %v377 = vsub.f32 %v66, %v376
    %378 = vmatmul.mubr.f32.gmra.mxu0 %v377
    %v379 = vpop.f32.mrf.mxu0
    %v380 = vadd.f32 %v281, %v379
    %v381 = vpop.f32.mrf.mxu0
    %382 = vdwg.mxu0
    %383 = vmatprep.subr.mxu0 0.0
    %384 = vmatpush1.msra.mxu0 0.0
    %385 = vmatprep.subr.mxu0 0.0
    %386 = vmatpush1.msra.mxu0 0.0
    %387 = vmatprep.subr.mxu0 0.0
    %388 = vmatpush1.msra.mxu0 0.0
    %389 = vmatprep.subr.mxu0 0.0
    %390 = vmatpush1.msra.mxu0 0.0
    %391 = vmatprep.subr.mxu0 0.0
    %392 = vmatpush1.msra.mxu0 0.0
    %393 = vmatprep.subr.mxu0 0.0
    %394 = vmatpush1.msra.mxu0 0.0
    %395 = vmatprep.subr.mxu0 0.0
    %396 = vmatpush1.msra.mxu0 0.0
    %397 = vmatprep.subr.mxu0 0.0
    %398 = vmatpush1.msra.mxu0 0.0
    %399 = vmatprep.subr.mxu0 0.0
    %400 = vmatpush1.msra.mxu0 0.0
    %401 = vmatprep.subr.mxu0 0.0
    %402 = vmatpush1.msra.mxu0 0.0
    %403 = vmatprep.subr.mxu0 0.0
    %404 = vmatpush1.msra.mxu0 0.0
    %405 = vmatprep.subr.mxu0 0.0
    %406 = vmatpush1.msra.mxu0 0.0
    %407 = vmatprep.subr.mxu0 0.0
    %408 = vmatpush1.msra.mxu0 0.0
    %409 = vmatprep.subr.mxu0 0.0
    %v410 = vand.u32 %v70, 4294901760
    %411 = vmatpush1.msra.mxu0 %v410
    %412 = vmatprep.subr.mxu0 0.0
    %v413 = vand.u32 %v22, 4294901760
    %414 = vmatpush1.msra.mxu0 %v413
    %415 = vmatprep.subr.mxu0 0.0
    %v416 = vand.u32 %v21, 4294901760
    %417 = vmatpush1.msra.mxu0 %v416
    %418 = vmatprep.subr.mxu0 0.0
    %419 = vmatpush2.msra.mxu0 0.0
    %420 = vmatprep.subr.mxu0 0.0
    %421 = vmatpush2.msra.mxu0 0.0
    %422 = vmatprep.subr.mxu0 0.0
    %423 = vmatpush2.msra.mxu0 0.0
    %424 = vmatprep.subr.mxu0 0.0
    %425 = vmatpush2.msra.mxu0 0.0
    %426 = vmatprep.subr.mxu0 0.0
    %427 = vmatpush2.msra.mxu0 0.0
    %428 = vmatprep.subr.mxu0 0.0
    %429 = vmatpush2.msra.mxu0 0.0
    %430 = vmatprep.subr.mxu0 0.0
    %431 = vmatpush2.msra.mxu0 0.0
    %432 = vmatprep.subr.mxu0 0.0
    %433 = vmatpush2.msra.mxu0 0.0
    %434 = vmatprep.subr.mxu0 0.0
    %435 = vmatpush2.msra.mxu0 0.0
    %436 = vmatprep.subr.mxu0 0.0
    %437 = vmatpush2.msra.mxu0 0.0
    %438 = vmatprep.subr.mxu0 0.0
    %439 = vmatpush2.msra.mxu0 0.0
    %440 = vmatprep.subr.mxu0 0.0
    %441 = vmatpush2.msra.mxu0 0.0
    %442 = vmatprep.subr.mxu0 0.0
    %443 = vmatpush2.msra.mxu0 0.0
    %444 = vmatprep.subr.mxu0 0.0
    %445 = vmatpush2.msra.mxu0 0.0
    %446 = vmatprep.subr.mxu0 0.0
    %447 = vmatpush2.msra.mxu0 0.0
    %448 = vmatprep.subr.mxu0 0.0
    %449 = vmatpush2.msra.mxu0 0.0
    %450 = vmatprep.mubr.f32.mxu0 0.0
    %v451 = vand.u32 %v57, 4294901760
    %v452 = vsub.f32 %v57, %v451
    %v453 = vand.u32 %v452, 4294901760
    %454 = vmatmul.mubr.f32.gmra.mxu0 %v453
    %v455 = vpop.f32.mrf.mxu0
    %v456 = vadd.f32 %v359, %v455
    %v457 = vpop.f32.mrf.mxu0
    %458 = vmatprep.mubr.f32.mxu0 0.0
    %v459 = vand.u32 %v60, 4294901760
    %v460 = vsub.f32 %v60, %v459
    %v461 = vand.u32 %v460, 4294901760
    %462 = vmatmul.mubr.f32.gmra.mxu0 %v461
    %v463 = vpop.f32.mrf.mxu0
    %v464 = vadd.f32 %v366, %v463
    %v465 = vpop.f32.mrf.mxu0
    %466 = vmatprep.mubr.f32.mxu0 0.0
    %v467 = vand.u32 %v63, 4294901760
    %v468 = vsub.f32 %v63, %v467
    %v469 = vand.u32 %v468, 4294901760
    %470 = vmatmul.mubr.f32.gmra.mxu0 %v469
    %v471 = vpop.f32.mrf.mxu0
    %v472 = vadd.f32 %v373, %v471
    %v473 = vpop.f32.mrf.mxu0
    %474 = vmatprep.mubr.f32.mxu0 0.0
    %v475 = vand.u32 %v66, 4294901760
    %v476 = vsub.f32 %v66, %v475
    %v477 = vand.u32 %v476, 4294901760
    %478 = vmatmul.mubr.f32.gmra.mxu0 %v477
    %v479 = vpop.f32.mrf.mxu0
    %v480 = vadd.f32 %v380, %v479
    %v481 = vpop.f32.mrf.mxu0
    %482 = vdwg.mxu0
    %483 = vmatprep.subr.mxu0 0.0
    %484 = vmatpush1.msra.mxu0 0.0
    %485 = vmatprep.subr.mxu0 0.0
    %486 = vmatpush1.msra.mxu0 0.0
    %487 = vmatprep.subr.mxu0 0.0
    %488 = vmatpush1.msra.mxu0 0.0
    %489 = vmatprep.subr.mxu0 0.0
    %490 = vmatpush1.msra.mxu0 0.0
    %491 = vmatprep.subr.mxu0 0.0
    %492 = vmatpush1.msra.mxu0 0.0
    %493 = vmatprep.subr.mxu0 0.0
    %494 = vmatpush1.msra.mxu0 0.0
    %495 = vmatprep.subr.mxu0 0.0
    %496 = vmatpush1.msra.mxu0 0.0
    %497 = vmatprep.subr.mxu0 0.0
    %498 = vmatpush1.msra.mxu0 0.0
    %499 = vmatprep.subr.mxu0 0.0
    %500 = vmatpush1.msra.mxu0 0.0
    %501 = vmatprep.subr.mxu0 0.0
    %502 = vmatpush1.msra.mxu0 0.0
    %503 = vmatprep.subr.mxu0 0.0
    %504 = vmatpush1.msra.mxu0 0.0
    %505 = vmatprep.subr.mxu0 0.0
    %506 = vmatpush1.msra.mxu0 0.0
    %507 = vmatprep.subr.mxu0 0.0
    %508 = vmatpush1.msra.mxu0 0.0
    %509 = vmatprep.subr.mxu0 0.0
    %v510 = vand.u32 %v70, 4294901760
    %v511 = vsub.f32 %v70, %v510
    %v512 = vand.u32 %v511, 4294901760
    %513 = vmatpush1.msra.mxu0 %v512
    %514 = vmatprep.subr.mxu0 0.0
    %v515 = vand.u32 %v22, 4294901760
    %v516 = vsub.f32 %v22, %v515
    %v517 = vand.u32 %v516, 4294901760
    %518 = vmatpush1.msra.mxu0 %v517
    %519 = vmatprep.subr.mxu0 0.0
    %v520 = vand.u32 %v21, 4294901760
    %v521 = vsub.f32 %v21, %v520
    %v522 = vand.u32 %v521, 4294901760
    %523 = vmatpush1.msra.mxu0 %v522
    %524 = vmatprep.subr.mxu0 0.0
    %525 = vmatpush2.msra.mxu0 0.0
    %526 = vmatprep.subr.mxu0 0.0
    %527 = vmatpush2.msra.mxu0 0.0
    %528 = vmatprep.subr.mxu0 0.0
    %529 = vmatpush2.msra.mxu0 0.0
    %530 = vmatprep.subr.mxu0 0.0
    %531 = vmatpush2.msra.mxu0 0.0
    %532 = vmatprep.subr.mxu0 0.0
    %533 = vmatpush2.msra.mxu0 0.0
    %534 = vmatprep.subr.mxu0 0.0
    %535 = vmatpush2.msra.mxu0 0.0
    %536 = vmatprep.subr.mxu0 0.0
    %537 = vmatpush2.msra.mxu0 0.0
    %538 = vmatprep.subr.mxu0 0.0
    %539 = vmatpush2.msra.mxu0 0.0
    %540 = vmatprep.subr.mxu0 0.0
    %541 = vmatpush2.msra.mxu0 0.0
    %542 = vmatprep.subr.mxu0 0.0
    %543 = vmatpush2.msra.mxu0 0.0
    %544 = vmatprep.subr.mxu0 0.0
    %545 = vmatpush2.msra.mxu0 0.0
    %546 = vmatprep.subr.mxu0 0.0
    %547 = vmatpush2.msra.mxu0 0.0
    %548 = vmatprep.subr.mxu0 0.0
    %549 = vmatpush2.msra.mxu0 0.0
    %550 = vmatprep.subr.mxu0 0.0
    %551 = vmatpush2.msra.mxu0 0.0
    %552 = vmatprep.subr.mxu0 0.0
    %553 = vmatpush2.msra.mxu0 0.0
    %554 = vmatprep.subr.mxu0 0.0
    %555 = vmatpush2.msra.mxu0 0.0
    %556 = vmatprep.mubr.f32.mxu0 0.0
    %v557 = vand.u32 %v57, 4294901760
    %558 = vmatmul.mubr.f32.gmra.mxu0 %v557
    %v559 = vpop.f32.mrf.mxu0
    %v560 = vadd.f32 %v456, %v559
    %v561 = vpop.f32.mrf.mxu0
    %562 = vmatprep.mubr.f32.mxu0 0.0
    %v563 = vand.u32 %v60, 4294901760
    %564 = vmatmul.mubr.f32.gmra.mxu0 %v563
    %v565 = vpop.f32.mrf.mxu0
    %v566 = vadd.f32 %v464, %v565
    %v567 = vpop.f32.mrf.mxu0
    %568 = vmatprep.mubr.f32.mxu0 0.0
    %v569 = vand.u32 %v63, 4294901760
    %570 = vmatmul.mubr.f32.gmra.mxu0 %v569
    %v571 = vpop.f32.mrf.mxu0
    %v572 = vadd.f32 %v472, %v571
    %v573 = vpop.f32.mrf.mxu0
    %574 = vmatprep.mubr.f32.mxu0 0.0
    %v575 = vand.u32 %v66, 4294901760
    %576 = vmatmul.mubr.f32.gmra.mxu0 %v575
    %v577 = vpop.f32.mrf.mxu0
    %v578 = vadd.f32 %v480, %v577
    %v579 = vpop.f32.mrf.mxu0
    %580 = vdwg.mxu0
    %581 = vmatprep.subr.mxu0 0.0
    %582 = vmatpush1.msra.mxu0 0.0
    %583 = vmatprep.subr.mxu0 0.0
    %584 = vmatpush1.msra.mxu0 0.0
    %585 = vmatprep.subr.mxu0 0.0
    %586 = vmatpush1.msra.mxu0 0.0
    %587 = vmatprep.subr.mxu0 0.0
    %588 = vmatpush1.msra.mxu0 0.0
    %589 = vmatprep.subr.mxu0 0.0
    %590 = vmatpush1.msra.mxu0 0.0
    %591 = vmatprep.subr.mxu0 0.0
    %592 = vmatpush1.msra.mxu0 0.0
    %593 = vmatprep.subr.mxu0 0.0
    %594 = vmatpush1.msra.mxu0 0.0
    %595 = vmatprep.subr.mxu0 0.0
    %596 = vmatpush1.msra.mxu0 0.0
    %597 = vmatprep.subr.mxu0 0.0
    %598 = vmatpush1.msra.mxu0 0.0
    %599 = vmatprep.subr.mxu0 0.0
    %600 = vmatpush1.msra.mxu0 0.0
    %601 = vmatprep.subr.mxu0 0.0
    %602 = vmatpush1.msra.mxu0 0.0
    %603 = vmatprep.subr.mxu0 0.0
    %604 = vmatpush1.msra.mxu0 0.0
    %605 = vmatprep.subr.mxu0 0.0
    %606 = vmatpush1.msra.mxu0 0.0
    %607 = vmatprep.subr.mxu0 0.0
    %v608 = vand.u32 %v70, 4294901760
    %609 = vmatpush1.msra.mxu0 %v608
    %610 = vmatprep.subr.mxu0 0.0
    %v611 = vand.u32 %v22, 4294901760
    %612 = vmatpush1.msra.mxu0 %v611
    %613 = vmatprep.subr.mxu0 0.0
    %v614 = vand.u32 %v21, 4294901760
    %615 = vmatpush1.msra.mxu0 %v614
    %616 = vmatprep.subr.mxu0 0.0
    %617 = vmatpush2.msra.mxu0 0.0
    %618 = vmatprep.subr.mxu0 0.0
    %619 = vmatpush2.msra.mxu0 0.0
    %620 = vmatprep.subr.mxu0 0.0
    %621 = vmatpush2.msra.mxu0 0.0
    %622 = vmatprep.subr.mxu0 0.0
    %623 = vmatpush2.msra.mxu0 0.0
    %624 = vmatprep.subr.mxu0 0.0
    %625 = vmatpush2.msra.mxu0 0.0
    %626 = vmatprep.subr.mxu0 0.0
    %627 = vmatpush2.msra.mxu0 0.0
    %628 = vmatprep.subr.mxu0 0.0
    %629 = vmatpush2.msra.mxu0 0.0
    %630 = vmatprep.subr.mxu0 0.0
    %631 = vmatpush2.msra.mxu0 0.0
    %632 = vmatprep.subr.mxu0 0.0
    %633 = vmatpush2.msra.mxu0 0.0
    %634 = vmatprep.subr.mxu0 0.0
    %635 = vmatpush2.msra.mxu0 0.0
    %636 = vmatprep.subr.mxu0 0.0
    %637 = vmatpush2.msra.mxu0 0.0
    %638 = vmatprep.subr.mxu0 0.0
    %639 = vmatpush2.msra.mxu0 0.0
    %640 = vmatprep.subr.mxu0 0.0
    %641 = vmatpush2.msra.mxu0 0.0
    %642 = vmatprep.subr.mxu0 0.0
    %643 = vmatpush2.msra.mxu0 0.0
    %644 = vmatprep.subr.mxu0 0.0
    %645 = vmatpush2.msra.mxu0 0.0
    %646 = vmatprep.subr.mxu0 0.0
    %647 = vmatpush2.msra.mxu0 0.0
    %648 = vmatprep.mubr.f32.mxu0 0.0
    %v649 = vand.u32 %v57, 4294901760
    %650 = vmatmul.mubr.f32.gmra.mxu0 %v649
    %v651 = vpop.f32.mrf.mxu0
    %v652 = vadd.f32 %v560, %v651
    %v653 = vpop.f32.mrf.mxu0
    %654 = vmatprep.mubr.f32.mxu0 0.0
    %v655 = vand.u32 %v60, 4294901760
    %656 = vmatmul.mubr.f32.gmra.mxu0 %v655
    %v657 = vpop.f32.mrf.mxu0
    %v658 = vadd.f32 %v566, %v657
    %v659 = vpop.f32.mrf.mxu0
    %660 = vmatprep.mubr.f32.mxu0 0.0
    %v661 = vand.u32 %v63, 4294901760
    %662 = vmatmul.mubr.f32.gmra.mxu0 %v661
    %v663 = vpop.f32.mrf.mxu0
    %v664 = vadd.f32 %v572, %v663
    %v665 = vpop.f32.mrf.mxu0
    %666 = vmatprep.mubr.f32.mxu0 0.0
    %v667 = vand.u32 %v66, 4294901760
    %668 = vmatmul.mubr.f32.gmra.mxu0 %v667
    %v669 = vpop.f32.mrf.mxu0
    %v670 = vadd.f32 %v578, %v669
    %v671 = vpop.f32.mrf.mxu0
    %672 = vdwg.mxu0
    %v673 = vmul.f32 %v652, 0.5
    %v674 = vmul.f32 %v658, 0.5
    %v675 = vmul.f32 %v664, 0.5
    %v676 = vmul.f32 %v670, 0.5
    %v677 = vmul.f32 %v652, 0.70710677
    %v678 = vmul.f32 %v658, 0.70710677
    %v679 = vmul.f32 %v664, 0.70710677
    %v680 = vmul.f32 %v670, 0.70710677
    %v681 = vand.u32 2147483647, %v677
    %v682 = vand.u32 2147483647, %v678
    %v683 = vand.u32 2147483647, %v679
    %v684 = vand.u32 2147483647, %v680
    %v685 = vmul.f32 %v681, 0.3275911
    %v686 = vmul.f32 %v682, 0.3275911
    %v687 = vmul.f32 %v683, 0.3275911
    %v688 = vmul.f32 %v684, 0.3275911
    %v689 = vadd.f32 %v685, 1.0
    %v690 = vadd.f32 %v686, 1.0
    %v691 = vadd.f32 %v687, 1.0
    %v692 = vadd.f32 %v688, 1.0
    %v693 = vrcp.pop %v689
    %v694 = vmul.f32 1.0, %v693
    %v695 = vrcp.pop %v690
    %v696 = vmul.f32 1.0, %v695
    %v697 = vrcp.pop %v691
    %v698 = vmul.f32 1.0, %v697
    %v699 = vrcp.pop %v692
    %v700 = vmul.f32 1.0, %v699
    %v701 = vmul.f32 %v694, 1.0614054
    %v702 = vmul.f32 %v696, 1.0614054
    %v703 = vmul.f32 %v698, 1.0614054
    %v704 = vmul.f32 %v700, 1.0614054
    %v705 = vadd.f32 %v701, -1.4531521
    %v706 = vadd.f32 %v702, -1.4531521
    %v707 = vadd.f32 %v703, -1.4531521
    %v708 = vadd.f32 %v704, -1.4531521
    %v709 = vmul.f32 %v705, %v694
    %v710 = vmul.f32 %v706, %v696
    %v711 = vmul.f32 %v707, %v698
    %v712 = vmul.f32 %v708, %v700
    %v713 = vadd.f32 %v709, 1.4214138
    %v714 = vadd.f32 %v710, 1.4214138
    %v715 = vadd.f32 %v711, 1.4214138
    %v716 = vadd.f32 %v712, 1.4214138
    %v717 = vmul.f32 %v713, %v694
    %v718 = vmul.f32 %v714, %v696
    %v719 = vmul.f32 %v715, %v698
    %v720 = vmul.f32 %v716, %v700
    %v721 = vadd.f32 %v717, -0.28449672
    %v722 = vadd.f32 %v718, -0.28449672
    %v723 = vadd.f32 %v719, -0.28449672
    %v724 = vadd.f32 %v720, -0.28449672
    %v725 = vmul.f32 %v721, %v694
    %v726 = vmul.f32 %v722, %v696
    %v727 = vmul.f32 %v723, %v698
    %v728 = vmul.f32 %v724, %v700
    %v729 = vadd.f32 %v725, 0.2548296
    %v730 = vadd.f32 %v726, 0.2548296
    %v731 = vadd.f32 %v727, 0.2548296
    %v732 = vadd.f32 %v728, 0.2548296
    %v733 = vmul.f32 %v729, %v694
    %v734 = vmul.f32 %v730, %v696
    %v735 = vmul.f32 %v731, %v698
    %v736 = vmul.f32 %v732, %v700
    %v737 = vsub.f32 0.0, %v681
    %v738 = vsub.f32 0.0, %v682
    %v739 = vsub.f32 0.0, %v683
    %v740 = vsub.f32 0.0, %v684
    %v741 = vmul.f32 %v737, %v681
    %v742 = vmul.f32 %v738, %v682
    %v743 = vmul.f32 %v739, %v683
    %v744 = vmul.f32 %v740, %v684
    %v745 = vmul.f32 %v741, 1.442695
    %v746 = vpow.pop %v745
    %v747 = vmul.f32 %v742, 1.442695
    %v748 = vpow.pop %v747
    %v749 = vmul.f32 %v743, 1.442695
    %v750 = vpow.pop %v749
    %v751 = vmul.f32 %v744, 1.442695
    %v752 = vpow.pop %v751
    %v753 = vmul.f32 %v733, %v746
    %v754 = vmul.f32 %v734, %v748
    %v755 = vmul.f32 %v735, %v750
    %v756 = vmul.f32 %v736, %v752
    %v757 = vsub.f32 1.0, %v753
    %v758 = vsub.f32 1.0, %v754
    %v759 = vsub.f32 1.0, %v755
    %v760 = vsub.f32 1.0, %v756
    %vm761 = vcmp.ge.f32.partialorder %v677, 0.0
    %vm762 = vcmp.ge.f32.partialorder %v678, 0.0
    %vm763 = vcmp.ge.f32.partialorder %v679, 0.0
    %vm764 = vcmp.ge.f32.partialorder %v680, 0.0
    %v765 = vsub.f32 0.0, %v757
    %v766 = vsub.f32 0.0, %v758
    %v767 = vsub.f32 0.0, %v759
    %v768 = vsub.f32 0.0, %v760
    %v769 = vsel %vm761, %v757, %v765
    %v770 = vsel %vm762, %v758, %v766
    %v771 = vsel %vm763, %v759, %v767
    %v772 = vsel %vm764, %v760, %v768
    %v773 = vadd.f32 %v769, 1.0
    %v774 = vadd.f32 %v770, 1.0
    %v775 = vadd.f32 %v771, 1.0
    %v776 = vadd.f32 %v772, 1.0
    %v777 = vmul.f32 %v673, %v773
    %v778 = vmul.f32 %v674, %v774
    %v779 = vmul.f32 %v675, %v775
    %v780 = vmul.f32 %v676, %v776
    %v781 = vlaneseq
    %v782 = vshrl.u32 %v781, 7
    %v783 = vsub.s32 0, %v782
    %v784 = vrot.slane %v37, %v783
    %vm785 = vcmask 392192
    %v787 = vsel %vm785, %v777, 0
    %v790 = vsel %vm785, %v778, 0
    %v793 = vsel %vm785, %v779, 0
    %v796 = vsel %vm785, %v780, 0
    %798 = vmatprep.subr.mxu0 0.0
    %799 = vmatpush1.msra.mxu0 0.0
    %800 = vmatprep.subr.mxu0 0.0
    %801 = vmatpush1.msra.mxu0 0.0
    %802 = vmatprep.subr.mxu0 0.0
    %803 = vmatpush1.msra.mxu0 0.0
    %804 = vmatprep.subr.mxu0 0.0
    %805 = vmatpush1.msra.mxu0 0.0
    %806 = vmatprep.subr.mxu0 0.0
    %807 = vmatpush1.msra.mxu0 0.0
    %808 = vmatprep.subr.mxu0 0.0
    %809 = vmatpush1.msra.mxu0 0.0
    %810 = vmatprep.subr.mxu0 0.0
    %811 = vmatpush1.msra.mxu0 0.0
    %812 = vmatprep.subr.mxu0 0.0
    %813 = vmatpush1.msra.mxu0 0.0
    %814 = vmatprep.subr.mxu0 0.0
    %815 = vmatpush1.msra.mxu0 0.0
    %816 = vmatprep.subr.mxu0 0.0
    %817 = vmatpush1.msra.mxu0 0.0
    %818 = vmatprep.subr.mxu0 0.0
    %v819 = vand.u32 %v29, 4294901760
    %820 = vmatpush1.msra.mxu0 %v819
    %821 = vmatprep.subr.mxu0 0.0
    %v822 = vand.u32 %v28, 4294901760
    %823 = vmatpush1.msra.mxu0 %v822
    %824 = vmatprep.subr.mxu0 0.0
    %v825 = vand.u32 %v27, 4294901760
    %826 = vmatpush1.msra.mxu0 %v825
    %827 = vmatprep.subr.mxu0 0.0
    %v828 = vand.u32 %v26, 4294901760
    %829 = vmatpush1.msra.mxu0 %v828
    %830 = vmatprep.subr.mxu0 0.0
    %v831 = vand.u32 %v25, 4294901760
    %832 = vmatpush1.msra.mxu0 %v831
    %833 = vmatprep.subr.mxu0 0.0
    %v834 = vand.u32 %v24, 4294901760
    %835 = vmatpush1.msra.mxu0 %v834
    %836 = vmatprep.subr.mxu0 0.0
    %837 = vmatpush2.msra.mxu0 0.0
    %838 = vmatprep.subr.mxu0 0.0
    %839 = vmatpush2.msra.mxu0 0.0
    %840 = vmatprep.subr.mxu0 0.0
    %841 = vmatpush2.msra.mxu0 0.0
    %842 = vmatprep.subr.mxu0 0.0
    %843 = vmatpush2.msra.mxu0 0.0
    %844 = vmatprep.subr.mxu0 0.0
    %845 = vmatpush2.msra.mxu0 0.0
    %846 = vmatprep.subr.mxu0 0.0
    %847 = vmatpush2.msra.mxu0 0.0
    %848 = vmatprep.subr.mxu0 0.0
    %849 = vmatpush2.msra.mxu0 0.0
    %850 = vmatprep.subr.mxu0 0.0
    %851 = vmatpush2.msra.mxu0 0.0
    %852 = vmatprep.subr.mxu0 0.0
    %853 = vmatpush2.msra.mxu0 0.0
    %854 = vmatprep.subr.mxu0 0.0
    %855 = vmatpush2.msra.mxu0 0.0
    %856 = vmatprep.subr.mxu0 0.0
    %857 = vmatpush2.msra.mxu0 0.0
    %858 = vmatprep.subr.mxu0 0.0
    %859 = vmatpush2.msra.mxu0 0.0
    %860 = vmatprep.subr.mxu0 0.0
    %861 = vmatpush2.msra.mxu0 0.0
    %862 = vmatprep.subr.mxu0 0.0
    %863 = vmatpush2.msra.mxu0 0.0
    %864 = vmatprep.subr.mxu0 0.0
    %865 = vmatpush2.msra.mxu0 0.0
    %866 = vmatprep.subr.mxu0 0.0
    %867 = vmatpush2.msra.mxu0 0.0
    %868 = vmatprep.mubr.f32.mxu0 0.0
    %v869 = vand.u32 %v787, 4294901760
    %v870 = vsub.f32 %v787, %v869
    %v871 = vand.u32 %v870, 4294901760
    %v872 = vsub.f32 %v870, %v871
    %v873 = vand.u32 %v872, 4294901760
    %874 = vmatmul.mubr.f32.gmra.mxu0 %v873
    %v875 = vpop.f32.mrf.mxu0
    %v876 = vadd.f32 %v784, %v875
    %v877 = vpop.f32.mrf.mxu0
    %878 = vmatprep.mubr.f32.mxu0 0.0
    %v879 = vand.u32 %v790, 4294901760
    %v880 = vsub.f32 %v790, %v879
    %v881 = vand.u32 %v880, 4294901760
    %v882 = vsub.f32 %v880, %v881
    %v883 = vand.u32 %v882, 4294901760
    %884 = vmatmul.mubr.f32.gmra.mxu0 %v883
    %v885 = vpop.f32.mrf.mxu0
    %v886 = vadd.f32 %v784, %v885
    %v887 = vpop.f32.mrf.mxu0
    %888 = vmatprep.mubr.f32.mxu0 0.0
    %v889 = vand.u32 %v793, 4294901760
    %v890 = vsub.f32 %v793, %v889
    %v891 = vand.u32 %v890, 4294901760
    %v892 = vsub.f32 %v890, %v891
    %v893 = vand.u32 %v892, 4294901760
    %894 = vmatmul.mubr.f32.gmra.mxu0 %v893
    %v895 = vpop.f32.mrf.mxu0
    %v896 = vadd.f32 %v784, %v895
    %v897 = vpop.f32.mrf.mxu0
    %898 = vmatprep.mubr.f32.mxu0 0.0
    %v899 = vand.u32 %v796, 4294901760
    %v900 = vsub.f32 %v796, %v899
    %v901 = vand.u32 %v900, 4294901760
    %v902 = vsub.f32 %v900, %v901
    %v903 = vand.u32 %v902, 4294901760
    %904 = vmatmul.mubr.f32.gmra.mxu0 %v903
    %v905 = vpop.f32.mrf.mxu0
    %v906 = vadd.f32 %v784, %v905
    %v907 = vpop.f32.mrf.mxu0
    %908 = vdwg.mxu0
    %909 = vmatprep.subr.mxu0 0.0
    %910 = vmatpush1.msra.mxu0 0.0
    %911 = vmatprep.subr.mxu0 0.0
    %912 = vmatpush1.msra.mxu0 0.0
    %913 = vmatprep.subr.mxu0 0.0
    %914 = vmatpush1.msra.mxu0 0.0
    %915 = vmatprep.subr.mxu0 0.0
    %916 = vmatpush1.msra.mxu0 0.0
    %917 = vmatprep.subr.mxu0 0.0
    %918 = vmatpush1.msra.mxu0 0.0
    %919 = vmatprep.subr.mxu0 0.0
    %920 = vmatpush1.msra.mxu0 0.0
    %921 = vmatprep.subr.mxu0 0.0
    %922 = vmatpush1.msra.mxu0 0.0
    %923 = vmatprep.subr.mxu0 0.0
    %924 = vmatpush1.msra.mxu0 0.0
    %925 = vmatprep.subr.mxu0 0.0
    %926 = vmatpush1.msra.mxu0 0.0
    %927 = vmatprep.subr.mxu0 0.0
    %928 = vmatpush1.msra.mxu0 0.0
    %929 = vmatprep.subr.mxu0 0.0
    %v930 = vand.u32 %v29, 4294901760
    %v931 = vsub.f32 %v29, %v930
    %v932 = vand.u32 %v931, 4294901760
    %v933 = vsub.f32 %v931, %v932
    %v934 = vand.u32 %v933, 4294901760
    %935 = vmatpush1.msra.mxu0 %v934
    %936 = vmatprep.subr.mxu0 0.0
    %v937 = vand.u32 %v28, 4294901760
    %v938 = vsub.f32 %v28, %v937
    %v939 = vand.u32 %v938, 4294901760
    %v940 = vsub.f32 %v938, %v939
    %v941 = vand.u32 %v940, 4294901760
    %942 = vmatpush1.msra.mxu0 %v941
    %943 = vmatprep.subr.mxu0 0.0
    %v944 = vand.u32 %v27, 4294901760
    %v945 = vsub.f32 %v27, %v944
    %v946 = vand.u32 %v945, 4294901760
    %v947 = vsub.f32 %v945, %v946
    %v948 = vand.u32 %v947, 4294901760
    %949 = vmatpush1.msra.mxu0 %v948
    %950 = vmatprep.subr.mxu0 0.0
    %v951 = vand.u32 %v26, 4294901760
    %v952 = vsub.f32 %v26, %v951
    %v953 = vand.u32 %v952, 4294901760
    %v954 = vsub.f32 %v952, %v953
    %v955 = vand.u32 %v954, 4294901760
    %956 = vmatpush1.msra.mxu0 %v955
    %957 = vmatprep.subr.mxu0 0.0
    %v958 = vand.u32 %v25, 4294901760
    %v959 = vsub.f32 %v25, %v958
    %v960 = vand.u32 %v959, 4294901760
    %v961 = vsub.f32 %v959, %v960
    %v962 = vand.u32 %v961, 4294901760
    %963 = vmatpush1.msra.mxu0 %v962
    %964 = vmatprep.subr.mxu0 0.0
    %v965 = vand.u32 %v24, 4294901760
    %v966 = vsub.f32 %v24, %v965
    %v967 = vand.u32 %v966, 4294901760
    %v968 = vsub.f32 %v966, %v967
    %v969 = vand.u32 %v968, 4294901760
    %970 = vmatpush1.msra.mxu0 %v969
    %971 = vmatprep.subr.mxu0 0.0
    %972 = vmatpush2.msra.mxu0 0.0
    %973 = vmatprep.subr.mxu0 0.0
    %974 = vmatpush2.msra.mxu0 0.0
    %975 = vmatprep.subr.mxu0 0.0
    %976 = vmatpush2.msra.mxu0 0.0
    %977 = vmatprep.subr.mxu0 0.0
    %978 = vmatpush2.msra.mxu0 0.0
    %979 = vmatprep.subr.mxu0 0.0
    %980 = vmatpush2.msra.mxu0 0.0
    %981 = vmatprep.subr.mxu0 0.0
    %982 = vmatpush2.msra.mxu0 0.0
    %983 = vmatprep.subr.mxu0 0.0
    %984 = vmatpush2.msra.mxu0 0.0
    %985 = vmatprep.subr.mxu0 0.0
    %986 = vmatpush2.msra.mxu0 0.0
    %987 = vmatprep.subr.mxu0 0.0
    %988 = vmatpush2.msra.mxu0 0.0
    %989 = vmatprep.subr.mxu0 0.0
    %990 = vmatpush2.msra.mxu0 0.0
    %991 = vmatprep.subr.mxu0 0.0
    %992 = vmatpush2.msra.mxu0 0.0
    %993 = vmatprep.subr.mxu0 0.0
    %994 = vmatpush2.msra.mxu0 0.0
    %995 = vmatprep.subr.mxu0 0.0
    %996 = vmatpush2.msra.mxu0 0.0
    %997 = vmatprep.subr.mxu0 0.0
    %998 = vmatpush2.msra.mxu0 0.0
    %999 = vmatprep.subr.mxu0 0.0
    %1000 = vmatpush2.msra.mxu0 0.0
    %1001 = vmatprep.subr.mxu0 0.0
    %1002 = vmatpush2.msra.mxu0 0.0
    %1003 = vmatprep.mubr.f32.mxu0 0.0
    %v1004 = vand.u32 %v787, 4294901760
    %1005 = vmatmul.mubr.f32.gmra.mxu0 %v1004
    %v1006 = vpop.f32.mrf.mxu0
    %v1007 = vadd.f32 %v876, %v1006
    %v1008 = vpop.f32.mrf.mxu0
    %1009 = vmatprep.mubr.f32.mxu0 0.0
    %v1010 = vand.u32 %v790, 4294901760
    %1011 = vmatmul.mubr.f32.gmra.mxu0 %v1010
    %v1012 = vpop.f32.mrf.mxu0
    %v1013 = vadd.f32 %v886, %v1012
    %v1014 = vpop.f32.mrf.mxu0
    %1015 = vmatprep.mubr.f32.mxu0 0.0
    %v1016 = vand.u32 %v793, 4294901760
    %1017 = vmatmul.mubr.f32.gmra.mxu0 %v1016
    %v1018 = vpop.f32.mrf.mxu0
    %v1019 = vadd.f32 %v896, %v1018
    %v1020 = vpop.f32.mrf.mxu0
    %1021 = vmatprep.mubr.f32.mxu0 0.0
    %v1022 = vand.u32 %v796, 4294901760
    %1023 = vmatmul.mubr.f32.gmra.mxu0 %v1022
    %v1024 = vpop.f32.mrf.mxu0
    %v1025 = vadd.f32 %v906, %v1024
    %v1026 = vpop.f32.mrf.mxu0
    %1027 = vdwg.mxu0
    %1028 = vmatprep.subr.mxu0 0.0
    %1029 = vmatpush1.msra.mxu0 0.0
    %1030 = vmatprep.subr.mxu0 0.0
    %1031 = vmatpush1.msra.mxu0 0.0
    %1032 = vmatprep.subr.mxu0 0.0
    %1033 = vmatpush1.msra.mxu0 0.0
    %1034 = vmatprep.subr.mxu0 0.0
    %1035 = vmatpush1.msra.mxu0 0.0
    %1036 = vmatprep.subr.mxu0 0.0
    %1037 = vmatpush1.msra.mxu0 0.0
    %1038 = vmatprep.subr.mxu0 0.0
    %1039 = vmatpush1.msra.mxu0 0.0
    %1040 = vmatprep.subr.mxu0 0.0
    %1041 = vmatpush1.msra.mxu0 0.0
    %1042 = vmatprep.subr.mxu0 0.0
    %1043 = vmatpush1.msra.mxu0 0.0
    %1044 = vmatprep.subr.mxu0 0.0
    %1045 = vmatpush1.msra.mxu0 0.0
    %1046 = vmatprep.subr.mxu0 0.0
    %1047 = vmatpush1.msra.mxu0 0.0
    %1048 = vmatprep.subr.mxu0 0.0
    %v1049 = vand.u32 %v29, 4294901760
    %v1050 = vsub.f32 %v29, %v1049
    %1051 = vmatpush1.msra.mxu0 %v1050
    %1052 = vmatprep.subr.mxu0 0.0
    %v1053 = vand.u32 %v28, 4294901760
    %v1054 = vsub.f32 %v28, %v1053
    %1055 = vmatpush1.msra.mxu0 %v1054
    %1056 = vmatprep.subr.mxu0 0.0
    %v1057 = vand.u32 %v27, 4294901760
    %v1058 = vsub.f32 %v27, %v1057
    %1059 = vmatpush1.msra.mxu0 %v1058
    %1060 = vmatprep.subr.mxu0 0.0
    %v1061 = vand.u32 %v26, 4294901760
    %v1062 = vsub.f32 %v26, %v1061
    %1063 = vmatpush1.msra.mxu0 %v1062
    %1064 = vmatprep.subr.mxu0 0.0
    %v1065 = vand.u32 %v25, 4294901760
    %v1066 = vsub.f32 %v25, %v1065
    %1067 = vmatpush1.msra.mxu0 %v1066
    %1068 = vmatprep.subr.mxu0 0.0
    %v1069 = vand.u32 %v24, 4294901760
    %v1070 = vsub.f32 %v24, %v1069
    %1071 = vmatpush1.msra.mxu0 %v1070
    %1072 = vmatprep.subr.mxu0 0.0
    %1073 = vmatpush2.msra.mxu0 0.0
    %1074 = vmatprep.subr.mxu0 0.0
    %1075 = vmatpush2.msra.mxu0 0.0
    %1076 = vmatprep.subr.mxu0 0.0
    %1077 = vmatpush2.msra.mxu0 0.0
    %1078 = vmatprep.subr.mxu0 0.0
    %1079 = vmatpush2.msra.mxu0 0.0
    %1080 = vmatprep.subr.mxu0 0.0
    %1081 = vmatpush2.msra.mxu0 0.0
    %1082 = vmatprep.subr.mxu0 0.0
    %1083 = vmatpush2.msra.mxu0 0.0
    %1084 = vmatprep.subr.mxu0 0.0
    %1085 = vmatpush2.msra.mxu0 0.0
    %1086 = vmatprep.subr.mxu0 0.0
    %1087 = vmatpush2.msra.mxu0 0.0
    %1088 = vmatprep.subr.mxu0 0.0
    %1089 = vmatpush2.msra.mxu0 0.0
    %1090 = vmatprep.subr.mxu0 0.0
    %1091 = vmatpush2.msra.mxu0 0.0
    %1092 = vmatprep.subr.mxu0 0.0
    %1093 = vmatpush2.msra.mxu0 0.0
    %1094 = vmatprep.subr.mxu0 0.0
    %1095 = vmatpush2.msra.mxu0 0.0
    %1096 = vmatprep.subr.mxu0 0.0
    %1097 = vmatpush2.msra.mxu0 0.0
    %1098 = vmatprep.subr.mxu0 0.0
    %1099 = vmatpush2.msra.mxu0 0.0
    %1100 = vmatprep.subr.mxu0 0.0
    %1101 = vmatpush2.msra.mxu0 0.0
    %1102 = vmatprep.subr.mxu0 0.0
    %1103 = vmatpush2.msra.mxu0 0.0
    %1104 = vmatprep.mubr.f32.mxu0 0.0
    %v1105 = vand.u32 %v787, 4294901760
    %v1106 = vsub.f32 %v787, %v1105
    %1107 = vmatmul.mubr.f32.gmra.mxu0 %v1106
    %v1108 = vpop.f32.mrf.mxu0
    %v1109 = vadd.f32 %v1007, %v1108
    %v1110 = vpop.f32.mrf.mxu0
    %1111 = vmatprep.mubr.f32.mxu0 0.0
    %v1112 = vand.u32 %v790, 4294901760
    %v1113 = vsub.f32 %v790, %v1112
    %1114 = vmatmul.mubr.f32.gmra.mxu0 %v1113
    %v1115 = vpop.f32.mrf.mxu0
    %v1116 = vadd.f32 %v1013, %v1115
    %v1117 = vpop.f32.mrf.mxu0
    %1118 = vmatprep.mubr.f32.mxu0 0.0
    %v1119 = vand.u32 %v793, 4294901760
    %v1120 = vsub.f32 %v793, %v1119
    %1121 = vmatmul.mubr.f32.gmra.mxu0 %v1120
    %v1122 = vpop.f32.mrf.mxu0
    %v1123 = vadd.f32 %v1019, %v1122
    %v1124 = vpop.f32.mrf.mxu0
    %1125 = vmatprep.mubr.f32.mxu0 0.0
    %v1126 = vand.u32 %v796, 4294901760
    %v1127 = vsub.f32 %v796, %v1126
    %1128 = vmatmul.mubr.f32.gmra.mxu0 %v1127
    %v1129 = vpop.f32.mrf.mxu0
    %v1130 = vadd.f32 %v1025, %v1129
    %v1131 = vpop.f32.mrf.mxu0
    %1132 = vdwg.mxu0
    %1133 = vmatprep.subr.mxu0 0.0
    %1134 = vmatpush1.msra.mxu0 0.0
    %1135 = vmatprep.subr.mxu0 0.0
    %1136 = vmatpush1.msra.mxu0 0.0
    %1137 = vmatprep.subr.mxu0 0.0
    %1138 = vmatpush1.msra.mxu0 0.0
    %1139 = vmatprep.subr.mxu0 0.0
    %1140 = vmatpush1.msra.mxu0 0.0
    %1141 = vmatprep.subr.mxu0 0.0
    %1142 = vmatpush1.msra.mxu0 0.0
    %1143 = vmatprep.subr.mxu0 0.0
    %1144 = vmatpush1.msra.mxu0 0.0
    %1145 = vmatprep.subr.mxu0 0.0
    %1146 = vmatpush1.msra.mxu0 0.0
    %1147 = vmatprep.subr.mxu0 0.0
    %1148 = vmatpush1.msra.mxu0 0.0
    %1149 = vmatprep.subr.mxu0 0.0
    %1150 = vmatpush1.msra.mxu0 0.0
    %1151 = vmatprep.subr.mxu0 0.0
    %1152 = vmatpush1.msra.mxu0 0.0
    %1153 = vmatprep.subr.mxu0 0.0
    %v1154 = vand.u32 %v29, 4294901760
    %1155 = vmatpush1.msra.mxu0 %v1154
    %1156 = vmatprep.subr.mxu0 0.0
    %v1157 = vand.u32 %v28, 4294901760
    %1158 = vmatpush1.msra.mxu0 %v1157
    %1159 = vmatprep.subr.mxu0 0.0
    %v1160 = vand.u32 %v27, 4294901760
    %1161 = vmatpush1.msra.mxu0 %v1160
    %1162 = vmatprep.subr.mxu0 0.0
    %v1163 = vand.u32 %v26, 4294901760
    %1164 = vmatpush1.msra.mxu0 %v1163
    %1165 = vmatprep.subr.mxu0 0.0
    %v1166 = vand.u32 %v25, 4294901760
    %1167 = vmatpush1.msra.mxu0 %v1166
    %1168 = vmatprep.subr.mxu0 0.0
    %v1169 = vand.u32 %v24, 4294901760
    %1170 = vmatpush1.msra.mxu0 %v1169
    %1171 = vmatprep.subr.mxu0 0.0
    %1172 = vmatpush2.msra.mxu0 0.0
    %1173 = vmatprep.subr.mxu0 0.0
    %1174 = vmatpush2.msra.mxu0 0.0
    %1175 = vmatprep.subr.mxu0 0.0
    %1176 = vmatpush2.msra.mxu0 0.0
    %1177 = vmatprep.subr.mxu0 0.0
    %1178 = vmatpush2.msra.mxu0 0.0
    %1179 = vmatprep.subr.mxu0 0.0
    %1180 = vmatpush2.msra.mxu0 0.0
    %1181 = vmatprep.subr.mxu0 0.0
    %1182 = vmatpush2.msra.mxu0 0.0
    %1183 = vmatprep.subr.mxu0 0.0
    %1184 = vmatpush2.msra.mxu0 0.0
    %1185 = vmatprep.subr.mxu0 0.0
    %1186 = vmatpush2.msra.mxu0 0.0
    %1187 = vmatprep.subr.mxu0 0.0
    %1188 = vmatpush2.msra.mxu0 0.0
    %1189 = vmatprep.subr.mxu0 0.0
    %1190 = vmatpush2.msra.mxu0 0.0
    %1191 = vmatprep.subr.mxu0 0.0
    %1192 = vmatpush2.msra.mxu0 0.0
    %1193 = vmatprep.subr.mxu0 0.0
    %1194 = vmatpush2.msra.mxu0 0.0
    %1195 = vmatprep.subr.mxu0 0.0
    %1196 = vmatpush2.msra.mxu0 0.0
    %1197 = vmatprep.subr.mxu0 0.0
    %1198 = vmatpush2.msra.mxu0 0.0
    %1199 = vmatprep.subr.mxu0 0.0
    %1200 = vmatpush2.msra.mxu0 0.0
    %1201 = vmatprep.subr.mxu0 0.0
    %1202 = vmatpush2.msra.mxu0 0.0
    %1203 = vmatprep.mubr.f32.mxu0 0.0
    %v1204 = vand.u32 %v787, 4294901760
    %v1205 = vsub.f32 %v787, %v1204
    %v1206 = vand.u32 %v1205, 4294901760
    %1207 = vmatmul.mubr.f32.gmra.mxu0 %v1206
    %v1208 = vpop.f32.mrf.mxu0
    %v1209 = vadd.f32 %v1109, %v1208
    %v1210 = vpop.f32.mrf.mxu0
    %1211 = vmatprep.mubr.f32.mxu0 0.0
    %v1212 = vand.u32 %v790, 4294901760
    %v1213 = vsub.f32 %v790, %v1212
    %v1214 = vand.u32 %v1213, 4294901760
    %1215 = vmatmul.mubr.f32.gmra.mxu0 %v1214
    %v1216 = vpop.f32.mrf.mxu0
    %v1217 = vadd.f32 %v1116, %v1216
    %v1218 = vpop.f32.mrf.mxu0
    %1219 = vmatprep.mubr.f32.mxu0 0.0
    %v1220 = vand.u32 %v793, 4294901760
    %v1221 = vsub.f32 %v793, %v1220
    %v1222 = vand.u32 %v1221, 4294901760
    %1223 = vmatmul.mubr.f32.gmra.mxu0 %v1222
    %v1224 = vpop.f32.mrf.mxu0
    %v1225 = vadd.f32 %v1123, %v1224
    %v1226 = vpop.f32.mrf.mxu0
    %1227 = vmatprep.mubr.f32.mxu0 0.0
    %v1228 = vand.u32 %v796, 4294901760
    %v1229 = vsub.f32 %v796, %v1228
    %v1230 = vand.u32 %v1229, 4294901760
    %1231 = vmatmul.mubr.f32.gmra.mxu0 %v1230
    %v1232 = vpop.f32.mrf.mxu0
    %v1233 = vadd.f32 %v1130, %v1232
    %v1234 = vpop.f32.mrf.mxu0
    %1235 = vdwg.mxu0
    %1236 = vmatprep.subr.mxu0 0.0
    %1237 = vmatpush1.msra.mxu0 0.0
    %1238 = vmatprep.subr.mxu0 0.0
    %1239 = vmatpush1.msra.mxu0 0.0
    %1240 = vmatprep.subr.mxu0 0.0
    %1241 = vmatpush1.msra.mxu0 0.0
    %1242 = vmatprep.subr.mxu0 0.0
    %1243 = vmatpush1.msra.mxu0 0.0
    %1244 = vmatprep.subr.mxu0 0.0
    %1245 = vmatpush1.msra.mxu0 0.0
    %1246 = vmatprep.subr.mxu0 0.0
    %1247 = vmatpush1.msra.mxu0 0.0
    %1248 = vmatprep.subr.mxu0 0.0
    %1249 = vmatpush1.msra.mxu0 0.0
    %1250 = vmatprep.subr.mxu0 0.0
    %1251 = vmatpush1.msra.mxu0 0.0
    %1252 = vmatprep.subr.mxu0 0.0
    %1253 = vmatpush1.msra.mxu0 0.0
    %1254 = vmatprep.subr.mxu0 0.0
    %1255 = vmatpush1.msra.mxu0 0.0
    %1256 = vmatprep.subr.mxu0 0.0
    %v1257 = vand.u32 %v29, 4294901760
    %v1258 = vsub.f32 %v29, %v1257
    %v1259 = vand.u32 %v1258, 4294901760
    %1260 = vmatpush1.msra.mxu0 %v1259
    %1261 = vmatprep.subr.mxu0 0.0
    %v1262 = vand.u32 %v28, 4294901760
    %v1263 = vsub.f32 %v28, %v1262
    %v1264 = vand.u32 %v1263, 4294901760
    %1265 = vmatpush1.msra.mxu0 %v1264
    %1266 = vmatprep.subr.mxu0 0.0
    %v1267 = vand.u32 %v27, 4294901760
    %v1268 = vsub.f32 %v27, %v1267
    %v1269 = vand.u32 %v1268, 4294901760
    %1270 = vmatpush1.msra.mxu0 %v1269
    %1271 = vmatprep.subr.mxu0 0.0
    %v1272 = vand.u32 %v26, 4294901760
    %v1273 = vsub.f32 %v26, %v1272
    %v1274 = vand.u32 %v1273, 4294901760
    %1275 = vmatpush1.msra.mxu0 %v1274
    %1276 = vmatprep.subr.mxu0 0.0
    %v1277 = vand.u32 %v25, 4294901760
    %v1278 = vsub.f32 %v25, %v1277
    %v1279 = vand.u32 %v1278, 4294901760
    %1280 = vmatpush1.msra.mxu0 %v1279
    %1281 = vmatprep.subr.mxu0 0.0
    %v1282 = vand.u32 %v24, 4294901760
    %v1283 = vsub.f32 %v24, %v1282
    %v1284 = vand.u32 %v1283, 4294901760
    %1285 = vmatpush1.msra.mxu0 %v1284
    %1286 = vmatprep.subr.mxu0 0.0
    %1287 = vmatpush2.msra.mxu0 0.0
    %1288 = vmatprep.subr.mxu0 0.0
    %1289 = vmatpush2.msra.mxu0 0.0
    %1290 = vmatprep.subr.mxu0 0.0
    %1291 = vmatpush2.msra.mxu0 0.0
    %1292 = vmatprep.subr.mxu0 0.0
    %1293 = vmatpush2.msra.mxu0 0.0
    %1294 = vmatprep.subr.mxu0 0.0
    %1295 = vmatpush2.msra.mxu0 0.0
    %1296 = vmatprep.subr.mxu0 0.0
    %1297 = vmatpush2.msra.mxu0 0.0
    %1298 = vmatprep.subr.mxu0 0.0
    %1299 = vmatpush2.msra.mxu0 0.0
    %1300 = vmatprep.subr.mxu0 0.0
    %1301 = vmatpush2.msra.mxu0 0.0
    %1302 = vmatprep.subr.mxu0 0.0
    %1303 = vmatpush2.msra.mxu0 0.0
    %1304 = vmatprep.subr.mxu0 0.0
    %1305 = vmatpush2.msra.mxu0 0.0
    %1306 = vmatprep.subr.mxu0 0.0
    %1307 = vmatpush2.msra.mxu0 0.0
    %1308 = vmatprep.subr.mxu0 0.0
    %1309 = vmatpush2.msra.mxu0 0.0
    %1310 = vmatprep.subr.mxu0 0.0
    %1311 = vmatpush2.msra.mxu0 0.0
    %1312 = vmatprep.subr.mxu0 0.0
    %1313 = vmatpush2.msra.mxu0 0.0
    %1314 = vmatprep.subr.mxu0 0.0
    %1315 = vmatpush2.msra.mxu0 0.0
    %1316 = vmatprep.subr.mxu0 0.0
    %1317 = vmatpush2.msra.mxu0 0.0
    %1318 = vmatprep.mubr.f32.mxu0 0.0
    %v1319 = vand.u32 %v787, 4294901760
    %1320 = vmatmul.mubr.f32.gmra.mxu0 %v1319
    %v1321 = vpop.f32.mrf.mxu0
    %v1322 = vadd.f32 %v1209, %v1321
    %v1323 = vpop.f32.mrf.mxu0
    %1324 = vmatprep.mubr.f32.mxu0 0.0
    %v1325 = vand.u32 %v790, 4294901760
    %1326 = vmatmul.mubr.f32.gmra.mxu0 %v1325
    %v1327 = vpop.f32.mrf.mxu0
    %v1328 = vadd.f32 %v1217, %v1327
    %v1329 = vpop.f32.mrf.mxu0
    %1330 = vmatprep.mubr.f32.mxu0 0.0
    %v1331 = vand.u32 %v793, 4294901760
    %1332 = vmatmul.mubr.f32.gmra.mxu0 %v1331
    %v1333 = vpop.f32.mrf.mxu0
    %v1334 = vadd.f32 %v1225, %v1333
    %v1335 = vpop.f32.mrf.mxu0
    %1336 = vmatprep.mubr.f32.mxu0 0.0
    %v1337 = vand.u32 %v796, 4294901760
    %1338 = vmatmul.mubr.f32.gmra.mxu0 %v1337
    %v1339 = vpop.f32.mrf.mxu0
    %v1340 = vadd.f32 %v1233, %v1339
    %v1341 = vpop.f32.mrf.mxu0
    %1342 = vdwg.mxu0
    %1343 = vmatprep.subr.mxu0 0.0
    %1344 = vmatpush1.msra.mxu0 0.0
    %1345 = vmatprep.subr.mxu0 0.0
    %1346 = vmatpush1.msra.mxu0 0.0
    %1347 = vmatprep.subr.mxu0 0.0
    %1348 = vmatpush1.msra.mxu0 0.0
    %1349 = vmatprep.subr.mxu0 0.0
    %1350 = vmatpush1.msra.mxu0 0.0
    %1351 = vmatprep.subr.mxu0 0.0
    %1352 = vmatpush1.msra.mxu0 0.0
    %1353 = vmatprep.subr.mxu0 0.0
    %1354 = vmatpush1.msra.mxu0 0.0
    %1355 = vmatprep.subr.mxu0 0.0
    %1356 = vmatpush1.msra.mxu0 0.0
    %1357 = vmatprep.subr.mxu0 0.0
    %1358 = vmatpush1.msra.mxu0 0.0
    %1359 = vmatprep.subr.mxu0 0.0
    %1360 = vmatpush1.msra.mxu0 0.0
    %1361 = vmatprep.subr.mxu0 0.0
    %1362 = vmatpush1.msra.mxu0 0.0
    %1363 = vmatprep.subr.mxu0 0.0
    %v1364 = vand.u32 %v29, 4294901760
    %1365 = vmatpush1.msra.mxu0 %v1364
    %1366 = vmatprep.subr.mxu0 0.0
    %v1367 = vand.u32 %v28, 4294901760
    %1368 = vmatpush1.msra.mxu0 %v1367
    %1369 = vmatprep.subr.mxu0 0.0
    %v1370 = vand.u32 %v27, 4294901760
    %1371 = vmatpush1.msra.mxu0 %v1370
    %1372 = vmatprep.subr.mxu0 0.0
    %v1373 = vand.u32 %v26, 4294901760
    %1374 = vmatpush1.msra.mxu0 %v1373
    %1375 = vmatprep.subr.mxu0 0.0
    %v1376 = vand.u32 %v25, 4294901760
    %1377 = vmatpush1.msra.mxu0 %v1376
    %1378 = vmatprep.subr.mxu0 0.0
    %v1379 = vand.u32 %v24, 4294901760
    %1380 = vmatpush1.msra.mxu0 %v1379
    %1381 = vmatprep.subr.mxu0 0.0
    %1382 = vmatpush2.msra.mxu0 0.0
    %1383 = vmatprep.subr.mxu0 0.0
    %1384 = vmatpush2.msra.mxu0 0.0
    %1385 = vmatprep.subr.mxu0 0.0
    %1386 = vmatpush2.msra.mxu0 0.0
    %1387 = vmatprep.subr.mxu0 0.0
    %1388 = vmatpush2.msra.mxu0 0.0
    %1389 = vmatprep.subr.mxu0 0.0
    %1390 = vmatpush2.msra.mxu0 0.0
    %1391 = vmatprep.subr.mxu0 0.0
    %1392 = vmatpush2.msra.mxu0 0.0
    %1393 = vmatprep.subr.mxu0 0.0
    %1394 = vmatpush2.msra.mxu0 0.0
    %1395 = vmatprep.subr.mxu0 0.0
    %1396 = vmatpush2.msra.mxu0 0.0
    %1397 = vmatprep.subr.mxu0 0.0
    %1398 = vmatpush2.msra.mxu0 0.0
    %1399 = vmatprep.subr.mxu0 0.0
    %1400 = vmatpush2.msra.mxu0 0.0
    %1401 = vmatprep.subr.mxu0 0.0
    %1402 = vmatpush2.msra.mxu0 0.0
    %1403 = vmatprep.subr.mxu0 0.0
    %1404 = vmatpush2.msra.mxu0 0.0
    %1405 = vmatprep.subr.mxu0 0.0
    %1406 = vmatpush2.msra.mxu0 0.0
    %1407 = vmatprep.subr.mxu0 0.0
    %1408 = vmatpush2.msra.mxu0 0.0
    %1409 = vmatprep.subr.mxu0 0.0
    %1410 = vmatpush2.msra.mxu0 0.0
    %1411 = vmatprep.subr.mxu0 0.0
    %1412 = vmatpush2.msra.mxu0 0.0
    %1413 = vmatprep.mubr.f32.mxu0 0.0
    %v1414 = vand.u32 %v787, 4294901760
    %1415 = vmatmul.mubr.f32.gmra.mxu0 %v1414
    %v1416 = vpop.f32.mrf.mxu0
    %v1417 = vadd.f32 %v1322, %v1416
    %v1418 = vpop.f32.mrf.mxu0
    %1419 = vmatprep.mubr.f32.mxu0 0.0
    %v1420 = vand.u32 %v790, 4294901760
    %1421 = vmatmul.mubr.f32.gmra.mxu0 %v1420
    %v1422 = vpop.f32.mrf.mxu0
    %v1423 = vadd.f32 %v1328, %v1422
    %v1424 = vpop.f32.mrf.mxu0
    %1425 = vmatprep.mubr.f32.mxu0 0.0
    %v1426 = vand.u32 %v793, 4294901760
    %1427 = vmatmul.mubr.f32.gmra.mxu0 %v1426
    %v1428 = vpop.f32.mrf.mxu0
    %v1429 = vadd.f32 %v1334, %v1428
    %v1430 = vpop.f32.mrf.mxu0
    %1431 = vmatprep.mubr.f32.mxu0 0.0
    %v1432 = vand.u32 %v796, 4294901760
    %1433 = vmatmul.mubr.f32.gmra.mxu0 %v1432
    %v1434 = vpop.f32.mrf.mxu0
    %v1435 = vadd.f32 %v1340, %v1434
    %v1436 = vpop.f32.mrf.mxu0
    %1437 = vdwg.mxu0
    %v1438 = vmax.f32 %v1417, 0.0
    %v1439 = vmax.f32 %v1423, 0.0
    %v1440 = vmax.f32 %v1429, 0.0
    %v1441 = vmax.f32 %v1435, 0.0
    %v1442 = vlaneseq
    %v1443 = vshrl.u32 %v1442, 7
    %v1444 = vsub.s32 0, %v1443
    %v1445 = vrot.slane %v38, %v1444
    %v1447 = vsel %vm785, %v1438, 0
    %v1450 = vsel %vm785, %v1439, 0
    %v1453 = vsel %vm785, %v1440, 0
    %v1456 = vsel %vm785, %v1441, 0
    %1458 = vmatprep.subr.mxu0 0.0
    %1459 = vmatpush1.msra.mxu0 0.0
    %1460 = vmatprep.subr.mxu0 0.0
    %1461 = vmatpush1.msra.mxu0 0.0
    %1462 = vmatprep.subr.mxu0 0.0
    %1463 = vmatpush1.msra.mxu0 0.0
    %1464 = vmatprep.subr.mxu0 0.0
    %1465 = vmatpush1.msra.mxu0 0.0
    %1466 = vmatprep.subr.mxu0 0.0
    %1467 = vmatpush1.msra.mxu0 0.0
    %1468 = vmatprep.subr.mxu0 0.0
    %1469 = vmatpush1.msra.mxu0 0.0
    %1470 = vmatprep.subr.mxu0 0.0
    %1471 = vmatpush1.msra.mxu0 0.0
    %1472 = vmatprep.subr.mxu0 0.0
    %1473 = vmatpush1.msra.mxu0 0.0
    %1474 = vmatprep.subr.mxu0 0.0
    %1475 = vmatpush1.msra.mxu0 0.0
    %1476 = vmatprep.subr.mxu0 0.0
    %1477 = vmatpush1.msra.mxu0 0.0
    %1478 = vmatprep.subr.mxu0 0.0
    %v1479 = vand.u32 %v35, 4294901760
    %1480 = vmatpush1.msra.mxu0 %v1479
    %1481 = vmatprep.subr.mxu0 0.0
    %v1482 = vand.u32 %v34, 4294901760
    %1483 = vmatpush1.msra.mxu0 %v1482
    %1484 = vmatprep.subr.mxu0 0.0
    %v1485 = vand.u32 %v33, 4294901760
    %1486 = vmatpush1.msra.mxu0 %v1485
    %1487 = vmatprep.subr.mxu0 0.0
    %v1488 = vand.u32 %v32, 4294901760
    %1489 = vmatpush1.msra.mxu0 %v1488
    %1490 = vmatprep.subr.mxu0 0.0
    %v1491 = vand.u32 %v31, 4294901760
    %1492 = vmatpush1.msra.mxu0 %v1491
    %1493 = vmatprep.subr.mxu0 0.0
    %v1494 = vand.u32 %v30, 4294901760
    %1495 = vmatpush1.msra.mxu0 %v1494
    %1496 = vmatprep.subr.mxu0 0.0
    %1497 = vmatpush2.msra.mxu0 0.0
    %1498 = vmatprep.subr.mxu0 0.0
    %1499 = vmatpush2.msra.mxu0 0.0
    %1500 = vmatprep.subr.mxu0 0.0
    %1501 = vmatpush2.msra.mxu0 0.0
    %1502 = vmatprep.subr.mxu0 0.0
    %1503 = vmatpush2.msra.mxu0 0.0
    %1504 = vmatprep.subr.mxu0 0.0
    %1505 = vmatpush2.msra.mxu0 0.0
    %1506 = vmatprep.subr.mxu0 0.0
    %1507 = vmatpush2.msra.mxu0 0.0
    %1508 = vmatprep.subr.mxu0 0.0
    %1509 = vmatpush2.msra.mxu0 0.0
    %1510 = vmatprep.subr.mxu0 0.0
    %1511 = vmatpush2.msra.mxu0 0.0
    %1512 = vmatprep.subr.mxu0 0.0
    %1513 = vmatpush2.msra.mxu0 0.0
    %1514 = vmatprep.subr.mxu0 0.0
    %1515 = vmatpush2.msra.mxu0 0.0
    %1516 = vmatprep.subr.mxu0 0.0
    %1517 = vmatpush2.msra.mxu0 0.0
    %1518 = vmatprep.subr.mxu0 0.0
    %1519 = vmatpush2.msra.mxu0 0.0
    %1520 = vmatprep.subr.mxu0 0.0
    %1521 = vmatpush2.msra.mxu0 0.0
    %1522 = vmatprep.subr.mxu0 0.0
    %1523 = vmatpush2.msra.mxu0 0.0
    %1524 = vmatprep.subr.mxu0 0.0
    %1525 = vmatpush2.msra.mxu0 0.0
    %1526 = vmatprep.subr.mxu0 0.0
    %1527 = vmatpush2.msra.mxu0 0.0
    %1528 = vmatprep.mubr.f32.mxu0 0.0
    %v1529 = vand.u32 %v1447, 4294901760
    %v1530 = vsub.f32 %v1447, %v1529
    %v1531 = vand.u32 %v1530, 4294901760
    %v1532 = vsub.f32 %v1530, %v1531
    %v1533 = vand.u32 %v1532, 4294901760
    %1534 = vmatmul.mubr.f32.gmra.mxu0 %v1533
    %v1535 = vpop.f32.mrf.mxu0
    %v1536 = vadd.f32 %v1445, %v1535
    %v1537 = vpop.f32.mrf.mxu0
    %1538 = vmatprep.mubr.f32.mxu0 0.0
    %v1539 = vand.u32 %v1450, 4294901760
    %v1540 = vsub.f32 %v1450, %v1539
    %v1541 = vand.u32 %v1540, 4294901760
    %v1542 = vsub.f32 %v1540, %v1541
    %v1543 = vand.u32 %v1542, 4294901760
    %1544 = vmatmul.mubr.f32.gmra.mxu0 %v1543
    %v1545 = vpop.f32.mrf.mxu0
    %v1546 = vadd.f32 %v1445, %v1545
    %v1547 = vpop.f32.mrf.mxu0
    %1548 = vmatprep.mubr.f32.mxu0 0.0
    %v1549 = vand.u32 %v1453, 4294901760
    %v1550 = vsub.f32 %v1453, %v1549
    %v1551 = vand.u32 %v1550, 4294901760
    %v1552 = vsub.f32 %v1550, %v1551
    %v1553 = vand.u32 %v1552, 4294901760
    %1554 = vmatmul.mubr.f32.gmra.mxu0 %v1553
    %v1555 = vpop.f32.mrf.mxu0
    %v1556 = vadd.f32 %v1445, %v1555
    %v1557 = vpop.f32.mrf.mxu0
    %1558 = vmatprep.mubr.f32.mxu0 0.0
    %v1559 = vand.u32 %v1456, 4294901760
    %v1560 = vsub.f32 %v1456, %v1559
    %v1561 = vand.u32 %v1560, 4294901760
    %v1562 = vsub.f32 %v1560, %v1561
    %v1563 = vand.u32 %v1562, 4294901760
    %1564 = vmatmul.mubr.f32.gmra.mxu0 %v1563
    %v1565 = vpop.f32.mrf.mxu0
    %v1566 = vadd.f32 %v1445, %v1565
    %v1567 = vpop.f32.mrf.mxu0
    %1568 = vdwg.mxu0
    %1569 = vmatprep.subr.mxu0 0.0
    %1570 = vmatpush1.msra.mxu0 0.0
    %1571 = vmatprep.subr.mxu0 0.0
    %1572 = vmatpush1.msra.mxu0 0.0
    %1573 = vmatprep.subr.mxu0 0.0
    %1574 = vmatpush1.msra.mxu0 0.0
    %1575 = vmatprep.subr.mxu0 0.0
    %1576 = vmatpush1.msra.mxu0 0.0
    %1577 = vmatprep.subr.mxu0 0.0
    %1578 = vmatpush1.msra.mxu0 0.0
    %1579 = vmatprep.subr.mxu0 0.0
    %1580 = vmatpush1.msra.mxu0 0.0
    %1581 = vmatprep.subr.mxu0 0.0
    %1582 = vmatpush1.msra.mxu0 0.0
    %1583 = vmatprep.subr.mxu0 0.0
    %1584 = vmatpush1.msra.mxu0 0.0
    %1585 = vmatprep.subr.mxu0 0.0
    %1586 = vmatpush1.msra.mxu0 0.0
    %1587 = vmatprep.subr.mxu0 0.0
    %1588 = vmatpush1.msra.mxu0 0.0
    %1589 = vmatprep.subr.mxu0 0.0
    %v1590 = vand.u32 %v35, 4294901760
    %v1591 = vsub.f32 %v35, %v1590
    %v1592 = vand.u32 %v1591, 4294901760
    %v1593 = vsub.f32 %v1591, %v1592
    %v1594 = vand.u32 %v1593, 4294901760
    %1595 = vmatpush1.msra.mxu0 %v1594
    %1596 = vmatprep.subr.mxu0 0.0
    %v1597 = vand.u32 %v34, 4294901760
    %v1598 = vsub.f32 %v34, %v1597
    %v1599 = vand.u32 %v1598, 4294901760
    %v1600 = vsub.f32 %v1598, %v1599
    %v1601 = vand.u32 %v1600, 4294901760
    %1602 = vmatpush1.msra.mxu0 %v1601
    %1603 = vmatprep.subr.mxu0 0.0
    %v1604 = vand.u32 %v33, 4294901760
    %v1605 = vsub.f32 %v33, %v1604
    %v1606 = vand.u32 %v1605, 4294901760
    %v1607 = vsub.f32 %v1605, %v1606
    %v1608 = vand.u32 %v1607, 4294901760
    %1609 = vmatpush1.msra.mxu0 %v1608
    %1610 = vmatprep.subr.mxu0 0.0
    %v1611 = vand.u32 %v32, 4294901760
    %v1612 = vsub.f32 %v32, %v1611
    %v1613 = vand.u32 %v1612, 4294901760
    %v1614 = vsub.f32 %v1612, %v1613
    %v1615 = vand.u32 %v1614, 4294901760
    %1616 = vmatpush1.msra.mxu0 %v1615
    %1617 = vmatprep.subr.mxu0 0.0
    %v1618 = vand.u32 %v31, 4294901760
    %v1619 = vsub.f32 %v31, %v1618
    %v1620 = vand.u32 %v1619, 4294901760
    %v1621 = vsub.f32 %v1619, %v1620
    %v1622 = vand.u32 %v1621, 4294901760
    %1623 = vmatpush1.msra.mxu0 %v1622
    %1624 = vmatprep.subr.mxu0 0.0
    %v1625 = vand.u32 %v30, 4294901760
    %v1626 = vsub.f32 %v30, %v1625
    %v1627 = vand.u32 %v1626, 4294901760
    %v1628 = vsub.f32 %v1626, %v1627
    %v1629 = vand.u32 %v1628, 4294901760
    %1630 = vmatpush1.msra.mxu0 %v1629
    %1631 = vmatprep.subr.mxu0 0.0
    %1632 = vmatpush2.msra.mxu0 0.0
    %1633 = vmatprep.subr.mxu0 0.0
    %1634 = vmatpush2.msra.mxu0 0.0
    %1635 = vmatprep.subr.mxu0 0.0
    %1636 = vmatpush2.msra.mxu0 0.0
    %1637 = vmatprep.subr.mxu0 0.0
    %1638 = vmatpush2.msra.mxu0 0.0
    %1639 = vmatprep.subr.mxu0 0.0
    %1640 = vmatpush2.msra.mxu0 0.0
    %1641 = vmatprep.subr.mxu0 0.0
    %1642 = vmatpush2.msra.mxu0 0.0
    %1643 = vmatprep.subr.mxu0 0.0
    %1644 = vmatpush2.msra.mxu0 0.0
    %1645 = vmatprep.subr.mxu0 0.0
    %1646 = vmatpush2.msra.mxu0 0.0
    %1647 = vmatprep.subr.mxu0 0.0
    %1648 = vmatpush2.msra.mxu0 0.0
    %1649 = vmatprep.subr.mxu0 0.0
    %1650 = vmatpush2.msra.mxu0 0.0
    %1651 = vmatprep.subr.mxu0 0.0
    %1652 = vmatpush2.msra.mxu0 0.0
    %1653 = vmatprep.subr.mxu0 0.0
    %1654 = vmatpush2.msra.mxu0 0.0
    %1655 = vmatprep.subr.mxu0 0.0
    %1656 = vmatpush2.msra.mxu0 0.0
    %1657 = vmatprep.subr.mxu0 0.0
    %1658 = vmatpush2.msra.mxu0 0.0
    %1659 = vmatprep.subr.mxu0 0.0
    %1660 = vmatpush2.msra.mxu0 0.0
    %1661 = vmatprep.subr.mxu0 0.0
    %1662 = vmatpush2.msra.mxu0 0.0
    %1663 = vmatprep.mubr.f32.mxu0 0.0
    %v1664 = vand.u32 %v1447, 4294901760
    %1665 = vmatmul.mubr.f32.gmra.mxu0 %v1664
    %v1666 = vpop.f32.mrf.mxu0
    %v1667 = vadd.f32 %v1536, %v1666
    %v1668 = vpop.f32.mrf.mxu0
    %1669 = vmatprep.mubr.f32.mxu0 0.0
    %v1670 = vand.u32 %v1450, 4294901760
    %1671 = vmatmul.mubr.f32.gmra.mxu0 %v1670
    %v1672 = vpop.f32.mrf.mxu0
    %v1673 = vadd.f32 %v1546, %v1672
    %v1674 = vpop.f32.mrf.mxu0
    %1675 = vmatprep.mubr.f32.mxu0 0.0
    %v1676 = vand.u32 %v1453, 4294901760
    %1677 = vmatmul.mubr.f32.gmra.mxu0 %v1676
    %v1678 = vpop.f32.mrf.mxu0
    %v1679 = vadd.f32 %v1556, %v1678
    %v1680 = vpop.f32.mrf.mxu0
    %1681 = vmatprep.mubr.f32.mxu0 0.0
    %v1682 = vand.u32 %v1456, 4294901760
    %1683 = vmatmul.mubr.f32.gmra.mxu0 %v1682
    %v1684 = vpop.f32.mrf.mxu0
    %v1685 = vadd.f32 %v1566, %v1684
    %v1686 = vpop.f32.mrf.mxu0
    %1687 = vdwg.mxu0
    %1688 = vmatprep.subr.mxu0 0.0
    %1689 = vmatpush1.msra.mxu0 0.0
    %1690 = vmatprep.subr.mxu0 0.0
    %1691 = vmatpush1.msra.mxu0 0.0
    %1692 = vmatprep.subr.mxu0 0.0
    %1693 = vmatpush1.msra.mxu0 0.0
    %1694 = vmatprep.subr.mxu0 0.0
    %1695 = vmatpush1.msra.mxu0 0.0
    %1696 = vmatprep.subr.mxu0 0.0
    %1697 = vmatpush1.msra.mxu0 0.0
    %1698 = vmatprep.subr.mxu0 0.0
    %1699 = vmatpush1.msra.mxu0 0.0
    %1700 = vmatprep.subr.mxu0 0.0
    %1701 = vmatpush1.msra.mxu0 0.0
    %1702 = vmatprep.subr.mxu0 0.0
    %1703 = vmatpush1.msra.mxu0 0.0
    %1704 = vmatprep.subr.mxu0 0.0
    %1705 = vmatpush1.msra.mxu0 0.0
    %1706 = vmatprep.subr.mxu0 0.0
    %1707 = vmatpush1.msra.mxu0 0.0
    %1708 = vmatprep.subr.mxu0 0.0
    %v1709 = vand.u32 %v35, 4294901760
    %v1710 = vsub.f32 %v35, %v1709
    %1711 = vmatpush1.msra.mxu0 %v1710
    %1712 = vmatprep.subr.mxu0 0.0
    %v1713 = vand.u32 %v34, 4294901760
    %v1714 = vsub.f32 %v34, %v1713
    %1715 = vmatpush1.msra.mxu0 %v1714
    %1716 = vmatprep.subr.mxu0 0.0
    %v1717 = vand.u32 %v33, 4294901760
    %v1718 = vsub.f32 %v33, %v1717
    %1719 = vmatpush1.msra.mxu0 %v1718
    %1720 = vmatprep.subr.mxu0 0.0
    %v1721 = vand.u32 %v32, 4294901760
    %v1722 = vsub.f32 %v32, %v1721
    %1723 = vmatpush1.msra.mxu0 %v1722
    %1724 = vmatprep.subr.mxu0 0.0
    %v1725 = vand.u32 %v31, 4294901760
    %v1726 = vsub.f32 %v31, %v1725
    %1727 = vmatpush1.msra.mxu0 %v1726
    %1728 = vmatprep.subr.mxu0 0.0
    %v1729 = vand.u32 %v30, 4294901760
    %v1730 = vsub.f32 %v30, %v1729
    %1731 = vmatpush1.msra.mxu0 %v1730
    %1732 = vmatprep.subr.mxu0 0.0
    %1733 = vmatpush2.msra.mxu0 0.0
    %1734 = vmatprep.subr.mxu0 0.0
    %1735 = vmatpush2.msra.mxu0 0.0
    %1736 = vmatprep.subr.mxu0 0.0
    %1737 = vmatpush2.msra.mxu0 0.0
    %1738 = vmatprep.subr.mxu0 0.0
    %1739 = vmatpush2.msra.mxu0 0.0
    %1740 = vmatprep.subr.mxu0 0.0
    %1741 = vmatpush2.msra.mxu0 0.0
    %1742 = vmatprep.subr.mxu0 0.0
    %1743 = vmatpush2.msra.mxu0 0.0
    %1744 = vmatprep.subr.mxu0 0.0
    %1745 = vmatpush2.msra.mxu0 0.0
    %1746 = vmatprep.subr.mxu0 0.0
    %1747 = vmatpush2.msra.mxu0 0.0
    %1748 = vmatprep.subr.mxu0 0.0
    %1749 = vmatpush2.msra.mxu0 0.0
    %1750 = vmatprep.subr.mxu0 0.0
    %1751 = vmatpush2.msra.mxu0 0.0
    %1752 = vmatprep.subr.mxu0 0.0
    %1753 = vmatpush2.msra.mxu0 0.0
    %1754 = vmatprep.subr.mxu0 0.0
    %1755 = vmatpush2.msra.mxu0 0.0
    %1756 = vmatprep.subr.mxu0 0.0
    %1757 = vmatpush2.msra.mxu0 0.0
    %1758 = vmatprep.subr.mxu0 0.0
    %1759 = vmatpush2.msra.mxu0 0.0
    %1760 = vmatprep.subr.mxu0 0.0
    %1761 = vmatpush2.msra.mxu0 0.0
    %1762 = vmatprep.subr.mxu0 0.0
    %1763 = vmatpush2.msra.mxu0 0.0
    %1764 = vmatprep.mubr.f32.mxu0 0.0
    %v1765 = vand.u32 %v1447, 4294901760
    %v1766 = vsub.f32 %v1447, %v1765
    %1767 = vmatmul.mubr.f32.gmra.mxu0 %v1766
    %v1768 = vpop.f32.mrf.mxu0
    %v1769 = vadd.f32 %v1667, %v1768
    %v1770 = vpop.f32.mrf.mxu0
    %1771 = vmatprep.mubr.f32.mxu0 0.0
    %v1772 = vand.u32 %v1450, 4294901760
    %v1773 = vsub.f32 %v1450, %v1772
    %1774 = vmatmul.mubr.f32.gmra.mxu0 %v1773
    %v1775 = vpop.f32.mrf.mxu0
    %v1776 = vadd.f32 %v1673, %v1775
    %v1777 = vpop.f32.mrf.mxu0
    %1778 = vmatprep.mubr.f32.mxu0 0.0
    %v1779 = vand.u32 %v1453, 4294901760
    %v1780 = vsub.f32 %v1453, %v1779
    %1781 = vmatmul.mubr.f32.gmra.mxu0 %v1780
    %v1782 = vpop.f32.mrf.mxu0
    %v1783 = vadd.f32 %v1679, %v1782
    %v1784 = vpop.f32.mrf.mxu0
    %1785 = vmatprep.mubr.f32.mxu0 0.0
    %v1786 = vand.u32 %v1456, 4294901760
    %v1787 = vsub.f32 %v1456, %v1786
    %1788 = vmatmul.mubr.f32.gmra.mxu0 %v1787
    %v1789 = vpop.f32.mrf.mxu0
    %v1790 = vadd.f32 %v1685, %v1789
    %v1791 = vpop.f32.mrf.mxu0
    %1792 = vdwg.mxu0
    %1793 = vmatprep.subr.mxu0 0.0
    %1794 = vmatpush1.msra.mxu0 0.0
    %1795 = vmatprep.subr.mxu0 0.0
    %1796 = vmatpush1.msra.mxu0 0.0
    %1797 = vmatprep.subr.mxu0 0.0
    %1798 = vmatpush1.msra.mxu0 0.0
    %1799 = vmatprep.subr.mxu0 0.0
    %1800 = vmatpush1.msra.mxu0 0.0
    %1801 = vmatprep.subr.mxu0 0.0
    %1802 = vmatpush1.msra.mxu0 0.0
    %1803 = vmatprep.subr.mxu0 0.0
    %1804 = vmatpush1.msra.mxu0 0.0
    %1805 = vmatprep.subr.mxu0 0.0
    %1806 = vmatpush1.msra.mxu0 0.0
    %1807 = vmatprep.subr.mxu0 0.0
    %1808 = vmatpush1.msra.mxu0 0.0
    %1809 = vmatprep.subr.mxu0 0.0
    %1810 = vmatpush1.msra.mxu0 0.0
    %1811 = vmatprep.subr.mxu0 0.0
    %1812 = vmatpush1.msra.mxu0 0.0
    %1813 = vmatprep.subr.mxu0 0.0
    %v1814 = vand.u32 %v35, 4294901760
    %1815 = vmatpush1.msra.mxu0 %v1814
    %1816 = vmatprep.subr.mxu0 0.0
    %v1817 = vand.u32 %v34, 4294901760
    %1818 = vmatpush1.msra.mxu0 %v1817
    %1819 = vmatprep.subr.mxu0 0.0
    %v1820 = vand.u32 %v33, 4294901760
    %1821 = vmatpush1.msra.mxu0 %v1820
    %1822 = vmatprep.subr.mxu0 0.0
    %v1823 = vand.u32 %v32, 4294901760
    %1824 = vmatpush1.msra.mxu0 %v1823
    %1825 = vmatprep.subr.mxu0 0.0
    %v1826 = vand.u32 %v31, 4294901760
    %1827 = vmatpush1.msra.mxu0 %v1826
    %1828 = vmatprep.subr.mxu0 0.0
    %v1829 = vand.u32 %v30, 4294901760
    %1830 = vmatpush1.msra.mxu0 %v1829
    %1831 = vmatprep.subr.mxu0 0.0
    %1832 = vmatpush2.msra.mxu0 0.0
    %1833 = vmatprep.subr.mxu0 0.0
    %1834 = vmatpush2.msra.mxu0 0.0
    %1835 = vmatprep.subr.mxu0 0.0
    %1836 = vmatpush2.msra.mxu0 0.0
    %1837 = vmatprep.subr.mxu0 0.0
    %1838 = vmatpush2.msra.mxu0 0.0
    %1839 = vmatprep.subr.mxu0 0.0
    %1840 = vmatpush2.msra.mxu0 0.0
    %1841 = vmatprep.subr.mxu0 0.0
    %1842 = vmatpush2.msra.mxu0 0.0
    %1843 = vmatprep.subr.mxu0 0.0
    %1844 = vmatpush2.msra.mxu0 0.0
    %1845 = vmatprep.subr.mxu0 0.0
    %1846 = vmatpush2.msra.mxu0 0.0
    %1847 = vmatprep.subr.mxu0 0.0
    %1848 = vmatpush2.msra.mxu0 0.0
    %1849 = vmatprep.subr.mxu0 0.0
    %1850 = vmatpush2.msra.mxu0 0.0
    %1851 = vmatprep.subr.mxu0 0.0
    %1852 = vmatpush2.msra.mxu0 0.0
    %1853 = vmatprep.subr.mxu0 0.0
    %1854 = vmatpush2.msra.mxu0 0.0
    %1855 = vmatprep.subr.mxu0 0.0
    %1856 = vmatpush2.msra.mxu0 0.0
    %1857 = vmatprep.subr.mxu0 0.0
    %1858 = vmatpush2.msra.mxu0 0.0
    %1859 = vmatprep.subr.mxu0 0.0
    %1860 = vmatpush2.msra.mxu0 0.0
    %1861 = vmatprep.subr.mxu0 0.0
    %1862 = vmatpush2.msra.mxu0 0.0
    %1863 = vmatprep.mubr.f32.mxu0 0.0
    %v1864 = vand.u32 %v1447, 4294901760
    %v1865 = vsub.f32 %v1447, %v1864
    %v1866 = vand.u32 %v1865, 4294901760
    %1867 = vmatmul.mubr.f32.gmra.mxu0 %v1866
    %v1868 = vpop.f32.mrf.mxu0
    %v1869 = vadd.f32 %v1769, %v1868
    %v1870 = vpop.f32.mrf.mxu0
    %1871 = vmatprep.mubr.f32.mxu0 0.0
    %v1872 = vand.u32 %v1450, 4294901760
    %v1873 = vsub.f32 %v1450, %v1872
    %v1874 = vand.u32 %v1873, 4294901760
    %1875 = vmatmul.mubr.f32.gmra.mxu0 %v1874
    %v1876 = vpop.f32.mrf.mxu0
    %v1877 = vadd.f32 %v1776, %v1876
    %v1878 = vpop.f32.mrf.mxu0
    %1879 = vmatprep.mubr.f32.mxu0 0.0
    %v1880 = vand.u32 %v1453, 4294901760
    %v1881 = vsub.f32 %v1453, %v1880
    %v1882 = vand.u32 %v1881, 4294901760
    %1883 = vmatmul.mubr.f32.gmra.mxu0 %v1882
    %v1884 = vpop.f32.mrf.mxu0
    %v1885 = vadd.f32 %v1783, %v1884
    %v1886 = vpop.f32.mrf.mxu0
    %1887 = vmatprep.mubr.f32.mxu0 0.0
    %v1888 = vand.u32 %v1456, 4294901760
    %v1889 = vsub.f32 %v1456, %v1888
    %v1890 = vand.u32 %v1889, 4294901760
    %1891 = vmatmul.mubr.f32.gmra.mxu0 %v1890
    %v1892 = vpop.f32.mrf.mxu0
    %v1893 = vadd.f32 %v1790, %v1892
    %v1894 = vpop.f32.mrf.mxu0
    %1895 = vdwg.mxu0
    %1896 = vmatprep.subr.mxu0 0.0
    %1897 = vmatpush1.msra.mxu0 0.0
    %1898 = vmatprep.subr.mxu0 0.0
    %1899 = vmatpush1.msra.mxu0 0.0
    %1900 = vmatprep.subr.mxu0 0.0
    %1901 = vmatpush1.msra.mxu0 0.0
    %1902 = vmatprep.subr.mxu0 0.0
    %1903 = vmatpush1.msra.mxu0 0.0
    %1904 = vmatprep.subr.mxu0 0.0
    %1905 = vmatpush1.msra.mxu0 0.0
    %1906 = vmatprep.subr.mxu0 0.0
    %1907 = vmatpush1.msra.mxu0 0.0
    %1908 = vmatprep.subr.mxu0 0.0
    %1909 = vmatpush1.msra.mxu0 0.0
    %1910 = vmatprep.subr.mxu0 0.0
    %1911 = vmatpush1.msra.mxu0 0.0
    %1912 = vmatprep.subr.mxu0 0.0
    %1913 = vmatpush1.msra.mxu0 0.0
    %1914 = vmatprep.subr.mxu0 0.0
    %1915 = vmatpush1.msra.mxu0 0.0
    %1916 = vmatprep.subr.mxu0 0.0
    %v1917 = vand.u32 %v35, 4294901760
    %v1918 = vsub.f32 %v35, %v1917
    %v1919 = vand.u32 %v1918, 4294901760
    %1920 = vmatpush1.msra.mxu0 %v1919
    %1921 = vmatprep.subr.mxu0 0.0
    %v1922 = vand.u32 %v34, 4294901760
    %v1923 = vsub.f32 %v34, %v1922
    %v1924 = vand.u32 %v1923, 4294901760
    %1925 = vmatpush1.msra.mxu0 %v1924
    %1926 = vmatprep.subr.mxu0 0.0
    %v1927 = vand.u32 %v33, 4294901760
    %v1928 = vsub.f32 %v33, %v1927
    %v1929 = vand.u32 %v1928, 4294901760
    %1930 = vmatpush1.msra.mxu0 %v1929
    %1931 = vmatprep.subr.mxu0 0.0
    %v1932 = vand.u32 %v32, 4294901760
    %v1933 = vsub.f32 %v32, %v1932
    %v1934 = vand.u32 %v1933, 4294901760
    %1935 = vmatpush1.msra.mxu0 %v1934
    %1936 = vmatprep.subr.mxu0 0.0
    %v1937 = vand.u32 %v31, 4294901760
    %v1938 = vsub.f32 %v31, %v1937
    %v1939 = vand.u32 %v1938, 4294901760
    %1940 = vmatpush1.msra.mxu0 %v1939
    %1941 = vmatprep.subr.mxu0 0.0
    %v1942 = vand.u32 %v30, 4294901760
    %v1943 = vsub.f32 %v30, %v1942
    %v1944 = vand.u32 %v1943, 4294901760
    %1945 = vmatpush1.msra.mxu0 %v1944
    %1946 = vmatprep.subr.mxu0 0.0
    %1947 = vmatpush2.msra.mxu0 0.0
    %1948 = vmatprep.subr.mxu0 0.0
    %1949 = vmatpush2.msra.mxu0 0.0
    %1950 = vmatprep.subr.mxu0 0.0
    %1951 = vmatpush2.msra.mxu0 0.0
    %1952 = vmatprep.subr.mxu0 0.0
    %1953 = vmatpush2.msra.mxu0 0.0
    %1954 = vmatprep.subr.mxu0 0.0
    %1955 = vmatpush2.msra.mxu0 0.0
    %1956 = vmatprep.subr.mxu0 0.0
    %1957 = vmatpush2.msra.mxu0 0.0
    %1958 = vmatprep.subr.mxu0 0.0
    %1959 = vmatpush2.msra.mxu0 0.0
    %1960 = vmatprep.subr.mxu0 0.0
    %1961 = vmatpush2.msra.mxu0 0.0
    %1962 = vmatprep.subr.mxu0 0.0
    %1963 = vmatpush2.msra.mxu0 0.0
    %1964 = vmatprep.subr.mxu0 0.0
    %1965 = vmatpush2.msra.mxu0 0.0
    %1966 = vmatprep.subr.mxu0 0.0
    %1967 = vmatpush2.msra.mxu0 0.0
    %1968 = vmatprep.subr.mxu0 0.0
    %1969 = vmatpush2.msra.mxu0 0.0
    %1970 = vmatprep.subr.mxu0 0.0
    %1971 = vmatpush2.msra.mxu0 0.0
    %1972 = vmatprep.subr.mxu0 0.0
    %1973 = vmatpush2.msra.mxu0 0.0
    %1974 = vmatprep.subr.mxu0 0.0
    %1975 = vmatpush2.msra.mxu0 0.0
    %1976 = vmatprep.subr.mxu0 0.0
    %1977 = vmatpush2.msra.mxu0 0.0
    %1978 = vmatprep.mubr.f32.mxu0 0.0
    %v1979 = vand.u32 %v1447, 4294901760
    %1980 = vmatmul.mubr.f32.gmra.mxu0 %v1979
    %v1981 = vpop.f32.mrf.mxu0
    %v1982 = vadd.f32 %v1869, %v1981
    %v1983 = vpop.f32.mrf.mxu0
    %1984 = vmatprep.mubr.f32.mxu0 0.0
    %v1985 = vand.u32 %v1450, 4294901760
    %1986 = vmatmul.mubr.f32.gmra.mxu0 %v1985
    %v1987 = vpop.f32.mrf.mxu0
    %v1988 = vadd.f32 %v1877, %v1987
    %v1989 = vpop.f32.mrf.mxu0
    %1990 = vmatprep.mubr.f32.mxu0 0.0
    %v1991 = vand.u32 %v1453, 4294901760
    %1992 = vmatmul.mubr.f32.gmra.mxu0 %v1991
    %v1993 = vpop.f32.mrf.mxu0
    %v1994 = vadd.f32 %v1885, %v1993
    %v1995 = vpop.f32.mrf.mxu0
    %1996 = vmatprep.mubr.f32.mxu0 0.0
    %v1997 = vand.u32 %v1456, 4294901760
    %1998 = vmatmul.mubr.f32.gmra.mxu0 %v1997
    %v1999 = vpop.f32.mrf.mxu0
    %v2000 = vadd.f32 %v1893, %v1999
    %v2001 = vpop.f32.mrf.mxu0
    %2002 = vdwg.mxu0
    %2003 = vmatprep.subr.mxu0 0.0
    %2004 = vmatpush1.msra.mxu0 0.0
    %2005 = vmatprep.subr.mxu0 0.0
    %2006 = vmatpush1.msra.mxu0 0.0
    %2007 = vmatprep.subr.mxu0 0.0
    %2008 = vmatpush1.msra.mxu0 0.0
    %2009 = vmatprep.subr.mxu0 0.0
    %2010 = vmatpush1.msra.mxu0 0.0
    %2011 = vmatprep.subr.mxu0 0.0
    %2012 = vmatpush1.msra.mxu0 0.0
    %2013 = vmatprep.subr.mxu0 0.0
    %2014 = vmatpush1.msra.mxu0 0.0
    %2015 = vmatprep.subr.mxu0 0.0
    %2016 = vmatpush1.msra.mxu0 0.0
    %2017 = vmatprep.subr.mxu0 0.0
    %2018 = vmatpush1.msra.mxu0 0.0
    %2019 = vmatprep.subr.mxu0 0.0
    %2020 = vmatpush1.msra.mxu0 0.0
    %2021 = vmatprep.subr.mxu0 0.0
    %2022 = vmatpush1.msra.mxu0 0.0
    %2023 = vmatprep.subr.mxu0 0.0
    %v2024 = vand.u32 %v35, 4294901760
    %2025 = vmatpush1.msra.mxu0 %v2024
    %2026 = vmatprep.subr.mxu0 0.0
    %v2027 = vand.u32 %v34, 4294901760
    %2028 = vmatpush1.msra.mxu0 %v2027
    %2029 = vmatprep.subr.mxu0 0.0
    %v2030 = vand.u32 %v33, 4294901760
    %2031 = vmatpush1.msra.mxu0 %v2030
    %2032 = vmatprep.subr.mxu0 0.0
    %v2033 = vand.u32 %v32, 4294901760
    %2034 = vmatpush1.msra.mxu0 %v2033
    %2035 = vmatprep.subr.mxu0 0.0
    %v2036 = vand.u32 %v31, 4294901760
    %2037 = vmatpush1.msra.mxu0 %v2036
    %2038 = vmatprep.subr.mxu0 0.0
    %v2039 = vand.u32 %v30, 4294901760
    %2040 = vmatpush1.msra.mxu0 %v2039
    %2041 = vmatprep.subr.mxu0 0.0
    %2042 = vmatpush2.msra.mxu0 0.0
    %2043 = vmatprep.subr.mxu0 0.0
    %2044 = vmatpush2.msra.mxu0 0.0
    %2045 = vmatprep.subr.mxu0 0.0
    %2046 = vmatpush2.msra.mxu0 0.0
    %2047 = vmatprep.subr.mxu0 0.0
    %2048 = vmatpush2.msra.mxu0 0.0
    %2049 = vmatprep.subr.mxu0 0.0
    %2050 = vmatpush2.msra.mxu0 0.0
    %2051 = vmatprep.subr.mxu0 0.0
    %2052 = vmatpush2.msra.mxu0 0.0
    %2053 = vmatprep.subr.mxu0 0.0
    %2054 = vmatpush2.msra.mxu0 0.0
    %2055 = vmatprep.subr.mxu0 0.0
    %2056 = vmatpush2.msra.mxu0 0.0
    %2057 = vmatprep.subr.mxu0 0.0
    %2058 = vmatpush2.msra.mxu0 0.0
    %2059 = vmatprep.subr.mxu0 0.0
    %2060 = vmatpush2.msra.mxu0 0.0
    %2061 = vmatprep.subr.mxu0 0.0
    %2062 = vmatpush2.msra.mxu0 0.0
    %2063 = vmatprep.subr.mxu0 0.0
    %2064 = vmatpush2.msra.mxu0 0.0
    %2065 = vmatprep.subr.mxu0 0.0
    %2066 = vmatpush2.msra.mxu0 0.0
    %2067 = vmatprep.subr.mxu0 0.0
    %2068 = vmatpush2.msra.mxu0 0.0
    %2069 = vmatprep.subr.mxu0 0.0
    %2070 = vmatpush2.msra.mxu0 0.0
    %2071 = vmatprep.subr.mxu0 0.0
    %2072 = vmatpush2.msra.mxu0 0.0
    %2073 = vmatprep.mubr.f32.mxu0 0.0
    %v2074 = vand.u32 %v1447, 4294901760
    %2075 = vmatmul.mubr.f32.gmra.mxu0 %v2074
    %v2076 = vpop.f32.mrf.mxu0
    %v2077 = vadd.f32 %v1982, %v2076
    %v2078 = vpop.f32.mrf.mxu0
    %2079 = vmatprep.mubr.f32.mxu0 0.0
    %v2080 = vand.u32 %v1450, 4294901760
    %2081 = vmatmul.mubr.f32.gmra.mxu0 %v2080
    %v2082 = vpop.f32.mrf.mxu0
    %v2083 = vadd.f32 %v1988, %v2082
    %v2084 = vpop.f32.mrf.mxu0
    %2085 = vmatprep.mubr.f32.mxu0 0.0
    %v2086 = vand.u32 %v1453, 4294901760
    %2087 = vmatmul.mubr.f32.gmra.mxu0 %v2086
    %v2088 = vpop.f32.mrf.mxu0
    %v2089 = vadd.f32 %v1994, %v2088
    %v2090 = vpop.f32.mrf.mxu0
    %2091 = vmatprep.mubr.f32.mxu0 0.0
    %v2092 = vand.u32 %v1456, 4294901760
    %2093 = vmatmul.mubr.f32.gmra.mxu0 %v2092
    %v2094 = vpop.f32.mrf.mxu0
    %v2095 = vadd.f32 %v2000, %v2094
    %v2096 = vpop.f32.mrf.mxu0
    %2097 = vdwg.mxu0
    %v2098 = vmul.f32 %v2077, 0.5
    %v2099 = vmul.f32 %v2083, 0.5
    %v2100 = vmul.f32 %v2089, 0.5
    %v2101 = vmul.f32 %v2095, 0.5
    %v2102 = vmul.f32 %v2077, 0.70710677
    %v2103 = vmul.f32 %v2083, 0.70710677
    %v2104 = vmul.f32 %v2089, 0.70710677
    %v2105 = vmul.f32 %v2095, 0.70710677
    %v2106 = vand.u32 2147483647, %v2102
    %v2107 = vand.u32 2147483647, %v2103
    %v2108 = vand.u32 2147483647, %v2104
    %v2109 = vand.u32 2147483647, %v2105
    %v2110 = vmul.f32 %v2106, 0.3275911
    %v2111 = vmul.f32 %v2107, 0.3275911
    %v2112 = vmul.f32 %v2108, 0.3275911
    %v2113 = vmul.f32 %v2109, 0.3275911
    %v2114 = vadd.f32 %v2110, 1.0
    %v2115 = vadd.f32 %v2111, 1.0
    %v2116 = vadd.f32 %v2112, 1.0
    %v2117 = vadd.f32 %v2113, 1.0
    %v2118 = vrcp.pop %v2114
    %v2119 = vmul.f32 1.0, %v2118
    %v2120 = vrcp.pop %v2115
    %v2121 = vmul.f32 1.0, %v2120
    %v2122 = vrcp.pop %v2116
    %v2123 = vmul.f32 1.0, %v2122
    %v2124 = vrcp.pop %v2117
    %v2125 = vmul.f32 1.0, %v2124
    %v2126 = vmul.f32 %v2119, 1.0614054
    %v2127 = vmul.f32 %v2121, 1.0614054
    %v2128 = vmul.f32 %v2123, 1.0614054
    %v2129 = vmul.f32 %v2125, 1.0614054
    %v2130 = vadd.f32 %v2126, -1.4531521
    %v2131 = vadd.f32 %v2127, -1.4531521
    %v2132 = vadd.f32 %v2128, -1.4531521
    %v2133 = vadd.f32 %v2129, -1.4531521
    %v2134 = vmul.f32 %v2130, %v2119
    %v2135 = vmul.f32 %v2131, %v2121
    %v2136 = vmul.f32 %v2132, %v2123
    %v2137 = vmul.f32 %v2133, %v2125
    %v2138 = vadd.f32 %v2134, 1.4214138
    %v2139 = vadd.f32 %v2135, 1.4214138
    %v2140 = vadd.f32 %v2136, 1.4214138
    %v2141 = vadd.f32 %v2137, 1.4214138
    %v2142 = vmul.f32 %v2138, %v2119
    %v2143 = vmul.f32 %v2139, %v2121
    %v2144 = vmul.f32 %v2140, %v2123
    %v2145 = vmul.f32 %v2141, %v2125
    %v2146 = vadd.f32 %v2142, -0.28449672
    %v2147 = vadd.f32 %v2143, -0.28449672
    %v2148 = vadd.f32 %v2144, -0.28449672
    %v2149 = vadd.f32 %v2145, -0.28449672
    %v2150 = vmul.f32 %v2146, %v2119
    %v2151 = vmul.f32 %v2147, %v2121
    %v2152 = vmul.f32 %v2148, %v2123
    %v2153 = vmul.f32 %v2149, %v2125
    %v2154 = vadd.f32 %v2150, 0.2548296
    %v2155 = vadd.f32 %v2151, 0.2548296
    %v2156 = vadd.f32 %v2152, 0.2548296
    %v2157 = vadd.f32 %v2153, 0.2548296
    %v2158 = vmul.f32 %v2154, %v2119
    %v2159 = vmul.f32 %v2155, %v2121
    %v2160 = vmul.f32 %v2156, %v2123
    %v2161 = vmul.f32 %v2157, %v2125
    %v2162 = vsub.f32 0.0, %v2106
    %v2163 = vsub.f32 0.0, %v2107
    %v2164 = vsub.f32 0.0, %v2108
    %v2165 = vsub.f32 0.0, %v2109
    %v2166 = vmul.f32 %v2162, %v2106
    %v2167 = vmul.f32 %v2163, %v2107
    %v2168 = vmul.f32 %v2164, %v2108
    %v2169 = vmul.f32 %v2165, %v2109
    %v2170 = vmul.f32 %v2166, 1.442695
    %v2171 = vpow.pop %v2170
    %v2172 = vmul.f32 %v2167, 1.442695
    %v2173 = vpow.pop %v2172
    %v2174 = vmul.f32 %v2168, 1.442695
    %v2175 = vpow.pop %v2174
    %v2176 = vmul.f32 %v2169, 1.442695
    %v2177 = vpow.pop %v2176
    %v2178 = vmul.f32 %v2158, %v2171
    %v2179 = vmul.f32 %v2159, %v2173
    %v2180 = vmul.f32 %v2160, %v2175
    %v2181 = vmul.f32 %v2161, %v2177
    %v2182 = vsub.f32 1.0, %v2178
    %v2183 = vsub.f32 1.0, %v2179
    %v2184 = vsub.f32 1.0, %v2180
    %v2185 = vsub.f32 1.0, %v2181
    %vm2186 = vcmp.ge.f32.partialorder %v2102, 0.0
    %vm2187 = vcmp.ge.f32.partialorder %v2103, 0.0
    %vm2188 = vcmp.ge.f32.partialorder %v2104, 0.0
    %vm2189 = vcmp.ge.f32.partialorder %v2105, 0.0
    %v2190 = vsub.f32 0.0, %v2182
    %v2191 = vsub.f32 0.0, %v2183
    %v2192 = vsub.f32 0.0, %v2184
    %v2193 = vsub.f32 0.0, %v2185
    %v2194 = vsel %vm2186, %v2182, %v2190
    %v2195 = vsel %vm2187, %v2183, %v2191
    %v2196 = vsel %vm2188, %v2184, %v2192
    %v2197 = vsel %vm2189, %v2185, %v2193
    %v2198 = vadd.f32 %v2194, 1.0
    %v2199 = vadd.f32 %v2195, 1.0
    %v2200 = vadd.f32 %v2196, 1.0
    %v2201 = vadd.f32 %v2197, 1.0
    %v2202 = vmul.f32 %v2098, %v2198
    %v2203 = vmul.f32 %v2099, %v2199
    %v2204 = vmul.f32 %v2100, %v2200
    %v2205 = vmul.f32 %v2101, %v2201
    %v2206 = vlaneseq
    %v2207 = vshrl.u32 %v2206, 7
    %v2208 = vsub.s32 0, %v2207
    %v2209 = vrot.slane %v39, %v2208
    %v2210 = vmul.f32 %v2202, %v2209
    %v2211 = vmul.f32 %v2203, %v2209
    %v2212 = vmul.f32 %v2204, %v2209
    %v2213 = vmul.f32 %v2205, %v2209
    %v2214 = vsel %vm785, %v2210, 0.0
    %2215 = vadd.xlane.f32.xlu0 %v2214
    %v2216 = vpop.xlane.xlu0 %2215
    %v2217 = vsel %vm785, %v2211, 0.0
    %2218 = vadd.xlane.f32.xlu0 %v2217
    %v2219 = vpop.xlane.xlu0 %2218
    %v2220 = vsel %vm785, %v2212, 0.0
    %2221 = vadd.xlane.f32.xlu0 %v2220
    %v2222 = vpop.xlane.xlu0 %2221
    %v2223 = vsel %vm785, %v2213, 0.0
    %2224 = vadd.xlane.f32.xlu0 %v2223
    %v2225 = vpop.xlane.xlu0 %2224
    %v2226 = vlaneseq
    %v2227 = vshrl.u32 %v2226, 7
    %v2228 = vsub.s32 0, %v2227
    %v2229 = vrot.slane %v40, %v2228
    %v2230 = vadd.f32 %v2216, %v2229
    %v2231 = vadd.f32 %v2219, %v2229
    %v2232 = vadd.f32 %v2222, %v2229
    %v2233 = vadd.f32 %v2225, %v2229
    %v2234 = vld [vmem:[%s1] sm:$0xff]
    %v2235 = vld [vmem:[%s1 + $0x8] sm:$0xff]
    %v2236 = vld [vmem:[%s1 + $0x10] sm:$0xff]
    %v2237 = vld [vmem:[%s1 + $0x18] sm:$0xff]
    %v2238 = vld [vmem:[%s2] sm:$0x1]
    %v2239 = vlaneseq
    %v2240 = vand.u32 %v2239, 127
    %2241 = vset.pattern.permute.xlu0 0
    %2242 = vperm.xlu0 %2241, %v2234
    %v2243 = vpop.permute.xlu0 %2242
    %2244 = vset.pattern.permute.xlu0 0
    %2245 = vperm.xlu0 %2244, %v2235
    %v2246 = vpop.permute.xlu0 %2245
    %2247 = vset.pattern.permute.xlu0 0
    %2248 = vperm.xlu0 %2247, %v2236
    %v2249 = vpop.permute.xlu0 %2248
    %2250 = vset.pattern.permute.xlu0 0
    %2251 = vperm.xlu0 %2250, %v2237
    %v2252 = vpop.permute.xlu0 %2251
    %vm2253 = vcmp.eq.s32.totalorder %v2240, %v2243
    %vm2254 = vcmp.eq.s32.totalorder %v2240, %v2246
    %vm2255 = vcmp.eq.s32.totalorder %v2240, %v2249
    %vm2256 = vcmp.eq.s32.totalorder %v2240, %v2252
    %v2257 = vsel %vm2253, 1, 0
    %v2258 = vsel %vm2254, 1, 0
    %v2259 = vsel %vm2255, 1, 0
    %v2260 = vsel %vm2256, 1, 0
    %v2261 = vcvt.s32.f32 %v2257
    %v2262 = vcvt.s32.f32 %v2258
    %v2263 = vcvt.s32.f32 %v2259
    %v2264 = vcvt.s32.f32 %v2260
    %v2265 = vlaneseq
    %v2266 = vshrl.u32 %v2265, 7
    %v2267 = vadd.s32 %v2266, 8
    %v2268 = vlaneseq
    %v2269 = vshrl.u32 %v2268, 7
    %v2270 = vsub.s32 0, %v2269
    %v2271 = vrot.slane %v2238, %v2270
    %vm2272 = vcmp.eq.s32.totalorder %v2266, %v2271
    %vm2273 = vcmp.eq.s32.totalorder %v2267, %v2271
    %v2274 = vsel %vm2272, 1, 0
    %v2275 = vsel %vm2273, 1, 0
    %v2276 = vcvt.s32.f32 %v2274
    %v2277 = vcvt.s32.f32 %v2275
    %vm2278 = vcmp.eq.s32.totalorder %v2240, 0
    %v2279 = vsub.f32 1.0, %v43
    %v2280 = vsub.f32 1.0, %v44
    %vm2281 = vcmask 64512
    %v2282 = vsel %vm2281, %v43, 0.0
    %2283 = vadd.xlane.f32.xlu0 %v2282
    %v2284 = vpop.xlane.xlu0 %2283
    %v2285 = vsel %vm2281, %v44, 0.0
    %2286 = vadd.xlane.f32.xlu0 %v2285
    %v2287 = vpop.xlane.xlu0 %2286
    %v2288 = vrcp.pop 8.0
    %v2289 = vmul.f32 %v2284, %v2288
    %v2290 = vmul.f32 %v2287, %v2288
    %v2291 = vsel %vm2281, %v45, %v2289
    %v2292 = vsel %vm2281, %v46, %v2290
    %vm2293 = vcmask 130048
    %v2295 = vsel %vm2293, %v2261, 0
    %v2298 = vsel %vm2293, %v2262, 0
    %v2301 = vsel %vm2293, %v2263, 0
    %v2304 = vsel %vm2293, %v2264, 0
    %2306 = vmatprep.subr.mxu0 0.0
    %2307 = vmatpush1.msra.mxu0 0.0
    %2308 = vmatprep.subr.mxu0 0.0
    %2309 = vmatpush1.msra.mxu0 0.0
    %2310 = vmatprep.subr.mxu0 0.0
    %2311 = vmatpush1.msra.mxu0 0.0
    %2312 = vmatprep.subr.mxu0 0.0
    %2313 = vmatpush1.msra.mxu0 0.0
    %2314 = vmatprep.subr.mxu0 0.0
    %2315 = vmatpush1.msra.mxu0 0.0
    %2316 = vmatprep.subr.mxu0 0.0
    %2317 = vmatpush1.msra.mxu0 0.0
    %2318 = vmatprep.subr.mxu0 0.0
    %2319 = vmatpush1.msra.mxu0 0.0
    %2320 = vmatprep.subr.mxu0 0.0
    %2321 = vmatpush1.msra.mxu0 0.0
    %2322 = vmatprep.subr.mxu0 0.0
    %2323 = vmatpush1.msra.mxu0 0.0
    %2324 = vmatprep.subr.mxu0 0.0
    %2325 = vmatpush1.msra.mxu0 0.0
    %2326 = vmatprep.subr.mxu0 0.0
    %2327 = vmatpush1.msra.mxu0 0.0
    %2328 = vmatprep.subr.mxu0 0.0
    %2329 = vmatpush1.msra.mxu0 0.0
    %2330 = vmatprep.subr.mxu0 0.0
    %2331 = vmatpush1.msra.mxu0 0.0
    %2332 = vmatprep.subr.mxu0 0.0
    %2333 = vmatpush1.msra.mxu0 0.0
    %2334 = vmatprep.subr.mxu0 0.0
    %v2335 = vand.u32 %v2292, 4294901760
    %2336 = vmatpush1.msra.mxu0 %v2335
    %2337 = vmatprep.subr.mxu0 0.0
    %v2338 = vand.u32 %v2291, 4294901760
    %2339 = vmatpush1.msra.mxu0 %v2338
    %2340 = vmatprep.subr.mxu0 0.0
    %2341 = vmatpush2.msra.mxu0 0.0
    %2342 = vmatprep.subr.mxu0 0.0
    %2343 = vmatpush2.msra.mxu0 0.0
    %2344 = vmatprep.subr.mxu0 0.0
    %2345 = vmatpush2.msra.mxu0 0.0
    %2346 = vmatprep.subr.mxu0 0.0
    %2347 = vmatpush2.msra.mxu0 0.0
    %2348 = vmatprep.subr.mxu0 0.0
    %2349 = vmatpush2.msra.mxu0 0.0
    %2350 = vmatprep.subr.mxu0 0.0
    %2351 = vmatpush2.msra.mxu0 0.0
    %2352 = vmatprep.subr.mxu0 0.0
    %2353 = vmatpush2.msra.mxu0 0.0
    %2354 = vmatprep.subr.mxu0 0.0
    %2355 = vmatpush2.msra.mxu0 0.0
    %2356 = vmatprep.subr.mxu0 0.0
    %2357 = vmatpush2.msra.mxu0 0.0
    %2358 = vmatprep.subr.mxu0 0.0
    %2359 = vmatpush2.msra.mxu0 0.0
    %2360 = vmatprep.subr.mxu0 0.0
    %2361 = vmatpush2.msra.mxu0 0.0
    %2362 = vmatprep.subr.mxu0 0.0
    %2363 = vmatpush2.msra.mxu0 0.0
    %2364 = vmatprep.subr.mxu0 0.0
    %2365 = vmatpush2.msra.mxu0 0.0
    %2366 = vmatprep.subr.mxu0 0.0
    %2367 = vmatpush2.msra.mxu0 0.0
    %2368 = vmatprep.subr.mxu0 0.0
    %2369 = vmatpush2.msra.mxu0 0.0
    %2370 = vmatprep.subr.mxu0 0.0
    %2371 = vmatpush2.msra.mxu0 0.0
    %2372 = vmatprep.mubr.f32.mxu0 0.0
    %v2373 = vand.u32 %v2295, 4294901760
    %v2374 = vsub.f32 %v2295, %v2373
    %v2375 = vand.u32 %v2374, 4294901760
    %v2376 = vsub.f32 %v2374, %v2375
    %v2377 = vand.u32 %v2376, 4294901760
    %2378 = vmatmul.mubr.f32.gmra.mxu0 %v2377
    %v2379 = vpop.f32.mrf.mxu0
    %v2380 = vadd.f32 0.0, %v2379
    %v2381 = vpop.f32.mrf.mxu0
    %2382 = vmatprep.mubr.f32.mxu0 0.0
    %v2383 = vand.u32 %v2298, 4294901760
    %v2384 = vsub.f32 %v2298, %v2383
    %v2385 = vand.u32 %v2384, 4294901760
    %v2386 = vsub.f32 %v2384, %v2385
    %v2387 = vand.u32 %v2386, 4294901760
    %2388 = vmatmul.mubr.f32.gmra.mxu0 %v2387
    %v2389 = vpop.f32.mrf.mxu0
    %v2390 = vadd.f32 0.0, %v2389
    %v2391 = vpop.f32.mrf.mxu0
    %2392 = vmatprep.mubr.f32.mxu0 0.0
    %v2393 = vand.u32 %v2301, 4294901760
    %v2394 = vsub.f32 %v2301, %v2393
    %v2395 = vand.u32 %v2394, 4294901760
    %v2396 = vsub.f32 %v2394, %v2395
    %v2397 = vand.u32 %v2396, 4294901760
    %2398 = vmatmul.mubr.f32.gmra.mxu0 %v2397
    %v2399 = vpop.f32.mrf.mxu0
    %v2400 = vadd.f32 0.0, %v2399
    %v2401 = vpop.f32.mrf.mxu0
    %2402 = vmatprep.mubr.f32.mxu0 0.0
    %v2403 = vand.u32 %v2304, 4294901760
    %v2404 = vsub.f32 %v2304, %v2403
    %v2405 = vand.u32 %v2404, 4294901760
    %v2406 = vsub.f32 %v2404, %v2405
    %v2407 = vand.u32 %v2406, 4294901760
    %2408 = vmatmul.mubr.f32.gmra.mxu0 %v2407
    %v2409 = vpop.f32.mrf.mxu0
    %v2410 = vadd.f32 0.0, %v2409
    %v2411 = vpop.f32.mrf.mxu0
    %2412 = vdwg.mxu0
    %2413 = vmatprep.subr.mxu0 0.0
    %2414 = vmatpush1.msra.mxu0 0.0
    %2415 = vmatprep.subr.mxu0 0.0
    %2416 = vmatpush1.msra.mxu0 0.0
    %2417 = vmatprep.subr.mxu0 0.0
    %2418 = vmatpush1.msra.mxu0 0.0
    %2419 = vmatprep.subr.mxu0 0.0
    %2420 = vmatpush1.msra.mxu0 0.0
    %2421 = vmatprep.subr.mxu0 0.0
    %2422 = vmatpush1.msra.mxu0 0.0
    %2423 = vmatprep.subr.mxu0 0.0
    %2424 = vmatpush1.msra.mxu0 0.0
    %2425 = vmatprep.subr.mxu0 0.0
    %2426 = vmatpush1.msra.mxu0 0.0
    %2427 = vmatprep.subr.mxu0 0.0
    %2428 = vmatpush1.msra.mxu0 0.0
    %2429 = vmatprep.subr.mxu0 0.0
    %2430 = vmatpush1.msra.mxu0 0.0
    %2431 = vmatprep.subr.mxu0 0.0
    %2432 = vmatpush1.msra.mxu0 0.0
    %2433 = vmatprep.subr.mxu0 0.0
    %2434 = vmatpush1.msra.mxu0 0.0
    %2435 = vmatprep.subr.mxu0 0.0
    %2436 = vmatpush1.msra.mxu0 0.0
    %2437 = vmatprep.subr.mxu0 0.0
    %2438 = vmatpush1.msra.mxu0 0.0
    %2439 = vmatprep.subr.mxu0 0.0
    %2440 = vmatpush1.msra.mxu0 0.0
    %2441 = vmatprep.subr.mxu0 0.0
    %v2442 = vand.u32 %v2292, 4294901760
    %v2443 = vsub.f32 %v2292, %v2442
    %v2444 = vand.u32 %v2443, 4294901760
    %v2445 = vsub.f32 %v2443, %v2444
    %v2446 = vand.u32 %v2445, 4294901760
    %2447 = vmatpush1.msra.mxu0 %v2446
    %2448 = vmatprep.subr.mxu0 0.0
    %v2449 = vand.u32 %v2291, 4294901760
    %v2450 = vsub.f32 %v2291, %v2449
    %v2451 = vand.u32 %v2450, 4294901760
    %v2452 = vsub.f32 %v2450, %v2451
    %v2453 = vand.u32 %v2452, 4294901760
    %2454 = vmatpush1.msra.mxu0 %v2453
    %2455 = vmatprep.subr.mxu0 0.0
    %2456 = vmatpush2.msra.mxu0 0.0
    %2457 = vmatprep.subr.mxu0 0.0
    %2458 = vmatpush2.msra.mxu0 0.0
    %2459 = vmatprep.subr.mxu0 0.0
    %2460 = vmatpush2.msra.mxu0 0.0
    %2461 = vmatprep.subr.mxu0 0.0
    %2462 = vmatpush2.msra.mxu0 0.0
    %2463 = vmatprep.subr.mxu0 0.0
    %2464 = vmatpush2.msra.mxu0 0.0
    %2465 = vmatprep.subr.mxu0 0.0
    %2466 = vmatpush2.msra.mxu0 0.0
    %2467 = vmatprep.subr.mxu0 0.0
    %2468 = vmatpush2.msra.mxu0 0.0
    %2469 = vmatprep.subr.mxu0 0.0
    %2470 = vmatpush2.msra.mxu0 0.0
    %2471 = vmatprep.subr.mxu0 0.0
    %2472 = vmatpush2.msra.mxu0 0.0
    %2473 = vmatprep.subr.mxu0 0.0
    %2474 = vmatpush2.msra.mxu0 0.0
    %2475 = vmatprep.subr.mxu0 0.0
    %2476 = vmatpush2.msra.mxu0 0.0
    %2477 = vmatprep.subr.mxu0 0.0
    %2478 = vmatpush2.msra.mxu0 0.0
    %2479 = vmatprep.subr.mxu0 0.0
    %2480 = vmatpush2.msra.mxu0 0.0
    %2481 = vmatprep.subr.mxu0 0.0
    %2482 = vmatpush2.msra.mxu0 0.0
    %2483 = vmatprep.subr.mxu0 0.0
    %2484 = vmatpush2.msra.mxu0 0.0
    %2485 = vmatprep.subr.mxu0 0.0
    %2486 = vmatpush2.msra.mxu0 0.0
    %2487 = vmatprep.mubr.f32.mxu0 0.0
    %v2488 = vand.u32 %v2295, 4294901760
    %2489 = vmatmul.mubr.f32.gmra.mxu0 %v2488
    %v2490 = vpop.f32.mrf.mxu0
    %v2491 = vadd.f32 %v2380, %v2490
    %v2492 = vpop.f32.mrf.mxu0
    %2493 = vmatprep.mubr.f32.mxu0 0.0
    %v2494 = vand.u32 %v2298, 4294901760
    %2495 = vmatmul.mubr.f32.gmra.mxu0 %v2494
    %v2496 = vpop.f32.mrf.mxu0
    %v2497 = vadd.f32 %v2390, %v2496
    %v2498 = vpop.f32.mrf.mxu0
    %2499 = vmatprep.mubr.f32.mxu0 0.0
    %v2500 = vand.u32 %v2301, 4294901760
    %2501 = vmatmul.mubr.f32.gmra.mxu0 %v2500
    %v2502 = vpop.f32.mrf.mxu0
    %v2503 = vadd.f32 %v2400, %v2502
    %v2504 = vpop.f32.mrf.mxu0
    %2505 = vmatprep.mubr.f32.mxu0 0.0
    %v2506 = vand.u32 %v2304, 4294901760
    %2507 = vmatmul.mubr.f32.gmra.mxu0 %v2506
    %v2508 = vpop.f32.mrf.mxu0
    %v2509 = vadd.f32 %v2410, %v2508
    %v2510 = vpop.f32.mrf.mxu0
    %2511 = vdwg.mxu0
    %2512 = vmatprep.subr.mxu0 0.0
    %2513 = vmatpush1.msra.mxu0 0.0
    %2514 = vmatprep.subr.mxu0 0.0
    %2515 = vmatpush1.msra.mxu0 0.0
    %2516 = vmatprep.subr.mxu0 0.0
    %2517 = vmatpush1.msra.mxu0 0.0
    %2518 = vmatprep.subr.mxu0 0.0
    %2519 = vmatpush1.msra.mxu0 0.0
    %2520 = vmatprep.subr.mxu0 0.0
    %2521 = vmatpush1.msra.mxu0 0.0
    %2522 = vmatprep.subr.mxu0 0.0
    %2523 = vmatpush1.msra.mxu0 0.0
    %2524 = vmatprep.subr.mxu0 0.0
    %2525 = vmatpush1.msra.mxu0 0.0
    %2526 = vmatprep.subr.mxu0 0.0
    %2527 = vmatpush1.msra.mxu0 0.0
    %2528 = vmatprep.subr.mxu0 0.0
    %2529 = vmatpush1.msra.mxu0 0.0
    %2530 = vmatprep.subr.mxu0 0.0
    %2531 = vmatpush1.msra.mxu0 0.0
    %2532 = vmatprep.subr.mxu0 0.0
    %2533 = vmatpush1.msra.mxu0 0.0
    %2534 = vmatprep.subr.mxu0 0.0
    %2535 = vmatpush1.msra.mxu0 0.0
    %2536 = vmatprep.subr.mxu0 0.0
    %2537 = vmatpush1.msra.mxu0 0.0
    %2538 = vmatprep.subr.mxu0 0.0
    %2539 = vmatpush1.msra.mxu0 0.0
    %2540 = vmatprep.subr.mxu0 0.0
    %v2541 = vand.u32 %v2292, 4294901760
    %v2542 = vsub.f32 %v2292, %v2541
    %2543 = vmatpush1.msra.mxu0 %v2542
    %2544 = vmatprep.subr.mxu0 0.0
    %v2545 = vand.u32 %v2291, 4294901760
    %v2546 = vsub.f32 %v2291, %v2545
    %2547 = vmatpush1.msra.mxu0 %v2546
    %2548 = vmatprep.subr.mxu0 0.0
    %2549 = vmatpush2.msra.mxu0 0.0
    %2550 = vmatprep.subr.mxu0 0.0
    %2551 = vmatpush2.msra.mxu0 0.0
    %2552 = vmatprep.subr.mxu0 0.0
    %2553 = vmatpush2.msra.mxu0 0.0
    %2554 = vmatprep.subr.mxu0 0.0
    %2555 = vmatpush2.msra.mxu0 0.0
    %2556 = vmatprep.subr.mxu0 0.0
    %2557 = vmatpush2.msra.mxu0 0.0
    %2558 = vmatprep.subr.mxu0 0.0
    %2559 = vmatpush2.msra.mxu0 0.0
    %2560 = vmatprep.subr.mxu0 0.0
    %2561 = vmatpush2.msra.mxu0 0.0
    %2562 = vmatprep.subr.mxu0 0.0
    %2563 = vmatpush2.msra.mxu0 0.0
    %2564 = vmatprep.subr.mxu0 0.0
    %2565 = vmatpush2.msra.mxu0 0.0
    %2566 = vmatprep.subr.mxu0 0.0
    %2567 = vmatpush2.msra.mxu0 0.0
    %2568 = vmatprep.subr.mxu0 0.0
    %2569 = vmatpush2.msra.mxu0 0.0
    %2570 = vmatprep.subr.mxu0 0.0
    %2571 = vmatpush2.msra.mxu0 0.0
    %2572 = vmatprep.subr.mxu0 0.0
    %2573 = vmatpush2.msra.mxu0 0.0
    %2574 = vmatprep.subr.mxu0 0.0
    %2575 = vmatpush2.msra.mxu0 0.0
    %2576 = vmatprep.subr.mxu0 0.0
    %2577 = vmatpush2.msra.mxu0 0.0
    %2578 = vmatprep.subr.mxu0 0.0
    %2579 = vmatpush2.msra.mxu0 0.0
    %2580 = vmatprep.mubr.f32.mxu0 0.0
    %v2581 = vand.u32 %v2295, 4294901760
    %v2582 = vsub.f32 %v2295, %v2581
    %2583 = vmatmul.mubr.f32.gmra.mxu0 %v2582
    %v2584 = vpop.f32.mrf.mxu0
    %v2585 = vadd.f32 %v2491, %v2584
    %v2586 = vpop.f32.mrf.mxu0
    %2587 = vmatprep.mubr.f32.mxu0 0.0
    %v2588 = vand.u32 %v2298, 4294901760
    %v2589 = vsub.f32 %v2298, %v2588
    %2590 = vmatmul.mubr.f32.gmra.mxu0 %v2589
    %v2591 = vpop.f32.mrf.mxu0
    %v2592 = vadd.f32 %v2497, %v2591
    %v2593 = vpop.f32.mrf.mxu0
    %2594 = vmatprep.mubr.f32.mxu0 0.0
    %v2595 = vand.u32 %v2301, 4294901760
    %v2596 = vsub.f32 %v2301, %v2595
    %2597 = vmatmul.mubr.f32.gmra.mxu0 %v2596
    %v2598 = vpop.f32.mrf.mxu0
    %v2599 = vadd.f32 %v2503, %v2598
    %v2600 = vpop.f32.mrf.mxu0
    %2601 = vmatprep.mubr.f32.mxu0 0.0
    %v2602 = vand.u32 %v2304, 4294901760
    %v2603 = vsub.f32 %v2304, %v2602
    %2604 = vmatmul.mubr.f32.gmra.mxu0 %v2603
    %v2605 = vpop.f32.mrf.mxu0
    %v2606 = vadd.f32 %v2509, %v2605
    %v2607 = vpop.f32.mrf.mxu0
    %2608 = vdwg.mxu0
    %2609 = vmatprep.subr.mxu0 0.0
    %2610 = vmatpush1.msra.mxu0 0.0
    %2611 = vmatprep.subr.mxu0 0.0
    %2612 = vmatpush1.msra.mxu0 0.0
    %2613 = vmatprep.subr.mxu0 0.0
    %2614 = vmatpush1.msra.mxu0 0.0
    %2615 = vmatprep.subr.mxu0 0.0
    %2616 = vmatpush1.msra.mxu0 0.0
    %2617 = vmatprep.subr.mxu0 0.0
    %2618 = vmatpush1.msra.mxu0 0.0
    %2619 = vmatprep.subr.mxu0 0.0
    %2620 = vmatpush1.msra.mxu0 0.0
    %2621 = vmatprep.subr.mxu0 0.0
    %2622 = vmatpush1.msra.mxu0 0.0
    %2623 = vmatprep.subr.mxu0 0.0
    %2624 = vmatpush1.msra.mxu0 0.0
    %2625 = vmatprep.subr.mxu0 0.0
    %2626 = vmatpush1.msra.mxu0 0.0
    %2627 = vmatprep.subr.mxu0 0.0
    %2628 = vmatpush1.msra.mxu0 0.0
    %2629 = vmatprep.subr.mxu0 0.0
    %2630 = vmatpush1.msra.mxu0 0.0
    %2631 = vmatprep.subr.mxu0 0.0
    %2632 = vmatpush1.msra.mxu0 0.0
    %2633 = vmatprep.subr.mxu0 0.0
    %2634 = vmatpush1.msra.mxu0 0.0
    %2635 = vmatprep.subr.mxu0 0.0
    %2636 = vmatpush1.msra.mxu0 0.0
    %2637 = vmatprep.subr.mxu0 0.0
    %v2638 = vand.u32 %v2292, 4294901760
    %2639 = vmatpush1.msra.mxu0 %v2638
    %2640 = vmatprep.subr.mxu0 0.0
    %v2641 = vand.u32 %v2291, 4294901760
    %2642 = vmatpush1.msra.mxu0 %v2641
    %2643 = vmatprep.subr.mxu0 0.0
    %2644 = vmatpush2.msra.mxu0 0.0
    %2645 = vmatprep.subr.mxu0 0.0
    %2646 = vmatpush2.msra.mxu0 0.0
    %2647 = vmatprep.subr.mxu0 0.0
    %2648 = vmatpush2.msra.mxu0 0.0
    %2649 = vmatprep.subr.mxu0 0.0
    %2650 = vmatpush2.msra.mxu0 0.0
    %2651 = vmatprep.subr.mxu0 0.0
    %2652 = vmatpush2.msra.mxu0 0.0
    %2653 = vmatprep.subr.mxu0 0.0
    %2654 = vmatpush2.msra.mxu0 0.0
    %2655 = vmatprep.subr.mxu0 0.0
    %2656 = vmatpush2.msra.mxu0 0.0
    %2657 = vmatprep.subr.mxu0 0.0
    %2658 = vmatpush2.msra.mxu0 0.0
    %2659 = vmatprep.subr.mxu0 0.0
    %2660 = vmatpush2.msra.mxu0 0.0
    %2661 = vmatprep.subr.mxu0 0.0
    %2662 = vmatpush2.msra.mxu0 0.0
    %2663 = vmatprep.subr.mxu0 0.0
    %2664 = vmatpush2.msra.mxu0 0.0
    %2665 = vmatprep.subr.mxu0 0.0
    %2666 = vmatpush2.msra.mxu0 0.0
    %2667 = vmatprep.subr.mxu0 0.0
    %2668 = vmatpush2.msra.mxu0 0.0
    %2669 = vmatprep.subr.mxu0 0.0
    %2670 = vmatpush2.msra.mxu0 0.0
    %2671 = vmatprep.subr.mxu0 0.0
    %2672 = vmatpush2.msra.mxu0 0.0
    %2673 = vmatprep.subr.mxu0 0.0
    %2674 = vmatpush2.msra.mxu0 0.0
    %2675 = vmatprep.mubr.f32.mxu0 0.0
    %v2676 = vand.u32 %v2295, 4294901760
    %v2677 = vsub.f32 %v2295, %v2676
    %v2678 = vand.u32 %v2677, 4294901760
    %2679 = vmatmul.mubr.f32.gmra.mxu0 %v2678
    %v2680 = vpop.f32.mrf.mxu0
    %v2681 = vadd.f32 %v2585, %v2680
    %v2682 = vpop.f32.mrf.mxu0
    %2683 = vmatprep.mubr.f32.mxu0 0.0
    %v2684 = vand.u32 %v2298, 4294901760
    %v2685 = vsub.f32 %v2298, %v2684
    %v2686 = vand.u32 %v2685, 4294901760
    %2687 = vmatmul.mubr.f32.gmra.mxu0 %v2686
    %v2688 = vpop.f32.mrf.mxu0
    %v2689 = vadd.f32 %v2592, %v2688
    %v2690 = vpop.f32.mrf.mxu0
    %2691 = vmatprep.mubr.f32.mxu0 0.0
    %v2692 = vand.u32 %v2301, 4294901760
    %v2693 = vsub.f32 %v2301, %v2692
    %v2694 = vand.u32 %v2693, 4294901760
    %2695 = vmatmul.mubr.f32.gmra.mxu0 %v2694
    %v2696 = vpop.f32.mrf.mxu0
    %v2697 = vadd.f32 %v2599, %v2696
    %v2698 = vpop.f32.mrf.mxu0
    %2699 = vmatprep.mubr.f32.mxu0 0.0
    %v2700 = vand.u32 %v2304, 4294901760
    %v2701 = vsub.f32 %v2304, %v2700
    %v2702 = vand.u32 %v2701, 4294901760
    %2703 = vmatmul.mubr.f32.gmra.mxu0 %v2702
    %v2704 = vpop.f32.mrf.mxu0
    %v2705 = vadd.f32 %v2606, %v2704
    %v2706 = vpop.f32.mrf.mxu0
    %2707 = vdwg.mxu0
    %2708 = vmatprep.subr.mxu0 0.0
    %2709 = vmatpush1.msra.mxu0 0.0
    %2710 = vmatprep.subr.mxu0 0.0
    %2711 = vmatpush1.msra.mxu0 0.0
    %2712 = vmatprep.subr.mxu0 0.0
    %2713 = vmatpush1.msra.mxu0 0.0
    %2714 = vmatprep.subr.mxu0 0.0
    %2715 = vmatpush1.msra.mxu0 0.0
    %2716 = vmatprep.subr.mxu0 0.0
    %2717 = vmatpush1.msra.mxu0 0.0
    %2718 = vmatprep.subr.mxu0 0.0
    %2719 = vmatpush1.msra.mxu0 0.0
    %2720 = vmatprep.subr.mxu0 0.0
    %2721 = vmatpush1.msra.mxu0 0.0
    %2722 = vmatprep.subr.mxu0 0.0
    %2723 = vmatpush1.msra.mxu0 0.0
    %2724 = vmatprep.subr.mxu0 0.0
    %2725 = vmatpush1.msra.mxu0 0.0
    %2726 = vmatprep.subr.mxu0 0.0
    %2727 = vmatpush1.msra.mxu0 0.0
    %2728 = vmatprep.subr.mxu0 0.0
    %2729 = vmatpush1.msra.mxu0 0.0
    %2730 = vmatprep.subr.mxu0 0.0
    %2731 = vmatpush1.msra.mxu0 0.0
    %2732 = vmatprep.subr.mxu0 0.0
    %2733 = vmatpush1.msra.mxu0 0.0
    %2734 = vmatprep.subr.mxu0 0.0
    %2735 = vmatpush1.msra.mxu0 0.0
    %2736 = vmatprep.subr.mxu0 0.0
    %v2737 = vand.u32 %v2292, 4294901760
    %v2738 = vsub.f32 %v2292, %v2737
    %v2739 = vand.u32 %v2738, 4294901760
    %2740 = vmatpush1.msra.mxu0 %v2739
    %2741 = vmatprep.subr.mxu0 0.0
    %v2742 = vand.u32 %v2291, 4294901760
    %v2743 = vsub.f32 %v2291, %v2742
    %v2744 = vand.u32 %v2743, 4294901760
    %2745 = vmatpush1.msra.mxu0 %v2744
    %2746 = vmatprep.subr.mxu0 0.0
    %2747 = vmatpush2.msra.mxu0 0.0
    %2748 = vmatprep.subr.mxu0 0.0
    %2749 = vmatpush2.msra.mxu0 0.0
    %2750 = vmatprep.subr.mxu0 0.0
    %2751 = vmatpush2.msra.mxu0 0.0
    %2752 = vmatprep.subr.mxu0 0.0
    %2753 = vmatpush2.msra.mxu0 0.0
    %2754 = vmatprep.subr.mxu0 0.0
    %2755 = vmatpush2.msra.mxu0 0.0
    %2756 = vmatprep.subr.mxu0 0.0
    %2757 = vmatpush2.msra.mxu0 0.0
    %2758 = vmatprep.subr.mxu0 0.0
    %2759 = vmatpush2.msra.mxu0 0.0
    %2760 = vmatprep.subr.mxu0 0.0
    %2761 = vmatpush2.msra.mxu0 0.0
    %2762 = vmatprep.subr.mxu0 0.0
    %2763 = vmatpush2.msra.mxu0 0.0
    %2764 = vmatprep.subr.mxu0 0.0
    %2765 = vmatpush2.msra.mxu0 0.0
    %2766 = vmatprep.subr.mxu0 0.0
    %2767 = vmatpush2.msra.mxu0 0.0
    %2768 = vmatprep.subr.mxu0 0.0
    %2769 = vmatpush2.msra.mxu0 0.0
    %2770 = vmatprep.subr.mxu0 0.0
    %2771 = vmatpush2.msra.mxu0 0.0
    %2772 = vmatprep.subr.mxu0 0.0
    %2773 = vmatpush2.msra.mxu0 0.0
    %2774 = vmatprep.subr.mxu0 0.0
    %2775 = vmatpush2.msra.mxu0 0.0
    %2776 = vmatprep.subr.mxu0 0.0
    %2777 = vmatpush2.msra.mxu0 0.0
    %2778 = vmatprep.mubr.f32.mxu0 0.0
    %v2779 = vand.u32 %v2295, 4294901760
    %2780 = vmatmul.mubr.f32.gmra.mxu0 %v2779
    %v2781 = vpop.f32.mrf.mxu0
    %v2782 = vadd.f32 %v2681, %v2781
    %v2783 = vpop.f32.mrf.mxu0
    %2784 = vmatprep.mubr.f32.mxu0 0.0
    %v2785 = vand.u32 %v2298, 4294901760
    %2786 = vmatmul.mubr.f32.gmra.mxu0 %v2785
    %v2787 = vpop.f32.mrf.mxu0
    %v2788 = vadd.f32 %v2689, %v2787
    %v2789 = vpop.f32.mrf.mxu0
    %2790 = vmatprep.mubr.f32.mxu0 0.0
    %v2791 = vand.u32 %v2301, 4294901760
    %2792 = vmatmul.mubr.f32.gmra.mxu0 %v2791
    %v2793 = vpop.f32.mrf.mxu0
    %v2794 = vadd.f32 %v2697, %v2793
    %v2795 = vpop.f32.mrf.mxu0
    %2796 = vmatprep.mubr.f32.mxu0 0.0
    %v2797 = vand.u32 %v2304, 4294901760
    %2798 = vmatmul.mubr.f32.gmra.mxu0 %v2797
    %v2799 = vpop.f32.mrf.mxu0
    %v2800 = vadd.f32 %v2705, %v2799
    %v2801 = vpop.f32.mrf.mxu0
    %2802 = vdwg.mxu0
    %2803 = vmatprep.subr.mxu0 0.0
    %2804 = vmatpush1.msra.mxu0 0.0
    %2805 = vmatprep.subr.mxu0 0.0
    %2806 = vmatpush1.msra.mxu0 0.0
    %2807 = vmatprep.subr.mxu0 0.0
    %2808 = vmatpush1.msra.mxu0 0.0
    %2809 = vmatprep.subr.mxu0 0.0
    %2810 = vmatpush1.msra.mxu0 0.0
    %2811 = vmatprep.subr.mxu0 0.0
    %2812 = vmatpush1.msra.mxu0 0.0
    %2813 = vmatprep.subr.mxu0 0.0
    %2814 = vmatpush1.msra.mxu0 0.0
    %2815 = vmatprep.subr.mxu0 0.0
    %2816 = vmatpush1.msra.mxu0 0.0
    %2817 = vmatprep.subr.mxu0 0.0
    %2818 = vmatpush1.msra.mxu0 0.0
    %2819 = vmatprep.subr.mxu0 0.0
    %2820 = vmatpush1.msra.mxu0 0.0
    %2821 = vmatprep.subr.mxu0 0.0
    %2822 = vmatpush1.msra.mxu0 0.0
    %2823 = vmatprep.subr.mxu0 0.0
    %2824 = vmatpush1.msra.mxu0 0.0
    %2825 = vmatprep.subr.mxu0 0.0
    %2826 = vmatpush1.msra.mxu0 0.0
    %2827 = vmatprep.subr.mxu0 0.0
    %2828 = vmatpush1.msra.mxu0 0.0
    %2829 = vmatprep.subr.mxu0 0.0
    %2830 = vmatpush1.msra.mxu0 0.0
    %2831 = vmatprep.subr.mxu0 0.0
    %v2832 = vand.u32 %v2292, 4294901760
    %2833 = vmatpush1.msra.mxu0 %v2832
    %2834 = vmatprep.subr.mxu0 0.0
    %v2835 = vand.u32 %v2291, 4294901760
    %2836 = vmatpush1.msra.mxu0 %v2835
    %2837 = vmatprep.subr.mxu0 0.0
    %2838 = vmatpush2.msra.mxu0 0.0
    %2839 = vmatprep.subr.mxu0 0.0
    %2840 = vmatpush2.msra.mxu0 0.0
    %2841 = vmatprep.subr.mxu0 0.0
    %2842 = vmatpush2.msra.mxu0 0.0
    %2843 = vmatprep.subr.mxu0 0.0
    %2844 = vmatpush2.msra.mxu0 0.0
    %2845 = vmatprep.subr.mxu0 0.0
    %2846 = vmatpush2.msra.mxu0 0.0
    %2847 = vmatprep.subr.mxu0 0.0
    %2848 = vmatpush2.msra.mxu0 0.0
    %2849 = vmatprep.subr.mxu0 0.0
    %2850 = vmatpush2.msra.mxu0 0.0
    %2851 = vmatprep.subr.mxu0 0.0
    %2852 = vmatpush2.msra.mxu0 0.0
    %2853 = vmatprep.subr.mxu0 0.0
    %2854 = vmatpush2.msra.mxu0 0.0
    %2855 = vmatprep.subr.mxu0 0.0
    %2856 = vmatpush2.msra.mxu0 0.0
    %2857 = vmatprep.subr.mxu0 0.0
    %2858 = vmatpush2.msra.mxu0 0.0
    %2859 = vmatprep.subr.mxu0 0.0
    %2860 = vmatpush2.msra.mxu0 0.0
    %2861 = vmatprep.subr.mxu0 0.0
    %2862 = vmatpush2.msra.mxu0 0.0
    %2863 = vmatprep.subr.mxu0 0.0
    %2864 = vmatpush2.msra.mxu0 0.0
    %2865 = vmatprep.subr.mxu0 0.0
    %2866 = vmatpush2.msra.mxu0 0.0
    %2867 = vmatprep.subr.mxu0 0.0
    %2868 = vmatpush2.msra.mxu0 0.0
    %2869 = vmatprep.mubr.f32.mxu0 0.0
    %v2870 = vand.u32 %v2295, 4294901760
    %2871 = vmatmul.mubr.f32.gmra.mxu0 %v2870
    %v2872 = vpop.f32.mrf.mxu0
    %v2873 = vadd.f32 %v2782, %v2872
    %v2874 = vpop.f32.mrf.mxu0
    %2875 = vmatprep.mubr.f32.mxu0 0.0
    %v2876 = vand.u32 %v2298, 4294901760
    %2877 = vmatmul.mubr.f32.gmra.mxu0 %v2876
    %v2878 = vpop.f32.mrf.mxu0
    %v2879 = vadd.f32 %v2788, %v2878
    %v2880 = vpop.f32.mrf.mxu0
    %2881 = vmatprep.mubr.f32.mxu0 0.0
    %v2882 = vand.u32 %v2301, 4294901760
    %2883 = vmatmul.mubr.f32.gmra.mxu0 %v2882
    %v2884 = vpop.f32.mrf.mxu0
    %v2885 = vadd.f32 %v2794, %v2884
    %v2886 = vpop.f32.mrf.mxu0
    %2887 = vmatprep.mubr.f32.mxu0 0.0
    %v2888 = vand.u32 %v2304, 4294901760
    %2889 = vmatmul.mubr.f32.gmra.mxu0 %v2888
    %v2890 = vpop.f32.mrf.mxu0
    %v2891 = vadd.f32 %v2800, %v2890
    %v2892 = vpop.f32.mrf.mxu0
    %2893 = vdwg.mxu0
    %2898 = vrot.lane.b32.xlu0 %v2230, 4
    %v2899 = vpop.permute.xlu0 %2898
    %2900 = vrot.lane.b32.xlu0 %v2231, 4
    %v2901 = vpop.permute.xlu0 %2900
    %2902 = vrot.lane.b32.xlu0 %v2232, 4
    %v2903 = vpop.permute.xlu0 %2902
    %2904 = vrot.lane.b32.xlu0 %v2233, 4
    %v2905 = vpop.permute.xlu0 %2904
    %v2910 = vmul.f32 %v2873, %v2899
    %v2911 = vmul.f32 %v2879, %v2901
    %v2912 = vmul.f32 %v2885, %v2903
    %v2913 = vmul.f32 %v2891, %v2905
    %v2914 = vxor.u32 %v2910, 2147483648
    %v2915 = vxor.u32 %v2911, 2147483648
    %v2916 = vxor.u32 %v2912, 2147483648
    %v2917 = vxor.u32 %v2913, 2147483648
    %v2918 = vmul.f32 %v2914, 1.442695
    %v2919 = vpow.pop %v2918
    %v2920 = vmul.f32 %v2915, 1.442695
    %v2921 = vpow.pop %v2920
    %v2922 = vmul.f32 %v2916, 1.442695
    %v2923 = vpow.pop %v2922
    %v2924 = vmul.f32 %v2917, 1.442695
    %v2925 = vpow.pop %v2924
    %v2926 = vadd.f32 %v2919, 1.0
    %v2927 = vadd.f32 %v2921, 1.0
    %v2928 = vadd.f32 %v2923, 1.0
    %v2929 = vadd.f32 %v2925, 1.0
    %v2930 = vrcp.pop %v2926
    %v2931 = vmul.f32 1.0, %v2930
    %v2932 = vrcp.pop %v2927
    %v2933 = vmul.f32 1.0, %v2932
    %v2934 = vrcp.pop %v2928
    %v2935 = vmul.f32 1.0, %v2934
    %v2936 = vrcp.pop %v2929
    %v2937 = vmul.f32 1.0, %v2936
    %2939 = vset.pattern.permute.xlu0 8
    %2940 = vperm.xlu0 %2939, %v2931
    %v2941 = vpop.permute.xlu0 %2940
    %2944 = vset.pattern.permute.xlu0 8
    %2945 = vperm.xlu0 %2944, %v2933
    %v2946 = vpop.permute.xlu0 %2945
    %2949 = vset.pattern.permute.xlu0 8
    %2950 = vperm.xlu0 %2949, %v2935
    %v2951 = vpop.permute.xlu0 %2950
    %2954 = vset.pattern.permute.xlu0 8
    %2955 = vperm.xlu0 %2954, %v2937
    %v2956 = vpop.permute.xlu0 %2955
    %v2958 = vmul.f32 %v2873, %v2941
    %v2959 = vmul.f32 %v2879, %v2946
    %v2960 = vmul.f32 %v2885, %v2951
    %v2961 = vmul.f32 %v2891, %v2956
    %vm2962 = vcmask 261120
    %v2964 = vsel %vm2962, %v2276, 0
    %v2967 = vsel %vm2962, %v2277, 0
    %2969 = vmatprep.subr.mxu0 0.0
    %2970 = vmatpush1.msra.mxu0 0.0
    %2971 = vmatprep.subr.mxu0 0.0
    %2972 = vmatpush1.msra.mxu0 0.0
    %2973 = vmatprep.subr.mxu0 0.0
    %2974 = vmatpush1.msra.mxu0 0.0
    %2975 = vmatprep.subr.mxu0 0.0
    %2976 = vmatpush1.msra.mxu0 0.0
    %2977 = vmatprep.subr.mxu0 0.0
    %2978 = vmatpush1.msra.mxu0 0.0
    %2979 = vmatprep.subr.mxu0 0.0
    %2980 = vmatpush1.msra.mxu0 0.0
    %2981 = vmatprep.subr.mxu0 0.0
    %2982 = vmatpush1.msra.mxu0 0.0
    %2983 = vmatprep.subr.mxu0 0.0
    %2984 = vmatpush1.msra.mxu0 0.0
    %2985 = vmatprep.subr.mxu0 0.0
    %2986 = vmatpush1.msra.mxu0 0.0
    %2987 = vmatprep.subr.mxu0 0.0
    %2988 = vmatpush1.msra.mxu0 0.0
    %2989 = vmatprep.subr.mxu0 0.0
    %2990 = vmatpush1.msra.mxu0 0.0
    %2991 = vmatprep.subr.mxu0 0.0
    %2992 = vmatpush1.msra.mxu0 0.0
    %2993 = vmatprep.subr.mxu0 0.0
    %v2994 = vand.u32 %v2961, 4294901760
    %2995 = vmatpush1.msra.mxu0 %v2994
    %2996 = vmatprep.subr.mxu0 0.0
    %v2997 = vand.u32 %v2960, 4294901760
    %2998 = vmatpush1.msra.mxu0 %v2997
    %2999 = vmatprep.subr.mxu0 0.0
    %v3000 = vand.u32 %v2959, 4294901760
    %3001 = vmatpush1.msra.mxu0 %v3000
    %3002 = vmatprep.subr.mxu0 0.0
    %v3003 = vand.u32 %v2958, 4294901760
    %3004 = vmatpush1.msra.mxu0 %v3003
    %3005 = vmatprep.subr.mxu0 0.0
    %3006 = vmatpush2.msra.mxu0 0.0
    %3007 = vmatprep.subr.mxu0 0.0
    %3008 = vmatpush2.msra.mxu0 0.0
    %3009 = vmatprep.subr.mxu0 0.0
    %3010 = vmatpush2.msra.mxu0 0.0
    %3011 = vmatprep.subr.mxu0 0.0
    %3012 = vmatpush2.msra.mxu0 0.0
    %3013 = vmatprep.subr.mxu0 0.0
    %3014 = vmatpush2.msra.mxu0 0.0
    %3015 = vmatprep.subr.mxu0 0.0
    %3016 = vmatpush2.msra.mxu0 0.0
    %3017 = vmatprep.subr.mxu0 0.0
    %3018 = vmatpush2.msra.mxu0 0.0
    %3019 = vmatprep.subr.mxu0 0.0
    %3020 = vmatpush2.msra.mxu0 0.0
    %3021 = vmatprep.subr.mxu0 0.0
    %3022 = vmatpush2.msra.mxu0 0.0
    %3023 = vmatprep.subr.mxu0 0.0
    %3024 = vmatpush2.msra.mxu0 0.0
    %3025 = vmatprep.subr.mxu0 0.0
    %3026 = vmatpush2.msra.mxu0 0.0
    %3027 = vmatprep.subr.mxu0 0.0
    %3028 = vmatpush2.msra.mxu0 0.0
    %3029 = vmatprep.subr.mxu0 0.0
    %3030 = vmatpush2.msra.mxu0 0.0
    %3031 = vmatprep.subr.mxu0 0.0
    %3032 = vmatpush2.msra.mxu0 0.0
    %3033 = vmatprep.subr.mxu0 0.0
    %3034 = vmatpush2.msra.mxu0 0.0
    %3035 = vmatprep.subr.mxu0 0.0
    %3036 = vmatpush2.msra.mxu0 0.0
    %3037 = vmatprep.mubr.f32.mxu0 0.0
    %v3038 = vand.u32 %v2964, 4294901760
    %v3039 = vsub.f32 %v2964, %v3038
    %v3040 = vand.u32 %v3039, 4294901760
    %v3041 = vsub.f32 %v3039, %v3040
    %v3042 = vand.u32 %v3041, 4294901760
    %3043 = vmatmul.mubr.f32.gmra.mxu0 %v3042
    %v3044 = vpop.f32.mrf.mxu0
    %v3045 = vadd.f32 0.0, %v3044
    %v3046 = vpop.f32.mrf.mxu0
    %3047 = vmatprep.mubr.f32.mxu0 0.0
    %v3048 = vand.u32 %v2967, 4294901760
    %v3049 = vsub.f32 %v2967, %v3048
    %v3050 = vand.u32 %v3049, 4294901760
    %v3051 = vsub.f32 %v3049, %v3050
    %v3052 = vand.u32 %v3051, 4294901760
    %3053 = vmatmul.mubr.f32.gmra.mxu0 %v3052
    %v3054 = vpop.f32.mrf.mxu0
    %v3055 = vadd.f32 0.0, %v3054
    %v3056 = vpop.f32.mrf.mxu0
    %3057 = vdwg.mxu0
    %3058 = vmatprep.subr.mxu0 0.0
    %3059 = vmatpush1.msra.mxu0 0.0
    %3060 = vmatprep.subr.mxu0 0.0
    %3061 = vmatpush1.msra.mxu0 0.0
    %3062 = vmatprep.subr.mxu0 0.0
    %3063 = vmatpush1.msra.mxu0 0.0
    %3064 = vmatprep.subr.mxu0 0.0
    %3065 = vmatpush1.msra.mxu0 0.0
    %3066 = vmatprep.subr.mxu0 0.0
    %3067 = vmatpush1.msra.mxu0 0.0
    %3068 = vmatprep.subr.mxu0 0.0
    %3069 = vmatpush1.msra.mxu0 0.0
    %3070 = vmatprep.subr.mxu0 0.0
    %3071 = vmatpush1.msra.mxu0 0.0
    %3072 = vmatprep.subr.mxu0 0.0
    %3073 = vmatpush1.msra.mxu0 0.0
    %3074 = vmatprep.subr.mxu0 0.0
    %3075 = vmatpush1.msra.mxu0 0.0
    %3076 = vmatprep.subr.mxu0 0.0
    %3077 = vmatpush1.msra.mxu0 0.0
    %3078 = vmatprep.subr.mxu0 0.0
    %3079 = vmatpush1.msra.mxu0 0.0
    %3080 = vmatprep.subr.mxu0 0.0
    %3081 = vmatpush1.msra.mxu0 0.0
    %3082 = vmatprep.subr.mxu0 0.0
    %v3083 = vand.u32 %v2961, 4294901760
    %v3084 = vsub.f32 %v2961, %v3083
    %v3085 = vand.u32 %v3084, 4294901760
    %v3086 = vsub.f32 %v3084, %v3085
    %v3087 = vand.u32 %v3086, 4294901760
    %3088 = vmatpush1.msra.mxu0 %v3087
    %3089 = vmatprep.subr.mxu0 0.0
    %v3090 = vand.u32 %v2960, 4294901760
    %v3091 = vsub.f32 %v2960, %v3090
    %v3092 = vand.u32 %v3091, 4294901760
    %v3093 = vsub.f32 %v3091, %v3092
    %v3094 = vand.u32 %v3093, 4294901760
    %3095 = vmatpush1.msra.mxu0 %v3094
    %3096 = vmatprep.subr.mxu0 0.0
    %v3097 = vand.u32 %v2959, 4294901760
    %v3098 = vsub.f32 %v2959, %v3097
    %v3099 = vand.u32 %v3098, 4294901760
    %v3100 = vsub.f32 %v3098, %v3099
    %v3101 = vand.u32 %v3100, 4294901760
    %3102 = vmatpush1.msra.mxu0 %v3101
    %3103 = vmatprep.subr.mxu0 0.0
    %v3104 = vand.u32 %v2958, 4294901760
    %v3105 = vsub.f32 %v2958, %v3104
    %v3106 = vand.u32 %v3105, 4294901760
    %v3107 = vsub.f32 %v3105, %v3106
    %v3108 = vand.u32 %v3107, 4294901760
    %3109 = vmatpush1.msra.mxu0 %v3108
    %3110 = vmatprep.subr.mxu0 0.0
    %3111 = vmatpush2.msra.mxu0 0.0
    %3112 = vmatprep.subr.mxu0 0.0
    %3113 = vmatpush2.msra.mxu0 0.0
    %3114 = vmatprep.subr.mxu0 0.0
    %3115 = vmatpush2.msra.mxu0 0.0
    %3116 = vmatprep.subr.mxu0 0.0
    %3117 = vmatpush2.msra.mxu0 0.0
    %3118 = vmatprep.subr.mxu0 0.0
    %3119 = vmatpush2.msra.mxu0 0.0
    %3120 = vmatprep.subr.mxu0 0.0
    %3121 = vmatpush2.msra.mxu0 0.0
    %3122 = vmatprep.subr.mxu0 0.0
    %3123 = vmatpush2.msra.mxu0 0.0
    %3124 = vmatprep.subr.mxu0 0.0
    %3125 = vmatpush2.msra.mxu0 0.0
    %3126 = vmatprep.subr.mxu0 0.0
    %3127 = vmatpush2.msra.mxu0 0.0
    %3128 = vmatprep.subr.mxu0 0.0
    %3129 = vmatpush2.msra.mxu0 0.0
    %3130 = vmatprep.subr.mxu0 0.0
    %3131 = vmatpush2.msra.mxu0 0.0
    %3132 = vmatprep.subr.mxu0 0.0
    %3133 = vmatpush2.msra.mxu0 0.0
    %3134 = vmatprep.subr.mxu0 0.0
    %3135 = vmatpush2.msra.mxu0 0.0
    %3136 = vmatprep.subr.mxu0 0.0
    %3137 = vmatpush2.msra.mxu0 0.0
    %3138 = vmatprep.subr.mxu0 0.0
    %3139 = vmatpush2.msra.mxu0 0.0
    %3140 = vmatprep.subr.mxu0 0.0
    %3141 = vmatpush2.msra.mxu0 0.0
    %3142 = vmatprep.mubr.f32.mxu0 0.0
    %v3143 = vand.u32 %v2964, 4294901760
    %3144 = vmatmul.mubr.f32.gmra.mxu0 %v3143
    %v3145 = vpop.f32.mrf.mxu0
    %v3146 = vadd.f32 %v3045, %v3145
    %v3147 = vpop.f32.mrf.mxu0
    %3148 = vmatprep.mubr.f32.mxu0 0.0
    %v3149 = vand.u32 %v2967, 4294901760
    %3150 = vmatmul.mubr.f32.gmra.mxu0 %v3149
    %v3151 = vpop.f32.mrf.mxu0
    %v3152 = vadd.f32 %v3055, %v3151
    %v3153 = vpop.f32.mrf.mxu0
    %3154 = vdwg.mxu0
    %3155 = vmatprep.subr.mxu0 0.0
    %3156 = vmatpush1.msra.mxu0 0.0
    %3157 = vmatprep.subr.mxu0 0.0
    %3158 = vmatpush1.msra.mxu0 0.0
    %3159 = vmatprep.subr.mxu0 0.0
    %3160 = vmatpush1.msra.mxu0 0.0
    %3161 = vmatprep.subr.mxu0 0.0
    %3162 = vmatpush1.msra.mxu0 0.0
    %3163 = vmatprep.subr.mxu0 0.0
    %3164 = vmatpush1.msra.mxu0 0.0
    %3165 = vmatprep.subr.mxu0 0.0
    %3166 = vmatpush1.msra.mxu0 0.0
    %3167 = vmatprep.subr.mxu0 0.0
    %3168 = vmatpush1.msra.mxu0 0.0
    %3169 = vmatprep.subr.mxu0 0.0
    %3170 = vmatpush1.msra.mxu0 0.0
    %3171 = vmatprep.subr.mxu0 0.0
    %3172 = vmatpush1.msra.mxu0 0.0
    %3173 = vmatprep.subr.mxu0 0.0
    %3174 = vmatpush1.msra.mxu0 0.0
    %3175 = vmatprep.subr.mxu0 0.0
    %3176 = vmatpush1.msra.mxu0 0.0
    %3177 = vmatprep.subr.mxu0 0.0
    %3178 = vmatpush1.msra.mxu0 0.0
    %3179 = vmatprep.subr.mxu0 0.0
    %v3180 = vand.u32 %v2961, 4294901760
    %v3181 = vsub.f32 %v2961, %v3180
    %3182 = vmatpush1.msra.mxu0 %v3181
    %3183 = vmatprep.subr.mxu0 0.0
    %v3184 = vand.u32 %v2960, 4294901760
    %v3185 = vsub.f32 %v2960, %v3184
    %3186 = vmatpush1.msra.mxu0 %v3185
    %3187 = vmatprep.subr.mxu0 0.0
    %v3188 = vand.u32 %v2959, 4294901760
    %v3189 = vsub.f32 %v2959, %v3188
    %3190 = vmatpush1.msra.mxu0 %v3189
    %3191 = vmatprep.subr.mxu0 0.0
    %v3192 = vand.u32 %v2958, 4294901760
    %v3193 = vsub.f32 %v2958, %v3192
    %3194 = vmatpush1.msra.mxu0 %v3193
    %3195 = vmatprep.subr.mxu0 0.0
    %3196 = vmatpush2.msra.mxu0 0.0
    %3197 = vmatprep.subr.mxu0 0.0
    %3198 = vmatpush2.msra.mxu0 0.0
    %3199 = vmatprep.subr.mxu0 0.0
    %3200 = vmatpush2.msra.mxu0 0.0
    %3201 = vmatprep.subr.mxu0 0.0
    %3202 = vmatpush2.msra.mxu0 0.0
    %3203 = vmatprep.subr.mxu0 0.0
    %3204 = vmatpush2.msra.mxu0 0.0
    %3205 = vmatprep.subr.mxu0 0.0
    %3206 = vmatpush2.msra.mxu0 0.0
    %3207 = vmatprep.subr.mxu0 0.0
    %3208 = vmatpush2.msra.mxu0 0.0
    %3209 = vmatprep.subr.mxu0 0.0
    %3210 = vmatpush2.msra.mxu0 0.0
    %3211 = vmatprep.subr.mxu0 0.0
    %3212 = vmatpush2.msra.mxu0 0.0
    %3213 = vmatprep.subr.mxu0 0.0
    %3214 = vmatpush2.msra.mxu0 0.0
    %3215 = vmatprep.subr.mxu0 0.0
    %3216 = vmatpush2.msra.mxu0 0.0
    %3217 = vmatprep.subr.mxu0 0.0
    %3218 = vmatpush2.msra.mxu0 0.0
    %3219 = vmatprep.subr.mxu0 0.0
    %3220 = vmatpush2.msra.mxu0 0.0
    %3221 = vmatprep.subr.mxu0 0.0
    %3222 = vmatpush2.msra.mxu0 0.0
    %3223 = vmatprep.subr.mxu0 0.0
    %3224 = vmatpush2.msra.mxu0 0.0
    %3225 = vmatprep.subr.mxu0 0.0
    %3226 = vmatpush2.msra.mxu0 0.0
    %3227 = vmatprep.mubr.f32.mxu0 0.0
    %v3228 = vand.u32 %v2964, 4294901760
    %v3229 = vsub.f32 %v2964, %v3228
    %3230 = vmatmul.mubr.f32.gmra.mxu0 %v3229
    %v3231 = vpop.f32.mrf.mxu0
    %v3232 = vadd.f32 %v3146, %v3231
    %v3233 = vpop.f32.mrf.mxu0
    %3234 = vmatprep.mubr.f32.mxu0 0.0
    %v3235 = vand.u32 %v2967, 4294901760
    %v3236 = vsub.f32 %v2967, %v3235
    %3237 = vmatmul.mubr.f32.gmra.mxu0 %v3236
    %v3238 = vpop.f32.mrf.mxu0
    %v3239 = vadd.f32 %v3152, %v3238
    %v3240 = vpop.f32.mrf.mxu0
    %3241 = vdwg.mxu0
    %3242 = vmatprep.subr.mxu0 0.0
    %3243 = vmatpush1.msra.mxu0 0.0
    %3244 = vmatprep.subr.mxu0 0.0
    %3245 = vmatpush1.msra.mxu0 0.0
    %3246 = vmatprep.subr.mxu0 0.0
    %3247 = vmatpush1.msra.mxu0 0.0
    %3248 = vmatprep.subr.mxu0 0.0
    %3249 = vmatpush1.msra.mxu0 0.0
    %3250 = vmatprep.subr.mxu0 0.0
    %3251 = vmatpush1.msra.mxu0 0.0
    %3252 = vmatprep.subr.mxu0 0.0
    %3253 = vmatpush1.msra.mxu0 0.0
    %3254 = vmatprep.subr.mxu0 0.0
    %3255 = vmatpush1.msra.mxu0 0.0
    %3256 = vmatprep.subr.mxu0 0.0
    %3257 = vmatpush1.msra.mxu0 0.0
    %3258 = vmatprep.subr.mxu0 0.0
    %3259 = vmatpush1.msra.mxu0 0.0
    %3260 = vmatprep.subr.mxu0 0.0
    %3261 = vmatpush1.msra.mxu0 0.0
    %3262 = vmatprep.subr.mxu0 0.0
    %3263 = vmatpush1.msra.mxu0 0.0
    %3264 = vmatprep.subr.mxu0 0.0
    %3265 = vmatpush1.msra.mxu0 0.0
    %3266 = vmatprep.subr.mxu0 0.0
    %v3267 = vand.u32 %v2961, 4294901760
    %3268 = vmatpush1.msra.mxu0 %v3267
    %3269 = vmatprep.subr.mxu0 0.0
    %v3270 = vand.u32 %v2960, 4294901760
    %3271 = vmatpush1.msra.mxu0 %v3270
    %3272 = vmatprep.subr.mxu0 0.0
    %v3273 = vand.u32 %v2959, 4294901760
    %3274 = vmatpush1.msra.mxu0 %v3273
    %3275 = vmatprep.subr.mxu0 0.0
    %v3276 = vand.u32 %v2958, 4294901760
    %3277 = vmatpush1.msra.mxu0 %v3276
    %3278 = vmatprep.subr.mxu0 0.0
    %3279 = vmatpush2.msra.mxu0 0.0
    %3280 = vmatprep.subr.mxu0 0.0
    %3281 = vmatpush2.msra.mxu0 0.0
    %3282 = vmatprep.subr.mxu0 0.0
    %3283 = vmatpush2.msra.mxu0 0.0
    %3284 = vmatprep.subr.mxu0 0.0
    %3285 = vmatpush2.msra.mxu0 0.0
    %3286 = vmatprep.subr.mxu0 0.0
    %3287 = vmatpush2.msra.mxu0 0.0
    %3288 = vmatprep.subr.mxu0 0.0
    %3289 = vmatpush2.msra.mxu0 0.0
    %3290 = vmatprep.subr.mxu0 0.0
    %3291 = vmatpush2.msra.mxu0 0.0
    %3292 = vmatprep.subr.mxu0 0.0
    %3293 = vmatpush2.msra.mxu0 0.0
    %3294 = vmatprep.subr.mxu0 0.0
    %3295 = vmatpush2.msra.mxu0 0.0
    %3296 = vmatprep.subr.mxu0 0.0
    %3297 = vmatpush2.msra.mxu0 0.0
    %3298 = vmatprep.subr.mxu0 0.0
    %3299 = vmatpush2.msra.mxu0 0.0
    %3300 = vmatprep.subr.mxu0 0.0
    %3301 = vmatpush2.msra.mxu0 0.0
    %3302 = vmatprep.subr.mxu0 0.0
    %3303 = vmatpush2.msra.mxu0 0.0
    %3304 = vmatprep.subr.mxu0 0.0
    %3305 = vmatpush2.msra.mxu0 0.0
    %3306 = vmatprep.subr.mxu0 0.0
    %3307 = vmatpush2.msra.mxu0 0.0
    %3308 = vmatprep.subr.mxu0 0.0
    %3309 = vmatpush2.msra.mxu0 0.0
    %3310 = vmatprep.mubr.f32.mxu0 0.0
    %v3311 = vand.u32 %v2964, 4294901760
    %v3312 = vsub.f32 %v2964, %v3311
    %v3313 = vand.u32 %v3312, 4294901760
    %3314 = vmatmul.mubr.f32.gmra.mxu0 %v3313
    %v3315 = vpop.f32.mrf.mxu0
    %v3316 = vadd.f32 %v3232, %v3315
    %v3317 = vpop.f32.mrf.mxu0
    %3318 = vmatprep.mubr.f32.mxu0 0.0
    %v3319 = vand.u32 %v2967, 4294901760
    %v3320 = vsub.f32 %v2967, %v3319
    %v3321 = vand.u32 %v3320, 4294901760
    %3322 = vmatmul.mubr.f32.gmra.mxu0 %v3321
    %v3323 = vpop.f32.mrf.mxu0
    %v3324 = vadd.f32 %v3239, %v3323
    %v3325 = vpop.f32.mrf.mxu0
    %3326 = vdwg.mxu0
    %3327 = vmatprep.subr.mxu0 0.0
    %3328 = vmatpush1.msra.mxu0 0.0
    %3329 = vmatprep.subr.mxu0 0.0
    %3330 = vmatpush1.msra.mxu0 0.0
    %3331 = vmatprep.subr.mxu0 0.0
    %3332 = vmatpush1.msra.mxu0 0.0
    %3333 = vmatprep.subr.mxu0 0.0
    %3334 = vmatpush1.msra.mxu0 0.0
    %3335 = vmatprep.subr.mxu0 0.0
    %3336 = vmatpush1.msra.mxu0 0.0
    %3337 = vmatprep.subr.mxu0 0.0
    %3338 = vmatpush1.msra.mxu0 0.0
    %3339 = vmatprep.subr.mxu0 0.0
    %3340 = vmatpush1.msra.mxu0 0.0
    %3341 = vmatprep.subr.mxu0 0.0
    %3342 = vmatpush1.msra.mxu0 0.0
    %3343 = vmatprep.subr.mxu0 0.0
    %3344 = vmatpush1.msra.mxu0 0.0
    %3345 = vmatprep.subr.mxu0 0.0
    %3346 = vmatpush1.msra.mxu0 0.0
    %3347 = vmatprep.subr.mxu0 0.0
    %3348 = vmatpush1.msra.mxu0 0.0
    %3349 = vmatprep.subr.mxu0 0.0
    %3350 = vmatpush1.msra.mxu0 0.0
    %3351 = vmatprep.subr.mxu0 0.0
    %v3352 = vand.u32 %v2961, 4294901760
    %v3353 = vsub.f32 %v2961, %v3352
    %v3354 = vand.u32 %v3353, 4294901760
    %3355 = vmatpush1.msra.mxu0 %v3354
    %3356 = vmatprep.subr.mxu0 0.0
    %v3357 = vand.u32 %v2960, 4294901760
    %v3358 = vsub.f32 %v2960, %v3357
    %v3359 = vand.u32 %v3358, 4294901760
    %3360 = vmatpush1.msra.mxu0 %v3359
    %3361 = vmatprep.subr.mxu0 0.0
    %v3362 = vand.u32 %v2959, 4294901760
    %v3363 = vsub.f32 %v2959, %v3362
    %v3364 = vand.u32 %v3363, 4294901760
    %3365 = vmatpush1.msra.mxu0 %v3364
    %3366 = vmatprep.subr.mxu0 0.0
    %v3367 = vand.u32 %v2958, 4294901760
    %v3368 = vsub.f32 %v2958, %v3367
    %v3369 = vand.u32 %v3368, 4294901760
    %3370 = vmatpush1.msra.mxu0 %v3369
    %3371 = vmatprep.subr.mxu0 0.0
    %3372 = vmatpush2.msra.mxu0 0.0
    %3373 = vmatprep.subr.mxu0 0.0
    %3374 = vmatpush2.msra.mxu0 0.0
    %3375 = vmatprep.subr.mxu0 0.0
    %3376 = vmatpush2.msra.mxu0 0.0
    %3377 = vmatprep.subr.mxu0 0.0
    %3378 = vmatpush2.msra.mxu0 0.0
    %3379 = vmatprep.subr.mxu0 0.0
    %3380 = vmatpush2.msra.mxu0 0.0
    %3381 = vmatprep.subr.mxu0 0.0
    %3382 = vmatpush2.msra.mxu0 0.0
    %3383 = vmatprep.subr.mxu0 0.0
    %3384 = vmatpush2.msra.mxu0 0.0
    %3385 = vmatprep.subr.mxu0 0.0
    %3386 = vmatpush2.msra.mxu0 0.0
    %3387 = vmatprep.subr.mxu0 0.0
    %3388 = vmatpush2.msra.mxu0 0.0
    %3389 = vmatprep.subr.mxu0 0.0
    %3390 = vmatpush2.msra.mxu0 0.0
    %3391 = vmatprep.subr.mxu0 0.0
    %3392 = vmatpush2.msra.mxu0 0.0
    %3393 = vmatprep.subr.mxu0 0.0
    %3394 = vmatpush2.msra.mxu0 0.0
    %3395 = vmatprep.subr.mxu0 0.0
    %3396 = vmatpush2.msra.mxu0 0.0
    %3397 = vmatprep.subr.mxu0 0.0
    %3398 = vmatpush2.msra.mxu0 0.0
    %3399 = vmatprep.subr.mxu0 0.0
    %3400 = vmatpush2.msra.mxu0 0.0
    %3401 = vmatprep.subr.mxu0 0.0
    %3402 = vmatpush2.msra.mxu0 0.0
    %3403 = vmatprep.mubr.f32.mxu0 0.0
    %v3404 = vand.u32 %v2964, 4294901760
    %3405 = vmatmul.mubr.f32.gmra.mxu0 %v3404
    %v3406 = vpop.f32.mrf.mxu0
    %v3407 = vadd.f32 %v3316, %v3406
    %v3408 = vpop.f32.mrf.mxu0
    %3409 = vmatprep.mubr.f32.mxu0 0.0
    %v3410 = vand.u32 %v2967, 4294901760
    %3411 = vmatmul.mubr.f32.gmra.mxu0 %v3410
    %v3412 = vpop.f32.mrf.mxu0
    %v3413 = vadd.f32 %v3324, %v3412
    %v3414 = vpop.f32.mrf.mxu0
    %3415 = vdwg.mxu0
    %3416 = vmatprep.subr.mxu0 0.0
    %3417 = vmatpush1.msra.mxu0 0.0
    %3418 = vmatprep.subr.mxu0 0.0
    %3419 = vmatpush1.msra.mxu0 0.0
    %3420 = vmatprep.subr.mxu0 0.0
    %3421 = vmatpush1.msra.mxu0 0.0
    %3422 = vmatprep.subr.mxu0 0.0
    %3423 = vmatpush1.msra.mxu0 0.0
    %3424 = vmatprep.subr.mxu0 0.0
    %3425 = vmatpush1.msra.mxu0 0.0
    %3426 = vmatprep.subr.mxu0 0.0
    %3427 = vmatpush1.msra.mxu0 0.0
    %3428 = vmatprep.subr.mxu0 0.0
    %3429 = vmatpush1.msra.mxu0 0.0
    %3430 = vmatprep.subr.mxu0 0.0
    %3431 = vmatpush1.msra.mxu0 0.0
    %3432 = vmatprep.subr.mxu0 0.0
    %3433 = vmatpush1.msra.mxu0 0.0
    %3434 = vmatprep.subr.mxu0 0.0
    %3435 = vmatpush1.msra.mxu0 0.0
    %3436 = vmatprep.subr.mxu0 0.0
    %3437 = vmatpush1.msra.mxu0 0.0
    %3438 = vmatprep.subr.mxu0 0.0
    %3439 = vmatpush1.msra.mxu0 0.0
    %3440 = vmatprep.subr.mxu0 0.0
    %v3441 = vand.u32 %v2961, 4294901760
    %3442 = vmatpush1.msra.mxu0 %v3441
    %3443 = vmatprep.subr.mxu0 0.0
    %v3444 = vand.u32 %v2960, 4294901760
    %3445 = vmatpush1.msra.mxu0 %v3444
    %3446 = vmatprep.subr.mxu0 0.0
    %v3447 = vand.u32 %v2959, 4294901760
    %3448 = vmatpush1.msra.mxu0 %v3447
    %3449 = vmatprep.subr.mxu0 0.0
    %v3450 = vand.u32 %v2958, 4294901760
    %3451 = vmatpush1.msra.mxu0 %v3450
    %3452 = vmatprep.subr.mxu0 0.0
    %3453 = vmatpush2.msra.mxu0 0.0
    %3454 = vmatprep.subr.mxu0 0.0
    %3455 = vmatpush2.msra.mxu0 0.0
    %3456 = vmatprep.subr.mxu0 0.0
    %3457 = vmatpush2.msra.mxu0 0.0
    %3458 = vmatprep.subr.mxu0 0.0
    %3459 = vmatpush2.msra.mxu0 0.0
    %3460 = vmatprep.subr.mxu0 0.0
    %3461 = vmatpush2.msra.mxu0 0.0
    %3462 = vmatprep.subr.mxu0 0.0
    %3463 = vmatpush2.msra.mxu0 0.0
    %3464 = vmatprep.subr.mxu0 0.0
    %3465 = vmatpush2.msra.mxu0 0.0
    %3466 = vmatprep.subr.mxu0 0.0
    %3467 = vmatpush2.msra.mxu0 0.0
    %3468 = vmatprep.subr.mxu0 0.0
    %3469 = vmatpush2.msra.mxu0 0.0
    %3470 = vmatprep.subr.mxu0 0.0
    %3471 = vmatpush2.msra.mxu0 0.0
    %3472 = vmatprep.subr.mxu0 0.0
    %3473 = vmatpush2.msra.mxu0 0.0
    %3474 = vmatprep.subr.mxu0 0.0
    %3475 = vmatpush2.msra.mxu0 0.0
    %3476 = vmatprep.subr.mxu0 0.0
    %3477 = vmatpush2.msra.mxu0 0.0
    %3478 = vmatprep.subr.mxu0 0.0
    %3479 = vmatpush2.msra.mxu0 0.0
    %3480 = vmatprep.subr.mxu0 0.0
    %3481 = vmatpush2.msra.mxu0 0.0
    %3482 = vmatprep.subr.mxu0 0.0
    %3483 = vmatpush2.msra.mxu0 0.0
    %3484 = vmatprep.mubr.f32.mxu0 0.0
    %v3485 = vand.u32 %v2964, 4294901760
    %3486 = vmatmul.mubr.f32.gmra.mxu0 %v3485
    %v3487 = vpop.f32.mrf.mxu0
    %v3488 = vadd.f32 %v3407, %v3487
    %v3489 = vpop.f32.mrf.mxu0
    %3490 = vmatprep.mubr.f32.mxu0 0.0
    %v3491 = vand.u32 %v2967, 4294901760
    %3492 = vmatmul.mubr.f32.gmra.mxu0 %v3491
    %v3493 = vpop.f32.mrf.mxu0
    %v3494 = vadd.f32 %v3413, %v3493
    %v3495 = vpop.f32.mrf.mxu0
    %3496 = vdwg.mxu0
    %s3498 = vtos %v40
    %v3499 = vstv %s3498
    %v3501 = vmul.f32 %v3488, %v3499
    %v3502 = vmul.f32 %v3494, %v3499
    %3503 = vrot.lane.b32.xlu0 %v40, 127
    %v3504 = vpop.permute.xlu0 %3503
    %s3505 = vtos %v3504
    %v3506 = vstv %s3505
    %v3508 = vmul.f32 %v45, %v3506
    %v3509 = vmul.f32 %v46, %v3506
    %v3510 = vadd.f32 %v3501, %v3508
    %v3511 = vadd.f32 %v3502, %v3509
    %3512 = vrot.lane.b32.xlu0 %v40, 126
    %v3513 = vpop.permute.xlu0 %3512
    %s3514 = vtos %v3513
    %v3515 = vstv %s3514
    %v3517 = vmul.f32 %v2279, %v3515
    %v3518 = vmul.f32 %v2280, %v3515
    %v3519 = vadd.f32 %v3510, %v3517
    %v3520 = vadd.f32 %v3511, %v3518
    %3521 = vrot.lane.b32.xlu0 %v40, 125
    %v3522 = vpop.permute.xlu0 %3521
    %s3523 = vtos %v3522
    %v3524 = vstv %s3523
    %v3526 = vadd.f32 %v3519, %v3524
    %v3527 = vadd.f32 %v3520, %v3524
    %v3528 = vxor.u32 %v3526, 2147483648
    %v3529 = vxor.u32 %v3527, 2147483648
    %v3530 = vmul.f32 %v3528, 1.442695
    %v3531 = vpow.pop %v3530
    %v3532 = vmul.f32 %v3529, 1.442695
    %v3533 = vpow.pop %v3532
    %v3534 = vadd.f32 %v3531, 1.0
    %v3535 = vadd.f32 %v3533, 1.0
    %v3536 = vrcp.pop %v3534
    %v3537 = vmul.f32 1.0, %v3536
    %v3538 = vrcp.pop %v3535
    %v3539 = vmul.f32 1.0, %v3538
    %v3540 = vsub.f32 1.0, %v3537
    %v3541 = vsub.f32 1.0, %v3539
    %v3542 = vmul.f32 %v3540, %v45
    %v3543 = vmul.f32 %v3541, %v46
    %v3544 = vmul.f32 %v2279, %v3537
    %v3545 = vmul.f32 %v2280, %v3539
    %v3546 = vmul.f32 %v3544, %v3488
    %v3547 = vmul.f32 %v3545, %v3494
    %v3548 = vadd.f32 %v3542, %v3546
    %v3549 = vadd.f32 %v3543, %v3547
    %vm3550 = vcmp.ne.f32.partialorder %v45, %v3548
    %vm3551 = vcmp.ne.f32.partialorder %v46, %v3549
    %v3552 = vsel %vm3550, 1, 0
    %v3553 = vsel %vm3551, 1, 0
    %v3554 = vcvt.s32.f32 %v3552
    %v3555 = vcvt.s32.f32 %v3553
    %vm3556 = vcmp.gt.f32.partialorder %v43, 0.0
    %vm3557 = vcmp.gt.f32.partialorder %v44, 0.0
    %v3558 = vsel %vm3556, 1, 0
    %v3559 = vsel %vm3557, 1, 0
    %v3560 = vcvt.s32.f32 %v3558
    %v3561 = vcvt.s32.f32 %v3559
    %v3562 = vmax.f32 %v3554, %v3560
    %v3563 = vmax.f32 %v3555, %v3561
    %v3564 = vsel %vm2278, 0.0, %v3562
    %v3565 = vsel %vm2278, 0.0, %v3563
    %v3566 = vsub.f32 1.0, %v3564
    %v3567 = vsub.f32 1.0, %v3565
    %v3568 = vsel %vm2281, %v3564, 0.0
    %3569 = vadd.xlane.f32.xlu0 %v3568
    %v3570 = vpop.xlane.xlu0 %3569
    %v3571 = vsel %vm2281, %v3565, 0.0
    %3572 = vadd.xlane.f32.xlu0 %v3571
    %v3573 = vpop.xlane.xlu0 %3572
    %v3574 = vmul.f32 %v3570, %v2288
    %v3575 = vmul.f32 %v3573, %v2288
    %v3576 = vsel %vm2281, %v3548, %v3574
    %v3577 = vsel %vm2281, %v3549, %v3575
    %3578 = vmatprep.subr.mxu0 0.0
    %3579 = vmatpush1.msra.mxu0 0.0
    %3580 = vmatprep.subr.mxu0 0.0
    %3581 = vmatpush1.msra.mxu0 0.0
    %3582 = vmatprep.subr.mxu0 0.0
    %3583 = vmatpush1.msra.mxu0 0.0
    %3584 = vmatprep.subr.mxu0 0.0
    %3585 = vmatpush1.msra.mxu0 0.0
    %3586 = vmatprep.subr.mxu0 0.0
    %3587 = vmatpush1.msra.mxu0 0.0
    %3588 = vmatprep.subr.mxu0 0.0
    %3589 = vmatpush1.msra.mxu0 0.0
    %3590 = vmatprep.subr.mxu0 0.0
    %3591 = vmatpush1.msra.mxu0 0.0
    %3592 = vmatprep.subr.mxu0 0.0
    %3593 = vmatpush1.msra.mxu0 0.0
    %3594 = vmatprep.subr.mxu0 0.0
    %3595 = vmatpush1.msra.mxu0 0.0
    %3596 = vmatprep.subr.mxu0 0.0
    %3597 = vmatpush1.msra.mxu0 0.0
    %3598 = vmatprep.subr.mxu0 0.0
    %3599 = vmatpush1.msra.mxu0 0.0
    %3600 = vmatprep.subr.mxu0 0.0
    %3601 = vmatpush1.msra.mxu0 0.0
    %3602 = vmatprep.subr.mxu0 0.0
    %3603 = vmatpush1.msra.mxu0 0.0
    %3604 = vmatprep.subr.mxu0 0.0
    %3605 = vmatpush1.msra.mxu0 0.0
    %3606 = vmatprep.subr.mxu0 0.0
    %v3607 = vand.u32 %v3577, 4294901760
    %3608 = vmatpush1.msra.mxu0 %v3607
    %3609 = vmatprep.subr.mxu0 0.0
    %v3610 = vand.u32 %v3576, 4294901760
    %3611 = vmatpush1.msra.mxu0 %v3610
    %3612 = vmatprep.subr.mxu0 0.0
    %3613 = vmatpush2.msra.mxu0 0.0
    %3614 = vmatprep.subr.mxu0 0.0
    %3615 = vmatpush2.msra.mxu0 0.0
    %3616 = vmatprep.subr.mxu0 0.0
    %3617 = vmatpush2.msra.mxu0 0.0
    %3618 = vmatprep.subr.mxu0 0.0
    %3619 = vmatpush2.msra.mxu0 0.0
    %3620 = vmatprep.subr.mxu0 0.0
    %3621 = vmatpush2.msra.mxu0 0.0
    %3622 = vmatprep.subr.mxu0 0.0
    %3623 = vmatpush2.msra.mxu0 0.0
    %3624 = vmatprep.subr.mxu0 0.0
    %3625 = vmatpush2.msra.mxu0 0.0
    %3626 = vmatprep.subr.mxu0 0.0
    %3627 = vmatpush2.msra.mxu0 0.0
    %3628 = vmatprep.subr.mxu0 0.0
    %3629 = vmatpush2.msra.mxu0 0.0
    %3630 = vmatprep.subr.mxu0 0.0
    %3631 = vmatpush2.msra.mxu0 0.0
    %3632 = vmatprep.subr.mxu0 0.0
    %3633 = vmatpush2.msra.mxu0 0.0
    %3634 = vmatprep.subr.mxu0 0.0
    %3635 = vmatpush2.msra.mxu0 0.0
    %3636 = vmatprep.subr.mxu0 0.0
    %3637 = vmatpush2.msra.mxu0 0.0
    %3638 = vmatprep.subr.mxu0 0.0
    %3639 = vmatpush2.msra.mxu0 0.0
    %3640 = vmatprep.subr.mxu0 0.0
    %3641 = vmatpush2.msra.mxu0 0.0
    %3642 = vmatprep.subr.mxu0 0.0
    %3643 = vmatpush2.msra.mxu0 0.0
    %3644 = vmatprep.mubr.f32.mxu0 0.0
    %v3645 = vand.u32 %v2295, 4294901760
    %v3646 = vsub.f32 %v2295, %v3645
    %v3647 = vand.u32 %v3646, 4294901760
    %v3648 = vsub.f32 %v3646, %v3647
    %v3649 = vand.u32 %v3648, 4294901760
    %3650 = vmatmul.mubr.f32.gmra.mxu0 %v3649
    %v3651 = vpop.f32.mrf.mxu0
    %v3652 = vadd.f32 0.0, %v3651
    %v3653 = vpop.f32.mrf.mxu0
    %3654 = vmatprep.mubr.f32.mxu0 0.0
    %v3655 = vand.u32 %v2298, 4294901760
    %v3656 = vsub.f32 %v2298, %v3655
    %v3657 = vand.u32 %v3656, 4294901760
    %v3658 = vsub.f32 %v3656, %v3657
    %v3659 = vand.u32 %v3658, 4294901760
    %3660 = vmatmul.mubr.f32.gmra.mxu0 %v3659
    %v3661 = vpop.f32.mrf.mxu0
    %v3662 = vadd.f32 0.0, %v3661
    %v3663 = vpop.f32.mrf.mxu0
    %3664 = vmatprep.mubr.f32.mxu0 0.0
    %v3665 = vand.u32 %v2301, 4294901760
    %v3666 = vsub.f32 %v2301, %v3665
    %v3667 = vand.u32 %v3666, 4294901760
    %v3668 = vsub.f32 %v3666, %v3667
    %v3669 = vand.u32 %v3668, 4294901760
    %3670 = vmatmul.mubr.f32.gmra.mxu0 %v3669
    %v3671 = vpop.f32.mrf.mxu0
    %v3672 = vadd.f32 0.0, %v3671
    %v3673 = vpop.f32.mrf.mxu0
    %3674 = vmatprep.mubr.f32.mxu0 0.0
    %v3675 = vand.u32 %v2304, 4294901760
    %v3676 = vsub.f32 %v2304, %v3675
    %v3677 = vand.u32 %v3676, 4294901760
    %v3678 = vsub.f32 %v3676, %v3677
    %v3679 = vand.u32 %v3678, 4294901760
    %3680 = vmatmul.mubr.f32.gmra.mxu0 %v3679
    %v3681 = vpop.f32.mrf.mxu0
    %v3682 = vadd.f32 0.0, %v3681
    %v3683 = vpop.f32.mrf.mxu0
    %3684 = vdwg.mxu0
    %3685 = vmatprep.subr.mxu0 0.0
    %3686 = vmatpush1.msra.mxu0 0.0
    %3687 = vmatprep.subr.mxu0 0.0
    %3688 = vmatpush1.msra.mxu0 0.0
    %3689 = vmatprep.subr.mxu0 0.0
    %3690 = vmatpush1.msra.mxu0 0.0
    %3691 = vmatprep.subr.mxu0 0.0
    %3692 = vmatpush1.msra.mxu0 0.0
    %3693 = vmatprep.subr.mxu0 0.0
    %3694 = vmatpush1.msra.mxu0 0.0
    %3695 = vmatprep.subr.mxu0 0.0
    %3696 = vmatpush1.msra.mxu0 0.0
    %3697 = vmatprep.subr.mxu0 0.0
    %3698 = vmatpush1.msra.mxu0 0.0
    %3699 = vmatprep.subr.mxu0 0.0
    %3700 = vmatpush1.msra.mxu0 0.0
    %3701 = vmatprep.subr.mxu0 0.0
    %3702 = vmatpush1.msra.mxu0 0.0
    %3703 = vmatprep.subr.mxu0 0.0
    %3704 = vmatpush1.msra.mxu0 0.0
    %3705 = vmatprep.subr.mxu0 0.0
    %3706 = vmatpush1.msra.mxu0 0.0
    %3707 = vmatprep.subr.mxu0 0.0
    %3708 = vmatpush1.msra.mxu0 0.0
    %3709 = vmatprep.subr.mxu0 0.0
    %3710 = vmatpush1.msra.mxu0 0.0
    %3711 = vmatprep.subr.mxu0 0.0
    %3712 = vmatpush1.msra.mxu0 0.0
    %3713 = vmatprep.subr.mxu0 0.0
    %v3714 = vand.u32 %v3577, 4294901760
    %v3715 = vsub.f32 %v3577, %v3714
    %v3716 = vand.u32 %v3715, 4294901760
    %v3717 = vsub.f32 %v3715, %v3716
    %v3718 = vand.u32 %v3717, 4294901760
    %3719 = vmatpush1.msra.mxu0 %v3718
    %3720 = vmatprep.subr.mxu0 0.0
    %v3721 = vand.u32 %v3576, 4294901760
    %v3722 = vsub.f32 %v3576, %v3721
    %v3723 = vand.u32 %v3722, 4294901760
    %v3724 = vsub.f32 %v3722, %v3723
    %v3725 = vand.u32 %v3724, 4294901760
    %3726 = vmatpush1.msra.mxu0 %v3725
    %3727 = vmatprep.subr.mxu0 0.0
    %3728 = vmatpush2.msra.mxu0 0.0
    %3729 = vmatprep.subr.mxu0 0.0
    %3730 = vmatpush2.msra.mxu0 0.0
    %3731 = vmatprep.subr.mxu0 0.0
    %3732 = vmatpush2.msra.mxu0 0.0
    %3733 = vmatprep.subr.mxu0 0.0
    %3734 = vmatpush2.msra.mxu0 0.0
    %3735 = vmatprep.subr.mxu0 0.0
    %3736 = vmatpush2.msra.mxu0 0.0
    %3737 = vmatprep.subr.mxu0 0.0
    %3738 = vmatpush2.msra.mxu0 0.0
    %3739 = vmatprep.subr.mxu0 0.0
    %3740 = vmatpush2.msra.mxu0 0.0
    %3741 = vmatprep.subr.mxu0 0.0
    %3742 = vmatpush2.msra.mxu0 0.0
    %3743 = vmatprep.subr.mxu0 0.0
    %3744 = vmatpush2.msra.mxu0 0.0
    %3745 = vmatprep.subr.mxu0 0.0
    %3746 = vmatpush2.msra.mxu0 0.0
    %3747 = vmatprep.subr.mxu0 0.0
    %3748 = vmatpush2.msra.mxu0 0.0
    %3749 = vmatprep.subr.mxu0 0.0
    %3750 = vmatpush2.msra.mxu0 0.0
    %3751 = vmatprep.subr.mxu0 0.0
    %3752 = vmatpush2.msra.mxu0 0.0
    %3753 = vmatprep.subr.mxu0 0.0
    %3754 = vmatpush2.msra.mxu0 0.0
    %3755 = vmatprep.subr.mxu0 0.0
    %3756 = vmatpush2.msra.mxu0 0.0
    %3757 = vmatprep.subr.mxu0 0.0
    %3758 = vmatpush2.msra.mxu0 0.0
    %3759 = vmatprep.mubr.f32.mxu0 0.0
    %v3760 = vand.u32 %v2295, 4294901760
    %3761 = vmatmul.mubr.f32.gmra.mxu0 %v3760
    %v3762 = vpop.f32.mrf.mxu0
    %v3763 = vadd.f32 %v3652, %v3762
    %v3764 = vpop.f32.mrf.mxu0
    %3765 = vmatprep.mubr.f32.mxu0 0.0
    %v3766 = vand.u32 %v2298, 4294901760
    %3767 = vmatmul.mubr.f32.gmra.mxu0 %v3766
    %v3768 = vpop.f32.mrf.mxu0
    %v3769 = vadd.f32 %v3662, %v3768
    %v3770 = vpop.f32.mrf.mxu0
    %3771 = vmatprep.mubr.f32.mxu0 0.0
    %v3772 = vand.u32 %v2301, 4294901760
    %3773 = vmatmul.mubr.f32.gmra.mxu0 %v3772
    %v3774 = vpop.f32.mrf.mxu0
    %v3775 = vadd.f32 %v3672, %v3774
    %v3776 = vpop.f32.mrf.mxu0
    %3777 = vmatprep.mubr.f32.mxu0 0.0
    %v3778 = vand.u32 %v2304, 4294901760
    %3779 = vmatmul.mubr.f32.gmra.mxu0 %v3778
    %v3780 = vpop.f32.mrf.mxu0
    %v3781 = vadd.f32 %v3682, %v3780
    %v3782 = vpop.f32.mrf.mxu0
    %3783 = vdwg.mxu0
    %3784 = vmatprep.subr.mxu0 0.0
    %3785 = vmatpush1.msra.mxu0 0.0
    %3786 = vmatprep.subr.mxu0 0.0
    %3787 = vmatpush1.msra.mxu0 0.0
    %3788 = vmatprep.subr.mxu0 0.0
    %3789 = vmatpush1.msra.mxu0 0.0
    %3790 = vmatprep.subr.mxu0 0.0
    %3791 = vmatpush1.msra.mxu0 0.0
    %3792 = vmatprep.subr.mxu0 0.0
    %3793 = vmatpush1.msra.mxu0 0.0
    %3794 = vmatprep.subr.mxu0 0.0
    %3795 = vmatpush1.msra.mxu0 0.0
    %3796 = vmatprep.subr.mxu0 0.0
    %3797 = vmatpush1.msra.mxu0 0.0
    %3798 = vmatprep.subr.mxu0 0.0
    %3799 = vmatpush1.msra.mxu0 0.0
    %3800 = vmatprep.subr.mxu0 0.0
    %3801 = vmatpush1.msra.mxu0 0.0
    %3802 = vmatprep.subr.mxu0 0.0
    %3803 = vmatpush1.msra.mxu0 0.0
    %3804 = vmatprep.subr.mxu0 0.0
    %3805 = vmatpush1.msra.mxu0 0.0
    %3806 = vmatprep.subr.mxu0 0.0
    %3807 = vmatpush1.msra.mxu0 0.0
    %3808 = vmatprep.subr.mxu0 0.0
    %3809 = vmatpush1.msra.mxu0 0.0
    %3810 = vmatprep.subr.mxu0 0.0
    %3811 = vmatpush1.msra.mxu0 0.0
    %3812 = vmatprep.subr.mxu0 0.0
    %v3813 = vand.u32 %v3577, 4294901760
    %v3814 = vsub.f32 %v3577, %v3813
    %3815 = vmatpush1.msra.mxu0 %v3814
    %3816 = vmatprep.subr.mxu0 0.0
    %v3817 = vand.u32 %v3576, 4294901760
    %v3818 = vsub.f32 %v3576, %v3817
    %3819 = vmatpush1.msra.mxu0 %v3818
    %3820 = vmatprep.subr.mxu0 0.0
    %3821 = vmatpush2.msra.mxu0 0.0
    %3822 = vmatprep.subr.mxu0 0.0
    %3823 = vmatpush2.msra.mxu0 0.0
    %3824 = vmatprep.subr.mxu0 0.0
    %3825 = vmatpush2.msra.mxu0 0.0
    %3826 = vmatprep.subr.mxu0 0.0
    %3827 = vmatpush2.msra.mxu0 0.0
    %3828 = vmatprep.subr.mxu0 0.0
    %3829 = vmatpush2.msra.mxu0 0.0
    %3830 = vmatprep.subr.mxu0 0.0
    %3831 = vmatpush2.msra.mxu0 0.0
    %3832 = vmatprep.subr.mxu0 0.0
    %3833 = vmatpush2.msra.mxu0 0.0
    %3834 = vmatprep.subr.mxu0 0.0
    %3835 = vmatpush2.msra.mxu0 0.0
    %3836 = vmatprep.subr.mxu0 0.0
    %3837 = vmatpush2.msra.mxu0 0.0
    %3838 = vmatprep.subr.mxu0 0.0
    %3839 = vmatpush2.msra.mxu0 0.0
    %3840 = vmatprep.subr.mxu0 0.0
    %3841 = vmatpush2.msra.mxu0 0.0
    %3842 = vmatprep.subr.mxu0 0.0
    %3843 = vmatpush2.msra.mxu0 0.0
    %3844 = vmatprep.subr.mxu0 0.0
    %3845 = vmatpush2.msra.mxu0 0.0
    %3846 = vmatprep.subr.mxu0 0.0
    %3847 = vmatpush2.msra.mxu0 0.0
    %3848 = vmatprep.subr.mxu0 0.0
    %3849 = vmatpush2.msra.mxu0 0.0
    %3850 = vmatprep.subr.mxu0 0.0
    %3851 = vmatpush2.msra.mxu0 0.0
    %3852 = vmatprep.mubr.f32.mxu0 0.0
    %v3853 = vand.u32 %v2295, 4294901760
    %v3854 = vsub.f32 %v2295, %v3853
    %3855 = vmatmul.mubr.f32.gmra.mxu0 %v3854
    %v3856 = vpop.f32.mrf.mxu0
    %v3857 = vadd.f32 %v3763, %v3856
    %v3858 = vpop.f32.mrf.mxu0
    %3859 = vmatprep.mubr.f32.mxu0 0.0
    %v3860 = vand.u32 %v2298, 4294901760
    %v3861 = vsub.f32 %v2298, %v3860
    %3862 = vmatmul.mubr.f32.gmra.mxu0 %v3861
    %v3863 = vpop.f32.mrf.mxu0
    %v3864 = vadd.f32 %v3769, %v3863
    %v3865 = vpop.f32.mrf.mxu0
    %3866 = vmatprep.mubr.f32.mxu0 0.0
    %v3867 = vand.u32 %v2301, 4294901760
    %v3868 = vsub.f32 %v2301, %v3867
    %3869 = vmatmul.mubr.f32.gmra.mxu0 %v3868
    %v3870 = vpop.f32.mrf.mxu0
    %v3871 = vadd.f32 %v3775, %v3870
    %v3872 = vpop.f32.mrf.mxu0
    %3873 = vmatprep.mubr.f32.mxu0 0.0
    %v3874 = vand.u32 %v2304, 4294901760
    %v3875 = vsub.f32 %v2304, %v3874
    %3876 = vmatmul.mubr.f32.gmra.mxu0 %v3875
    %v3877 = vpop.f32.mrf.mxu0
    %v3878 = vadd.f32 %v3781, %v3877
    %v3879 = vpop.f32.mrf.mxu0
    %3880 = vdwg.mxu0
    %3881 = vmatprep.subr.mxu0 0.0
    %3882 = vmatpush1.msra.mxu0 0.0
    %3883 = vmatprep.subr.mxu0 0.0
    %3884 = vmatpush1.msra.mxu0 0.0
    %3885 = vmatprep.subr.mxu0 0.0
    %3886 = vmatpush1.msra.mxu0 0.0
    %3887 = vmatprep.subr.mxu0 0.0
    %3888 = vmatpush1.msra.mxu0 0.0
    %3889 = vmatprep.subr.mxu0 0.0
    %3890 = vmatpush1.msra.mxu0 0.0
    %3891 = vmatprep.subr.mxu0 0.0
    %3892 = vmatpush1.msra.mxu0 0.0
    %3893 = vmatprep.subr.mxu0 0.0
    %3894 = vmatpush1.msra.mxu0 0.0
    %3895 = vmatprep.subr.mxu0 0.0
    %3896 = vmatpush1.msra.mxu0 0.0
    %3897 = vmatprep.subr.mxu0 0.0
    %3898 = vmatpush1.msra.mxu0 0.0
    %3899 = vmatprep.subr.mxu0 0.0
    %3900 = vmatpush1.msra.mxu0 0.0
    %3901 = vmatprep.subr.mxu0 0.0
    %3902 = vmatpush1.msra.mxu0 0.0
    %3903 = vmatprep.subr.mxu0 0.0
    %3904 = vmatpush1.msra.mxu0 0.0
    %3905 = vmatprep.subr.mxu0 0.0
    %3906 = vmatpush1.msra.mxu0 0.0
    %3907 = vmatprep.subr.mxu0 0.0
    %3908 = vmatpush1.msra.mxu0 0.0
    %3909 = vmatprep.subr.mxu0 0.0
    %v3910 = vand.u32 %v3577, 4294901760
    %3911 = vmatpush1.msra.mxu0 %v3910
    %3912 = vmatprep.subr.mxu0 0.0
    %v3913 = vand.u32 %v3576, 4294901760
    %3914 = vmatpush1.msra.mxu0 %v3913
    %3915 = vmatprep.subr.mxu0 0.0
    %3916 = vmatpush2.msra.mxu0 0.0
    %3917 = vmatprep.subr.mxu0 0.0
    %3918 = vmatpush2.msra.mxu0 0.0
    %3919 = vmatprep.subr.mxu0 0.0
    %3920 = vmatpush2.msra.mxu0 0.0
    %3921 = vmatprep.subr.mxu0 0.0
    %3922 = vmatpush2.msra.mxu0 0.0
    %3923 = vmatprep.subr.mxu0 0.0
    %3924 = vmatpush2.msra.mxu0 0.0
    %3925 = vmatprep.subr.mxu0 0.0
    %3926 = vmatpush2.msra.mxu0 0.0
    %3927 = vmatprep.subr.mxu0 0.0
    %3928 = vmatpush2.msra.mxu0 0.0
    %3929 = vmatprep.subr.mxu0 0.0
    %3930 = vmatpush2.msra.mxu0 0.0
    %3931 = vmatprep.subr.mxu0 0.0
    %3932 = vmatpush2.msra.mxu0 0.0
    %3933 = vmatprep.subr.mxu0 0.0
    %3934 = vmatpush2.msra.mxu0 0.0
    %3935 = vmatprep.subr.mxu0 0.0
    %3936 = vmatpush2.msra.mxu0 0.0
    %3937 = vmatprep.subr.mxu0 0.0
    %3938 = vmatpush2.msra.mxu0 0.0
    %3939 = vmatprep.subr.mxu0 0.0
    %3940 = vmatpush2.msra.mxu0 0.0
    %3941 = vmatprep.subr.mxu0 0.0
    %3942 = vmatpush2.msra.mxu0 0.0
    %3943 = vmatprep.subr.mxu0 0.0
    %3944 = vmatpush2.msra.mxu0 0.0
    %3945 = vmatprep.subr.mxu0 0.0
    %3946 = vmatpush2.msra.mxu0 0.0
    %3947 = vmatprep.mubr.f32.mxu0 0.0
    %v3948 = vand.u32 %v2295, 4294901760
    %v3949 = vsub.f32 %v2295, %v3948
    %v3950 = vand.u32 %v3949, 4294901760
    %3951 = vmatmul.mubr.f32.gmra.mxu0 %v3950
    %v3952 = vpop.f32.mrf.mxu0
    %v3953 = vadd.f32 %v3857, %v3952
    %v3954 = vpop.f32.mrf.mxu0
    %3955 = vmatprep.mubr.f32.mxu0 0.0
    %v3956 = vand.u32 %v2298, 4294901760
    %v3957 = vsub.f32 %v2298, %v3956
    %v3958 = vand.u32 %v3957, 4294901760
    %3959 = vmatmul.mubr.f32.gmra.mxu0 %v3958
    %v3960 = vpop.f32.mrf.mxu0
    %v3961 = vadd.f32 %v3864, %v3960
    %v3962 = vpop.f32.mrf.mxu0
    %3963 = vmatprep.mubr.f32.mxu0 0.0
    %v3964 = vand.u32 %v2301, 4294901760
    %v3965 = vsub.f32 %v2301, %v3964
    %v3966 = vand.u32 %v3965, 4294901760
    %3967 = vmatmul.mubr.f32.gmra.mxu0 %v3966
    %v3968 = vpop.f32.mrf.mxu0
    %v3969 = vadd.f32 %v3871, %v3968
    %v3970 = vpop.f32.mrf.mxu0
    %3971 = vmatprep.mubr.f32.mxu0 0.0
    %v3972 = vand.u32 %v2304, 4294901760
    %v3973 = vsub.f32 %v2304, %v3972
    %v3974 = vand.u32 %v3973, 4294901760
    %3975 = vmatmul.mubr.f32.gmra.mxu0 %v3974
    %v3976 = vpop.f32.mrf.mxu0
    %v3977 = vadd.f32 %v3878, %v3976
    %v3978 = vpop.f32.mrf.mxu0
    %3979 = vdwg.mxu0
    %3980 = vmatprep.subr.mxu0 0.0
    %3981 = vmatpush1.msra.mxu0 0.0
    %3982 = vmatprep.subr.mxu0 0.0
    %3983 = vmatpush1.msra.mxu0 0.0
    %3984 = vmatprep.subr.mxu0 0.0
    %3985 = vmatpush1.msra.mxu0 0.0
    %3986 = vmatprep.subr.mxu0 0.0
    %3987 = vmatpush1.msra.mxu0 0.0
    %3988 = vmatprep.subr.mxu0 0.0
    %3989 = vmatpush1.msra.mxu0 0.0
    %3990 = vmatprep.subr.mxu0 0.0
    %3991 = vmatpush1.msra.mxu0 0.0
    %3992 = vmatprep.subr.mxu0 0.0
    %3993 = vmatpush1.msra.mxu0 0.0
    %3994 = vmatprep.subr.mxu0 0.0
    %3995 = vmatpush1.msra.mxu0 0.0
    %3996 = vmatprep.subr.mxu0 0.0
    %3997 = vmatpush1.msra.mxu0 0.0
    %3998 = vmatprep.subr.mxu0 0.0
    %3999 = vmatpush1.msra.mxu0 0.0
    %4000 = vmatprep.subr.mxu0 0.0
    %4001 = vmatpush1.msra.mxu0 0.0
    %4002 = vmatprep.subr.mxu0 0.0
    %4003 = vmatpush1.msra.mxu0 0.0
    %4004 = vmatprep.subr.mxu0 0.0
    %4005 = vmatpush1.msra.mxu0 0.0
    %4006 = vmatprep.subr.mxu0 0.0
    %4007 = vmatpush1.msra.mxu0 0.0
    %4008 = vmatprep.subr.mxu0 0.0
    %v4009 = vand.u32 %v3577, 4294901760
    %v4010 = vsub.f32 %v3577, %v4009
    %v4011 = vand.u32 %v4010, 4294901760
    %4012 = vmatpush1.msra.mxu0 %v4011
    %4013 = vmatprep.subr.mxu0 0.0
    %v4014 = vand.u32 %v3576, 4294901760
    %v4015 = vsub.f32 %v3576, %v4014
    %v4016 = vand.u32 %v4015, 4294901760
    %4017 = vmatpush1.msra.mxu0 %v4016
    %4018 = vmatprep.subr.mxu0 0.0
    %4019 = vmatpush2.msra.mxu0 0.0
    %4020 = vmatprep.subr.mxu0 0.0
    %4021 = vmatpush2.msra.mxu0 0.0
    %4022 = vmatprep.subr.mxu0 0.0
    %4023 = vmatpush2.msra.mxu0 0.0
    %4024 = vmatprep.subr.mxu0 0.0
    %4025 = vmatpush2.msra.mxu0 0.0
    %4026 = vmatprep.subr.mxu0 0.0
    %4027 = vmatpush2.msra.mxu0 0.0
    %4028 = vmatprep.subr.mxu0 0.0
    %4029 = vmatpush2.msra.mxu0 0.0
    %4030 = vmatprep.subr.mxu0 0.0
    %4031 = vmatpush2.msra.mxu0 0.0
    %4032 = vmatprep.subr.mxu0 0.0
    %4033 = vmatpush2.msra.mxu0 0.0
    %4034 = vmatprep.subr.mxu0 0.0
    %4035 = vmatpush2.msra.mxu0 0.0
    %4036 = vmatprep.subr.mxu0 0.0
    %4037 = vmatpush2.msra.mxu0 0.0
    %4038 = vmatprep.subr.mxu0 0.0
    %4039 = vmatpush2.msra.mxu0 0.0
    %4040 = vmatprep.subr.mxu0 0.0
    %4041 = vmatpush2.msra.mxu0 0.0
    %4042 = vmatprep.subr.mxu0 0.0
    %4043 = vmatpush2.msra.mxu0 0.0
    %4044 = vmatprep.subr.mxu0 0.0
    %4045 = vmatpush2.msra.mxu0 0.0
    %4046 = vmatprep.subr.mxu0 0.0
    %4047 = vmatpush2.msra.mxu0 0.0
    %4048 = vmatprep.subr.mxu0 0.0
    %4049 = vmatpush2.msra.mxu0 0.0
    %4050 = vmatprep.mubr.f32.mxu0 0.0
    %v4051 = vand.u32 %v2295, 4294901760
    %4052 = vmatmul.mubr.f32.gmra.mxu0 %v4051
    %v4053 = vpop.f32.mrf.mxu0
    %v4054 = vadd.f32 %v3953, %v4053
    %v4055 = vpop.f32.mrf.mxu0
    %4056 = vmatprep.mubr.f32.mxu0 0.0
    %v4057 = vand.u32 %v2298, 4294901760
    %4058 = vmatmul.mubr.f32.gmra.mxu0 %v4057
    %v4059 = vpop.f32.mrf.mxu0
    %v4060 = vadd.f32 %v3961, %v4059
    %v4061 = vpop.f32.mrf.mxu0
    %4062 = vmatprep.mubr.f32.mxu0 0.0
    %v4063 = vand.u32 %v2301, 4294901760
    %4064 = vmatmul.mubr.f32.gmra.mxu0 %v4063
    %v4065 = vpop.f32.mrf.mxu0
    %v4066 = vadd.f32 %v3969, %v4065
    %v4067 = vpop.f32.mrf.mxu0
    %4068 = vmatprep.mubr.f32.mxu0 0.0
    %v4069 = vand.u32 %v2304, 4294901760
    %4070 = vmatmul.mubr.f32.gmra.mxu0 %v4069
    %v4071 = vpop.f32.mrf.mxu0
    %v4072 = vadd.f32 %v3977, %v4071
    %v4073 = vpop.f32.mrf.mxu0
    %4074 = vdwg.mxu0
    %4075 = vmatprep.subr.mxu0 0.0
    %4076 = vmatpush1.msra.mxu0 0.0
    %4077 = vmatprep.subr.mxu0 0.0
    %4078 = vmatpush1.msra.mxu0 0.0
    %4079 = vmatprep.subr.mxu0 0.0
    %4080 = vmatpush1.msra.mxu0 0.0
    %4081 = vmatprep.subr.mxu0 0.0
    %4082 = vmatpush1.msra.mxu0 0.0
    %4083 = vmatprep.subr.mxu0 0.0
    %4084 = vmatpush1.msra.mxu0 0.0
    %4085 = vmatprep.subr.mxu0 0.0
    %4086 = vmatpush1.msra.mxu0 0.0
    %4087 = vmatprep.subr.mxu0 0.0
    %4088 = vmatpush1.msra.mxu0 0.0
    %4089 = vmatprep.subr.mxu0 0.0
    %4090 = vmatpush1.msra.mxu0 0.0
    %4091 = vmatprep.subr.mxu0 0.0
    %4092 = vmatpush1.msra.mxu0 0.0
    %4093 = vmatprep.subr.mxu0 0.0
    %4094 = vmatpush1.msra.mxu0 0.0
    %4095 = vmatprep.subr.mxu0 0.0
    %4096 = vmatpush1.msra.mxu0 0.0
    %4097 = vmatprep.subr.mxu0 0.0
    %4098 = vmatpush1.msra.mxu0 0.0
    %4099 = vmatprep.subr.mxu0 0.0
    %4100 = vmatpush1.msra.mxu0 0.0
    %4101 = vmatprep.subr.mxu0 0.0
    %4102 = vmatpush1.msra.mxu0 0.0
    %4103 = vmatprep.subr.mxu0 0.0
    %v4104 = vand.u32 %v3577, 4294901760
    %4105 = vmatpush1.msra.mxu0 %v4104
    %4106 = vmatprep.subr.mxu0 0.0
    %v4107 = vand.u32 %v3576, 4294901760
    %4108 = vmatpush1.msra.mxu0 %v4107
    %4109 = vmatprep.subr.mxu0 0.0
    %4110 = vmatpush2.msra.mxu0 0.0
    %4111 = vmatprep.subr.mxu0 0.0
    %4112 = vmatpush2.msra.mxu0 0.0
    %4113 = vmatprep.subr.mxu0 0.0
    %4114 = vmatpush2.msra.mxu0 0.0
    %4115 = vmatprep.subr.mxu0 0.0
    %4116 = vmatpush2.msra.mxu0 0.0
    %4117 = vmatprep.subr.mxu0 0.0
    %4118 = vmatpush2.msra.mxu0 0.0
    %4119 = vmatprep.subr.mxu0 0.0
    %4120 = vmatpush2.msra.mxu0 0.0
    %4121 = vmatprep.subr.mxu0 0.0
    %4122 = vmatpush2.msra.mxu0 0.0
    %4123 = vmatprep.subr.mxu0 0.0
    %4124 = vmatpush2.msra.mxu0 0.0
    %4125 = vmatprep.subr.mxu0 0.0
    %4126 = vmatpush2.msra.mxu0 0.0
    %4127 = vmatprep.subr.mxu0 0.0
    %4128 = vmatpush2.msra.mxu0 0.0
    %4129 = vmatprep.subr.mxu0 0.0
    %4130 = vmatpush2.msra.mxu0 0.0
    %4131 = vmatprep.subr.mxu0 0.0
    %4132 = vmatpush2.msra.mxu0 0.0
    %4133 = vmatprep.subr.mxu0 0.0
    %4134 = vmatpush2.msra.mxu0 0.0
    %4135 = vmatprep.subr.mxu0 0.0
    %4136 = vmatpush2.msra.mxu0 0.0
    %4137 = vmatprep.subr.mxu0 0.0
    %4138 = vmatpush2.msra.mxu0 0.0
    %4139 = vmatprep.subr.mxu0 0.0
    %4140 = vmatpush2.msra.mxu0 0.0
    %4141 = vmatprep.mubr.f32.mxu0 0.0
    %v4142 = vand.u32 %v2295, 4294901760
    %4143 = vmatmul.mubr.f32.gmra.mxu0 %v4142
    %v4144 = vpop.f32.mrf.mxu0
    %v4145 = vadd.f32 %v4054, %v4144
    %v4146 = vpop.f32.mrf.mxu0
    %4147 = vmatprep.mubr.f32.mxu0 0.0
    %v4148 = vand.u32 %v2298, 4294901760
    %4149 = vmatmul.mubr.f32.gmra.mxu0 %v4148
    %v4150 = vpop.f32.mrf.mxu0
    %v4151 = vadd.f32 %v4060, %v4150
    %v4152 = vpop.f32.mrf.mxu0
    %4153 = vmatprep.mubr.f32.mxu0 0.0
    %v4154 = vand.u32 %v2301, 4294901760
    %4155 = vmatmul.mubr.f32.gmra.mxu0 %v4154
    %v4156 = vpop.f32.mrf.mxu0
    %v4157 = vadd.f32 %v4066, %v4156
    %v4158 = vpop.f32.mrf.mxu0
    %4159 = vmatprep.mubr.f32.mxu0 0.0
    %v4160 = vand.u32 %v2304, 4294901760
    %4161 = vmatmul.mubr.f32.gmra.mxu0 %v4160
    %v4162 = vpop.f32.mrf.mxu0
    %v4163 = vadd.f32 %v4072, %v4162
    %v4164 = vpop.f32.mrf.mxu0
    %4165 = vdwg.mxu0
    %v4166 = vmul.f32 %v4145, %v2899
    %v4167 = vmul.f32 %v4151, %v2901
    %v4168 = vmul.f32 %v4157, %v2903
    %v4169 = vmul.f32 %v4163, %v2905
    %v4170 = vxor.u32 %v4166, 2147483648
    %v4171 = vxor.u32 %v4167, 2147483648
    %v4172 = vxor.u32 %v4168, 2147483648
    %v4173 = vxor.u32 %v4169, 2147483648
    %v4174 = vmul.f32 %v4170, 1.442695
    %v4175 = vpow.pop %v4174
    %v4176 = vmul.f32 %v4171, 1.442695
    %v4177 = vpow.pop %v4176
    %v4178 = vmul.f32 %v4172, 1.442695
    %v4179 = vpow.pop %v4178
    %v4180 = vmul.f32 %v4173, 1.442695
    %v4181 = vpow.pop %v4180
    %v4182 = vadd.f32 %v4175, 1.0
    %v4183 = vadd.f32 %v4177, 1.0
    %v4184 = vadd.f32 %v4179, 1.0
    %v4185 = vadd.f32 %v4181, 1.0
    %v4186 = vrcp.pop %v4182
    %v4187 = vmul.f32 1.0, %v4186
    %v4188 = vrcp.pop %v4183
    %v4189 = vmul.f32 1.0, %v4188
    %v4190 = vrcp.pop %v4184
    %v4191 = vmul.f32 1.0, %v4190
    %v4192 = vrcp.pop %v4185
    %v4193 = vmul.f32 1.0, %v4192
    %4195 = vset.pattern.permute.xlu0 8
    %4196 = vperm.xlu0 %4195, %v4187
    %v4197 = vpop.permute.xlu0 %4196
    %4200 = vset.pattern.permute.xlu0 8
    %4201 = vperm.xlu0 %4200, %v4189
    %v4202 = vpop.permute.xlu0 %4201
    %4205 = vset.pattern.permute.xlu0 8
    %4206 = vperm.xlu0 %4205, %v4191
    %v4207 = vpop.permute.xlu0 %4206
    %4210 = vset.pattern.permute.xlu0 8
    %4211 = vperm.xlu0 %4210, %v4193
    %v4212 = vpop.permute.xlu0 %4211
    %v4214 = vmul.f32 %v4145, %v4197
    %v4215 = vmul.f32 %v4151, %v4202
    %v4216 = vmul.f32 %v4157, %v4207
    %v4217 = vmul.f32 %v4163, %v4212
    %4218 = vmatprep.subr.mxu0 0.0
    %4219 = vmatpush1.msra.mxu0 0.0
    %4220 = vmatprep.subr.mxu0 0.0
    %4221 = vmatpush1.msra.mxu0 0.0
    %4222 = vmatprep.subr.mxu0 0.0
    %4223 = vmatpush1.msra.mxu0 0.0
    %4224 = vmatprep.subr.mxu0 0.0
    %4225 = vmatpush1.msra.mxu0 0.0
    %4226 = vmatprep.subr.mxu0 0.0
    %4227 = vmatpush1.msra.mxu0 0.0
    %4228 = vmatprep.subr.mxu0 0.0
    %4229 = vmatpush1.msra.mxu0 0.0
    %4230 = vmatprep.subr.mxu0 0.0
    %4231 = vmatpush1.msra.mxu0 0.0
    %4232 = vmatprep.subr.mxu0 0.0
    %4233 = vmatpush1.msra.mxu0 0.0
    %4234 = vmatprep.subr.mxu0 0.0
    %4235 = vmatpush1.msra.mxu0 0.0
    %4236 = vmatprep.subr.mxu0 0.0
    %4237 = vmatpush1.msra.mxu0 0.0
    %4238 = vmatprep.subr.mxu0 0.0
    %4239 = vmatpush1.msra.mxu0 0.0
    %4240 = vmatprep.subr.mxu0 0.0
    %4241 = vmatpush1.msra.mxu0 0.0
    %4242 = vmatprep.subr.mxu0 0.0
    %v4243 = vand.u32 %v4217, 4294901760
    %4244 = vmatpush1.msra.mxu0 %v4243
    %4245 = vmatprep.subr.mxu0 0.0
    %v4246 = vand.u32 %v4216, 4294901760
    %4247 = vmatpush1.msra.mxu0 %v4246
    %4248 = vmatprep.subr.mxu0 0.0
    %v4249 = vand.u32 %v4215, 4294901760
    %4250 = vmatpush1.msra.mxu0 %v4249
    %4251 = vmatprep.subr.mxu0 0.0
    %v4252 = vand.u32 %v4214, 4294901760
    %4253 = vmatpush1.msra.mxu0 %v4252
    %4254 = vmatprep.subr.mxu0 0.0
    %4255 = vmatpush2.msra.mxu0 0.0
    %4256 = vmatprep.subr.mxu0 0.0
    %4257 = vmatpush2.msra.mxu0 0.0
    %4258 = vmatprep.subr.mxu0 0.0
    %4259 = vmatpush2.msra.mxu0 0.0
    %4260 = vmatprep.subr.mxu0 0.0
    %4261 = vmatpush2.msra.mxu0 0.0
    %4262 = vmatprep.subr.mxu0 0.0
    %4263 = vmatpush2.msra.mxu0 0.0
    %4264 = vmatprep.subr.mxu0 0.0
    %4265 = vmatpush2.msra.mxu0 0.0
    %4266 = vmatprep.subr.mxu0 0.0
    %4267 = vmatpush2.msra.mxu0 0.0
    %4268 = vmatprep.subr.mxu0 0.0
    %4269 = vmatpush2.msra.mxu0 0.0
    %4270 = vmatprep.subr.mxu0 0.0
    %4271 = vmatpush2.msra.mxu0 0.0
    %4272 = vmatprep.subr.mxu0 0.0
    %4273 = vmatpush2.msra.mxu0 0.0
    %4274 = vmatprep.subr.mxu0 0.0
    %4275 = vmatpush2.msra.mxu0 0.0
    %4276 = vmatprep.subr.mxu0 0.0
    %4277 = vmatpush2.msra.mxu0 0.0
    %4278 = vmatprep.subr.mxu0 0.0
    %4279 = vmatpush2.msra.mxu0 0.0
    %4280 = vmatprep.subr.mxu0 0.0
    %4281 = vmatpush2.msra.mxu0 0.0
    %4282 = vmatprep.subr.mxu0 0.0
    %4283 = vmatpush2.msra.mxu0 0.0
    %4284 = vmatprep.subr.mxu0 0.0
    %4285 = vmatpush2.msra.mxu0 0.0
    %4286 = vmatprep.mubr.f32.mxu0 0.0
    %v4287 = vand.u32 %v2964, 4294901760
    %v4288 = vsub.f32 %v2964, %v4287
    %v4289 = vand.u32 %v4288, 4294901760
    %v4290 = vsub.f32 %v4288, %v4289
    %v4291 = vand.u32 %v4290, 4294901760
    %4292 = vmatmul.mubr.f32.gmra.mxu0 %v4291
    %v4293 = vpop.f32.mrf.mxu0
    %v4294 = vadd.f32 0.0, %v4293
    %v4295 = vpop.f32.mrf.mxu0
    %4296 = vmatprep.mubr.f32.mxu0 0.0
    %v4297 = vand.u32 %v2967, 4294901760
    %v4298 = vsub.f32 %v2967, %v4297
    %v4299 = vand.u32 %v4298, 4294901760
    %v4300 = vsub.f32 %v4298, %v4299
    %v4301 = vand.u32 %v4300, 4294901760
    %4302 = vmatmul.mubr.f32.gmra.mxu0 %v4301
    %v4303 = vpop.f32.mrf.mxu0
    %v4304 = vadd.f32 0.0, %v4303
    %v4305 = vpop.f32.mrf.mxu0
    %4306 = vdwg.mxu0
    %4307 = vmatprep.subr.mxu0 0.0
    %4308 = vmatpush1.msra.mxu0 0.0
    %4309 = vmatprep.subr.mxu0 0.0
    %4310 = vmatpush1.msra.mxu0 0.0
    %4311 = vmatprep.subr.mxu0 0.0
    %4312 = vmatpush1.msra.mxu0 0.0
    %4313 = vmatprep.subr.mxu0 0.0
    %4314 = vmatpush1.msra.mxu0 0.0
    %4315 = vmatprep.subr.mxu0 0.0
    %4316 = vmatpush1.msra.mxu0 0.0
    %4317 = vmatprep.subr.mxu0 0.0
    %4318 = vmatpush1.msra.mxu0 0.0
    %4319 = vmatprep.subr.mxu0 0.0
    %4320 = vmatpush1.msra.mxu0 0.0
    %4321 = vmatprep.subr.mxu0 0.0
    %4322 = vmatpush1.msra.mxu0 0.0
    %4323 = vmatprep.subr.mxu0 0.0
    %4324 = vmatpush1.msra.mxu0 0.0
    %4325 = vmatprep.subr.mxu0 0.0
    %4326 = vmatpush1.msra.mxu0 0.0
    %4327 = vmatprep.subr.mxu0 0.0
    %4328 = vmatpush1.msra.mxu0 0.0
    %4329 = vmatprep.subr.mxu0 0.0
    %4330 = vmatpush1.msra.mxu0 0.0
    %4331 = vmatprep.subr.mxu0 0.0
    %v4332 = vand.u32 %v4217, 4294901760
    %v4333 = vsub.f32 %v4217, %v4332
    %v4334 = vand.u32 %v4333, 4294901760
    %v4335 = vsub.f32 %v4333, %v4334
    %v4336 = vand.u32 %v4335, 4294901760
    %4337 = vmatpush1.msra.mxu0 %v4336
    %4338 = vmatprep.subr.mxu0 0.0
    %v4339 = vand.u32 %v4216, 4294901760
    %v4340 = vsub.f32 %v4216, %v4339
    %v4341 = vand.u32 %v4340, 4294901760
    %v4342 = vsub.f32 %v4340, %v4341
    %v4343 = vand.u32 %v4342, 4294901760
    %4344 = vmatpush1.msra.mxu0 %v4343
    %4345 = vmatprep.subr.mxu0 0.0
    %v4346 = vand.u32 %v4215, 4294901760
    %v4347 = vsub.f32 %v4215, %v4346
    %v4348 = vand.u32 %v4347, 4294901760
    %v4349 = vsub.f32 %v4347, %v4348
    %v4350 = vand.u32 %v4349, 4294901760
    %4351 = vmatpush1.msra.mxu0 %v4350
    %4352 = vmatprep.subr.mxu0 0.0
    %v4353 = vand.u32 %v4214, 4294901760
    %v4354 = vsub.f32 %v4214, %v4353
    %v4355 = vand.u32 %v4354, 4294901760
    %v4356 = vsub.f32 %v4354, %v4355
    %v4357 = vand.u32 %v4356, 4294901760
    %4358 = vmatpush1.msra.mxu0 %v4357
    %4359 = vmatprep.subr.mxu0 0.0
    %4360 = vmatpush2.msra.mxu0 0.0
    %4361 = vmatprep.subr.mxu0 0.0
    %4362 = vmatpush2.msra.mxu0 0.0
    %4363 = vmatprep.subr.mxu0 0.0
    %4364 = vmatpush2.msra.mxu0 0.0
    %4365 = vmatprep.subr.mxu0 0.0
    %4366 = vmatpush2.msra.mxu0 0.0
    %4367 = vmatprep.subr.mxu0 0.0
    %4368 = vmatpush2.msra.mxu0 0.0
    %4369 = vmatprep.subr.mxu0 0.0
    %4370 = vmatpush2.msra.mxu0 0.0
    %4371 = vmatprep.subr.mxu0 0.0
    %4372 = vmatpush2.msra.mxu0 0.0
    %4373 = vmatprep.subr.mxu0 0.0
    %4374 = vmatpush2.msra.mxu0 0.0
    %4375 = vmatprep.subr.mxu0 0.0
    %4376 = vmatpush2.msra.mxu0 0.0
    %4377 = vmatprep.subr.mxu0 0.0
    %4378 = vmatpush2.msra.mxu0 0.0
    %4379 = vmatprep.subr.mxu0 0.0
    %4380 = vmatpush2.msra.mxu0 0.0
    %4381 = vmatprep.subr.mxu0 0.0
    %4382 = vmatpush2.msra.mxu0 0.0
    %4383 = vmatprep.subr.mxu0 0.0
    %4384 = vmatpush2.msra.mxu0 0.0
    %4385 = vmatprep.subr.mxu0 0.0
    %4386 = vmatpush2.msra.mxu0 0.0
    %4387 = vmatprep.subr.mxu0 0.0
    %4388 = vmatpush2.msra.mxu0 0.0
    %4389 = vmatprep.subr.mxu0 0.0
    %4390 = vmatpush2.msra.mxu0 0.0
    %4391 = vmatprep.mubr.f32.mxu0 0.0
    %v4392 = vand.u32 %v2964, 4294901760
    %4393 = vmatmul.mubr.f32.gmra.mxu0 %v4392
    %v4394 = vpop.f32.mrf.mxu0
    %v4395 = vadd.f32 %v4294, %v4394
    %v4396 = vpop.f32.mrf.mxu0
    %4397 = vmatprep.mubr.f32.mxu0 0.0
    %v4398 = vand.u32 %v2967, 4294901760
    %4399 = vmatmul.mubr.f32.gmra.mxu0 %v4398
    %v4400 = vpop.f32.mrf.mxu0
    %v4401 = vadd.f32 %v4304, %v4400
    %v4402 = vpop.f32.mrf.mxu0
    %4403 = vdwg.mxu0
    %4404 = vmatprep.subr.mxu0 0.0
    %4405 = vmatpush1.msra.mxu0 0.0
    %4406 = vmatprep.subr.mxu0 0.0
    %4407 = vmatpush1.msra.mxu0 0.0
    %4408 = vmatprep.subr.mxu0 0.0
    %4409 = vmatpush1.msra.mxu0 0.0
    %4410 = vmatprep.subr.mxu0 0.0
    %4411 = vmatpush1.msra.mxu0 0.0
    %4412 = vmatprep.subr.mxu0 0.0
    %4413 = vmatpush1.msra.mxu0 0.0
    %4414 = vmatprep.subr.mxu0 0.0
    %4415 = vmatpush1.msra.mxu0 0.0
    %4416 = vmatprep.subr.mxu0 0.0
    %4417 = vmatpush1.msra.mxu0 0.0
    %4418 = vmatprep.subr.mxu0 0.0
    %4419 = vmatpush1.msra.mxu0 0.0
    %4420 = vmatprep.subr.mxu0 0.0
    %4421 = vmatpush1.msra.mxu0 0.0
    %4422 = vmatprep.subr.mxu0 0.0
    %4423 = vmatpush1.msra.mxu0 0.0
    %4424 = vmatprep.subr.mxu0 0.0
    %4425 = vmatpush1.msra.mxu0 0.0
    %4426 = vmatprep.subr.mxu0 0.0
    %4427 = vmatpush1.msra.mxu0 0.0
    %4428 = vmatprep.subr.mxu0 0.0
    %v4429 = vand.u32 %v4217, 4294901760
    %v4430 = vsub.f32 %v4217, %v4429
    %4431 = vmatpush1.msra.mxu0 %v4430
    %4432 = vmatprep.subr.mxu0 0.0
    %v4433 = vand.u32 %v4216, 4294901760
    %v4434 = vsub.f32 %v4216, %v4433
    %4435 = vmatpush1.msra.mxu0 %v4434
    %4436 = vmatprep.subr.mxu0 0.0
    %v4437 = vand.u32 %v4215, 4294901760
    %v4438 = vsub.f32 %v4215, %v4437
    %4439 = vmatpush1.msra.mxu0 %v4438
    %4440 = vmatprep.subr.mxu0 0.0
    %v4441 = vand.u32 %v4214, 4294901760
    %v4442 = vsub.f32 %v4214, %v4441
    %4443 = vmatpush1.msra.mxu0 %v4442
    %4444 = vmatprep.subr.mxu0 0.0
    %4445 = vmatpush2.msra.mxu0 0.0
    %4446 = vmatprep.subr.mxu0 0.0
    %4447 = vmatpush2.msra.mxu0 0.0
    %4448 = vmatprep.subr.mxu0 0.0
    %4449 = vmatpush2.msra.mxu0 0.0
    %4450 = vmatprep.subr.mxu0 0.0
    %4451 = vmatpush2.msra.mxu0 0.0
    %4452 = vmatprep.subr.mxu0 0.0
    %4453 = vmatpush2.msra.mxu0 0.0
    %4454 = vmatprep.subr.mxu0 0.0
    %4455 = vmatpush2.msra.mxu0 0.0
    %4456 = vmatprep.subr.mxu0 0.0
    %4457 = vmatpush2.msra.mxu0 0.0
    %4458 = vmatprep.subr.mxu0 0.0
    %4459 = vmatpush2.msra.mxu0 0.0
    %4460 = vmatprep.subr.mxu0 0.0
    %4461 = vmatpush2.msra.mxu0 0.0
    %4462 = vmatprep.subr.mxu0 0.0
    %4463 = vmatpush2.msra.mxu0 0.0
    %4464 = vmatprep.subr.mxu0 0.0
    %4465 = vmatpush2.msra.mxu0 0.0
    %4466 = vmatprep.subr.mxu0 0.0
    %4467 = vmatpush2.msra.mxu0 0.0
    %4468 = vmatprep.subr.mxu0 0.0
    %4469 = vmatpush2.msra.mxu0 0.0
    %4470 = vmatprep.subr.mxu0 0.0
    %4471 = vmatpush2.msra.mxu0 0.0
    %4472 = vmatprep.subr.mxu0 0.0
    %4473 = vmatpush2.msra.mxu0 0.0
    %4474 = vmatprep.subr.mxu0 0.0
    %4475 = vmatpush2.msra.mxu0 0.0
    %4476 = vmatprep.mubr.f32.mxu0 0.0
    %v4477 = vand.u32 %v2964, 4294901760
    %v4478 = vsub.f32 %v2964, %v4477
    %4479 = vmatmul.mubr.f32.gmra.mxu0 %v4478
    %v4480 = vpop.f32.mrf.mxu0
    %v4481 = vadd.f32 %v4395, %v4480
    %v4482 = vpop.f32.mrf.mxu0
    %4483 = vmatprep.mubr.f32.mxu0 0.0
    %v4484 = vand.u32 %v2967, 4294901760
    %v4485 = vsub.f32 %v2967, %v4484
    %4486 = vmatmul.mubr.f32.gmra.mxu0 %v4485
    %v4487 = vpop.f32.mrf.mxu0
    %v4488 = vadd.f32 %v4401, %v4487
    %v4489 = vpop.f32.mrf.mxu0
    %4490 = vdwg.mxu0
    %4491 = vmatprep.subr.mxu0 0.0
    %4492 = vmatpush1.msra.mxu0 0.0
    %4493 = vmatprep.subr.mxu0 0.0
    %4494 = vmatpush1.msra.mxu0 0.0
    %4495 = vmatprep.subr.mxu0 0.0
    %4496 = vmatpush1.msra.mxu0 0.0
    %4497 = vmatprep.subr.mxu0 0.0
    %4498 = vmatpush1.msra.mxu0 0.0
    %4499 = vmatprep.subr.mxu0 0.0
    %4500 = vmatpush1.msra.mxu0 0.0
    %4501 = vmatprep.subr.mxu0 0.0
    %4502 = vmatpush1.msra.mxu0 0.0
    %4503 = vmatprep.subr.mxu0 0.0
    %4504 = vmatpush1.msra.mxu0 0.0
    %4505 = vmatprep.subr.mxu0 0.0
    %4506 = vmatpush1.msra.mxu0 0.0
    %4507 = vmatprep.subr.mxu0 0.0
    %4508 = vmatpush1.msra.mxu0 0.0
    %4509 = vmatprep.subr.mxu0 0.0
    %4510 = vmatpush1.msra.mxu0 0.0
    %4511 = vmatprep.subr.mxu0 0.0
    %4512 = vmatpush1.msra.mxu0 0.0
    %4513 = vmatprep.subr.mxu0 0.0
    %4514 = vmatpush1.msra.mxu0 0.0
    %4515 = vmatprep.subr.mxu0 0.0
    %v4516 = vand.u32 %v4217, 4294901760
    %4517 = vmatpush1.msra.mxu0 %v4516
    %4518 = vmatprep.subr.mxu0 0.0
    %v4519 = vand.u32 %v4216, 4294901760
    %4520 = vmatpush1.msra.mxu0 %v4519
    %4521 = vmatprep.subr.mxu0 0.0
    %v4522 = vand.u32 %v4215, 4294901760
    %4523 = vmatpush1.msra.mxu0 %v4522
    %4524 = vmatprep.subr.mxu0 0.0
    %v4525 = vand.u32 %v4214, 4294901760
    %4526 = vmatpush1.msra.mxu0 %v4525
    %4527 = vmatprep.subr.mxu0 0.0
    %4528 = vmatpush2.msra.mxu0 0.0
    %4529 = vmatprep.subr.mxu0 0.0
    %4530 = vmatpush2.msra.mxu0 0.0
    %4531 = vmatprep.subr.mxu0 0.0
    %4532 = vmatpush2.msra.mxu0 0.0
    %4533 = vmatprep.subr.mxu0 0.0
    %4534 = vmatpush2.msra.mxu0 0.0
    %4535 = vmatprep.subr.mxu0 0.0
    %4536 = vmatpush2.msra.mxu0 0.0
    %4537 = vmatprep.subr.mxu0 0.0
    %4538 = vmatpush2.msra.mxu0 0.0
    %4539 = vmatprep.subr.mxu0 0.0
    %4540 = vmatpush2.msra.mxu0 0.0
    %4541 = vmatprep.subr.mxu0 0.0
    %4542 = vmatpush2.msra.mxu0 0.0
    %4543 = vmatprep.subr.mxu0 0.0
    %4544 = vmatpush2.msra.mxu0 0.0
    %4545 = vmatprep.subr.mxu0 0.0
    %4546 = vmatpush2.msra.mxu0 0.0
    %4547 = vmatprep.subr.mxu0 0.0
    %4548 = vmatpush2.msra.mxu0 0.0
    %4549 = vmatprep.subr.mxu0 0.0
    %4550 = vmatpush2.msra.mxu0 0.0
    %4551 = vmatprep.subr.mxu0 0.0
    %4552 = vmatpush2.msra.mxu0 0.0
    %4553 = vmatprep.subr.mxu0 0.0
    %4554 = vmatpush2.msra.mxu0 0.0
    %4555 = vmatprep.subr.mxu0 0.0
    %4556 = vmatpush2.msra.mxu0 0.0
    %4557 = vmatprep.subr.mxu0 0.0
    %4558 = vmatpush2.msra.mxu0 0.0
    %4559 = vmatprep.mubr.f32.mxu0 0.0
    %v4560 = vand.u32 %v2964, 4294901760
    %v4561 = vsub.f32 %v2964, %v4560
    %v4562 = vand.u32 %v4561, 4294901760
    %4563 = vmatmul.mubr.f32.gmra.mxu0 %v4562
    %v4564 = vpop.f32.mrf.mxu0
    %v4565 = vadd.f32 %v4481, %v4564
    %v4566 = vpop.f32.mrf.mxu0
    %4567 = vmatprep.mubr.f32.mxu0 0.0
    %v4568 = vand.u32 %v2967, 4294901760
    %v4569 = vsub.f32 %v2967, %v4568
    %v4570 = vand.u32 %v4569, 4294901760
    %4571 = vmatmul.mubr.f32.gmra.mxu0 %v4570
    %v4572 = vpop.f32.mrf.mxu0
    %v4573 = vadd.f32 %v4488, %v4572
    %v4574 = vpop.f32.mrf.mxu0
    %4575 = vdwg.mxu0
    %4576 = vmatprep.subr.mxu0 0.0
    %4577 = vmatpush1.msra.mxu0 0.0
    %4578 = vmatprep.subr.mxu0 0.0
    %4579 = vmatpush1.msra.mxu0 0.0
    %4580 = vmatprep.subr.mxu0 0.0
    %4581 = vmatpush1.msra.mxu0 0.0
    %4582 = vmatprep.subr.mxu0 0.0
    %4583 = vmatpush1.msra.mxu0 0.0
    %4584 = vmatprep.subr.mxu0 0.0
    %4585 = vmatpush1.msra.mxu0 0.0
    %4586 = vmatprep.subr.mxu0 0.0
    %4587 = vmatpush1.msra.mxu0 0.0
    %4588 = vmatprep.subr.mxu0 0.0
    %4589 = vmatpush1.msra.mxu0 0.0
    %4590 = vmatprep.subr.mxu0 0.0
    %4591 = vmatpush1.msra.mxu0 0.0
    %4592 = vmatprep.subr.mxu0 0.0
    %4593 = vmatpush1.msra.mxu0 0.0
    %4594 = vmatprep.subr.mxu0 0.0
    %4595 = vmatpush1.msra.mxu0 0.0
    %4596 = vmatprep.subr.mxu0 0.0
    %4597 = vmatpush1.msra.mxu0 0.0
    %4598 = vmatprep.subr.mxu0 0.0
    %4599 = vmatpush1.msra.mxu0 0.0
    %4600 = vmatprep.subr.mxu0 0.0
    %v4601 = vand.u32 %v4217, 4294901760
    %v4602 = vsub.f32 %v4217, %v4601
    %v4603 = vand.u32 %v4602, 4294901760
    %4604 = vmatpush1.msra.mxu0 %v4603
    %4605 = vmatprep.subr.mxu0 0.0
    %v4606 = vand.u32 %v4216, 4294901760
    %v4607 = vsub.f32 %v4216, %v4606
    %v4608 = vand.u32 %v4607, 4294901760
    %4609 = vmatpush1.msra.mxu0 %v4608
    %4610 = vmatprep.subr.mxu0 0.0
    %v4611 = vand.u32 %v4215, 4294901760
    %v4612 = vsub.f32 %v4215, %v4611
    %v4613 = vand.u32 %v4612, 4294901760
    %4614 = vmatpush1.msra.mxu0 %v4613
    %4615 = vmatprep.subr.mxu0 0.0
    %v4616 = vand.u32 %v4214, 4294901760
    %v4617 = vsub.f32 %v4214, %v4616
    %v4618 = vand.u32 %v4617, 4294901760
    %4619 = vmatpush1.msra.mxu0 %v4618
    %4620 = vmatprep.subr.mxu0 0.0
    %4621 = vmatpush2.msra.mxu0 0.0
    %4622 = vmatprep.subr.mxu0 0.0
    %4623 = vmatpush2.msra.mxu0 0.0
    %4624 = vmatprep.subr.mxu0 0.0
    %4625 = vmatpush2.msra.mxu0 0.0
    %4626 = vmatprep.subr.mxu0 0.0
    %4627 = vmatpush2.msra.mxu0 0.0
    %4628 = vmatprep.subr.mxu0 0.0
    %4629 = vmatpush2.msra.mxu0 0.0
    %4630 = vmatprep.subr.mxu0 0.0
    %4631 = vmatpush2.msra.mxu0 0.0
    %4632 = vmatprep.subr.mxu0 0.0
    %4633 = vmatpush2.msra.mxu0 0.0
    %4634 = vmatprep.subr.mxu0 0.0
    %4635 = vmatpush2.msra.mxu0 0.0
    %4636 = vmatprep.subr.mxu0 0.0
    %4637 = vmatpush2.msra.mxu0 0.0
    %4638 = vmatprep.subr.mxu0 0.0
    %4639 = vmatpush2.msra.mxu0 0.0
    %4640 = vmatprep.subr.mxu0 0.0
    %4641 = vmatpush2.msra.mxu0 0.0
    %4642 = vmatprep.subr.mxu0 0.0
    %4643 = vmatpush2.msra.mxu0 0.0
    %4644 = vmatprep.subr.mxu0 0.0
    %4645 = vmatpush2.msra.mxu0 0.0
    %4646 = vmatprep.subr.mxu0 0.0
    %4647 = vmatpush2.msra.mxu0 0.0
    %4648 = vmatprep.subr.mxu0 0.0
    %4649 = vmatpush2.msra.mxu0 0.0
    %4650 = vmatprep.subr.mxu0 0.0
    %4651 = vmatpush2.msra.mxu0 0.0
    %4652 = vmatprep.mubr.f32.mxu0 0.0
    %v4653 = vand.u32 %v2964, 4294901760
    %4654 = vmatmul.mubr.f32.gmra.mxu0 %v4653
    %v4655 = vpop.f32.mrf.mxu0
    %v4656 = vadd.f32 %v4565, %v4655
    %v4657 = vpop.f32.mrf.mxu0
    %4658 = vmatprep.mubr.f32.mxu0 0.0
    %v4659 = vand.u32 %v2967, 4294901760
    %4660 = vmatmul.mubr.f32.gmra.mxu0 %v4659
    %v4661 = vpop.f32.mrf.mxu0
    %v4662 = vadd.f32 %v4573, %v4661
    %v4663 = vpop.f32.mrf.mxu0
    %4664 = vdwg.mxu0
    %4665 = vmatprep.subr.mxu0 0.0
    %4666 = vmatpush1.msra.mxu0 0.0
    %4667 = vmatprep.subr.mxu0 0.0
    %4668 = vmatpush1.msra.mxu0 0.0
    %4669 = vmatprep.subr.mxu0 0.0
    %4670 = vmatpush1.msra.mxu0 0.0
    %4671 = vmatprep.subr.mxu0 0.0
    %4672 = vmatpush1.msra.mxu0 0.0
    %4673 = vmatprep.subr.mxu0 0.0
    %4674 = vmatpush1.msra.mxu0 0.0
    %4675 = vmatprep.subr.mxu0 0.0
    %4676 = vmatpush1.msra.mxu0 0.0
    %4677 = vmatprep.subr.mxu0 0.0
    %4678 = vmatpush1.msra.mxu0 0.0
    %4679 = vmatprep.subr.mxu0 0.0
    %4680 = vmatpush1.msra.mxu0 0.0
    %4681 = vmatprep.subr.mxu0 0.0
    %4682 = vmatpush1.msra.mxu0 0.0
    %4683 = vmatprep.subr.mxu0 0.0
    %4684 = vmatpush1.msra.mxu0 0.0
    %4685 = vmatprep.subr.mxu0 0.0
    %4686 = vmatpush1.msra.mxu0 0.0
    %4687 = vmatprep.subr.mxu0 0.0
    %4688 = vmatpush1.msra.mxu0 0.0
    %4689 = vmatprep.subr.mxu0 0.0
    %v4690 = vand.u32 %v4217, 4294901760
    %4691 = vmatpush1.msra.mxu0 %v4690
    %4692 = vmatprep.subr.mxu0 0.0
    %v4693 = vand.u32 %v4216, 4294901760
    %4694 = vmatpush1.msra.mxu0 %v4693
    %4695 = vmatprep.subr.mxu0 0.0
    %v4696 = vand.u32 %v4215, 4294901760
    %4697 = vmatpush1.msra.mxu0 %v4696
    %4698 = vmatprep.subr.mxu0 0.0
    %v4699 = vand.u32 %v4214, 4294901760
    %4700 = vmatpush1.msra.mxu0 %v4699
    %4701 = vmatprep.subr.mxu0 0.0
    %4702 = vmatpush2.msra.mxu0 0.0
    %4703 = vmatprep.subr.mxu0 0.0
    %4704 = vmatpush2.msra.mxu0 0.0
    %4705 = vmatprep.subr.mxu0 0.0
    %4706 = vmatpush2.msra.mxu0 0.0
    %4707 = vmatprep.subr.mxu0 0.0
    %4708 = vmatpush2.msra.mxu0 0.0
    %4709 = vmatprep.subr.mxu0 0.0
    %4710 = vmatpush2.msra.mxu0 0.0
    %4711 = vmatprep.subr.mxu0 0.0
    %4712 = vmatpush2.msra.mxu0 0.0
    %4713 = vmatprep.subr.mxu0 0.0
    %4714 = vmatpush2.msra.mxu0 0.0
    %4715 = vmatprep.subr.mxu0 0.0
    %4716 = vmatpush2.msra.mxu0 0.0
    %4717 = vmatprep.subr.mxu0 0.0
    %4718 = vmatpush2.msra.mxu0 0.0
    %4719 = vmatprep.subr.mxu0 0.0
    %4720 = vmatpush2.msra.mxu0 0.0
    %4721 = vmatprep.subr.mxu0 0.0
    %4722 = vmatpush2.msra.mxu0 0.0
    %4723 = vmatprep.subr.mxu0 0.0
    %4724 = vmatpush2.msra.mxu0 0.0
    %4725 = vmatprep.subr.mxu0 0.0
    %4726 = vmatpush2.msra.mxu0 0.0
    %4727 = vmatprep.subr.mxu0 0.0
    %4728 = vmatpush2.msra.mxu0 0.0
    %4729 = vmatprep.subr.mxu0 0.0
    %4730 = vmatpush2.msra.mxu0 0.0
    %4731 = vmatprep.subr.mxu0 0.0
    %4732 = vmatpush2.msra.mxu0 0.0
    %4733 = vmatprep.mubr.f32.mxu0 0.0
    %v4734 = vand.u32 %v2964, 4294901760
    %4735 = vmatmul.mubr.f32.gmra.mxu0 %v4734
    %v4736 = vpop.f32.mrf.mxu0
    %v4737 = vadd.f32 %v4656, %v4736
    %v4738 = vpop.f32.mrf.mxu0
    %4739 = vmatprep.mubr.f32.mxu0 0.0
    %v4740 = vand.u32 %v2967, 4294901760
    %4741 = vmatmul.mubr.f32.gmra.mxu0 %v4740
    %v4742 = vpop.f32.mrf.mxu0
    %v4743 = vadd.f32 %v4662, %v4742
    %v4744 = vpop.f32.mrf.mxu0
    %4745 = vdwg.mxu0
    %v4746 = vmul.f32 %v4737, %v3499
    %v4747 = vmul.f32 %v4743, %v3499
    %v4748 = vmul.f32 %v3548, %v3506
    %v4749 = vmul.f32 %v3549, %v3506
    %v4750 = vadd.f32 %v4746, %v4748
    %v4751 = vadd.f32 %v4747, %v4749
    %v4752 = vmul.f32 %v3566, %v3515
    %v4753 = vmul.f32 %v3567, %v3515
    %v4754 = vadd.f32 %v4750, %v4752
    %v4755 = vadd.f32 %v4751, %v4753
    %v4756 = vadd.f32 %v4754, %v3524
    %v4757 = vadd.f32 %v4755, %v3524
    %v4758 = vxor.u32 %v4756, 2147483648
    %v4759 = vxor.u32 %v4757, 2147483648
    %v4760 = vmul.f32 %v4758, 1.442695
    %v4761 = vpow.pop %v4760
    %v4762 = vmul.f32 %v4759, 1.442695
    %v4763 = vpow.pop %v4762
    %v4764 = vadd.f32 %v4761, 1.0
    %v4765 = vadd.f32 %v4763, 1.0
    %v4766 = vrcp.pop %v4764
    %v4767 = vmul.f32 1.0, %v4766
    %v4768 = vrcp.pop %v4765
    %v4769 = vmul.f32 1.0, %v4768
    %v4770 = vsub.f32 1.0, %v4767
    %v4771 = vsub.f32 1.0, %v4769
    %v4772 = vmul.f32 %v4770, %v3548
    %v4773 = vmul.f32 %v4771, %v3549
    %v4774 = vmul.f32 %v3566, %v4767
    %v4775 = vmul.f32 %v3567, %v4769
    %v4776 = vmul.f32 %v4774, %v4737
    %v4777 = vmul.f32 %v4775, %v4743
    %v4778 = vadd.f32 %v4772, %v4776
    %v4779 = vadd.f32 %v4773, %v4777
    %vm4780 = vcmp.ne.f32.partialorder %v45, %v4778
    %vm4781 = vcmp.ne.f32.partialorder %v46, %v4779
    %v4782 = vsel %vm4780, 1, 0
    %v4783 = vsel %vm4781, 1, 0
    %v4784 = vcvt.s32.f32 %v4782
    %v4785 = vcvt.s32.f32 %v4783
    %vm4786 = vcmp.gt.f32.partialorder %v3564, 0.0
    %vm4787 = vcmp.gt.f32.partialorder %v3565, 0.0
    %v4788 = vsel %vm4786, 1, 0
    %v4789 = vsel %vm4787, 1, 0
    %v4790 = vcvt.s32.f32 %v4788
    %v4791 = vcvt.s32.f32 %v4789
    %v4792 = vmax.f32 %v4784, %v4790
    %v4793 = vmax.f32 %v4785, %v4791
    %v4794 = vsel %vm2278, 0.0, %v4792
    %v4795 = vsel %vm2278, 0.0, %v4793
    %v4796 = vsub.f32 1.0, %v4794
    %v4797 = vsel %vm2281, %v4794, 0.0
    %4798 = vadd.xlane.f32.xlu0 %v4797
    %v4799 = vpop.xlane.xlu0 %4798
    %v4800 = vsel %vm2281, %v4795, 0.0
    %4801 = vadd.xlane.f32.xlu0 %v4800
    %v4802 = vpop.xlane.xlu0 %4801
    %v4803 = vmul.f32 %v4799, %v2288
    %v4804 = vmul.f32 %v4802, %v2288
    %v4805 = vsel %vm2281, %v4778, %v4803
    %v4806 = vsel %vm2281, %v4779, %v4804
    %4807 = vmatprep.subr.mxu0 0.0
    %4808 = vmatpush1.msra.mxu0 0.0
    %4809 = vmatprep.subr.mxu0 0.0
    %4810 = vmatpush1.msra.mxu0 0.0
    %4811 = vmatprep.subr.mxu0 0.0
    %4812 = vmatpush1.msra.mxu0 0.0
    %4813 = vmatprep.subr.mxu0 0.0
    %4814 = vmatpush1.msra.mxu0 0.0
    %4815 = vmatprep.subr.mxu0 0.0
    %4816 = vmatpush1.msra.mxu0 0.0
    %4817 = vmatprep.subr.mxu0 0.0
    %4818 = vmatpush1.msra.mxu0 0.0
    %4819 = vmatprep.subr.mxu0 0.0
    %4820 = vmatpush1.msra.mxu0 0.0
    %4821 = vmatprep.subr.mxu0 0.0
    %4822 = vmatpush1.msra.mxu0 0.0
    %4823 = vmatprep.subr.mxu0 0.0
    %4824 = vmatpush1.msra.mxu0 0.0
    %4825 = vmatprep.subr.mxu0 0.0
    %4826 = vmatpush1.msra.mxu0 0.0
    %4827 = vmatprep.subr.mxu0 0.0
    %4828 = vmatpush1.msra.mxu0 0.0
    %4829 = vmatprep.subr.mxu0 0.0
    %4830 = vmatpush1.msra.mxu0 0.0
    %4831 = vmatprep.subr.mxu0 0.0
    %4832 = vmatpush1.msra.mxu0 0.0
    %4833 = vmatprep.subr.mxu0 0.0
    %4834 = vmatpush1.msra.mxu0 0.0
    %4835 = vmatprep.subr.mxu0 0.0
    %v4836 = vand.u32 %v4806, 4294901760
    %4837 = vmatpush1.msra.mxu0 %v4836
    %4838 = vmatprep.subr.mxu0 0.0
    %v4839 = vand.u32 %v4805, 4294901760
    %4840 = vmatpush1.msra.mxu0 %v4839
    %4841 = vmatprep.subr.mxu0 0.0
    %4842 = vmatpush2.msra.mxu0 0.0
    %4843 = vmatprep.subr.mxu0 0.0
    %4844 = vmatpush2.msra.mxu0 0.0
    %4845 = vmatprep.subr.mxu0 0.0
    %4846 = vmatpush2.msra.mxu0 0.0
    %4847 = vmatprep.subr.mxu0 0.0
    %4848 = vmatpush2.msra.mxu0 0.0
    %4849 = vmatprep.subr.mxu0 0.0
    %4850 = vmatpush2.msra.mxu0 0.0
    %4851 = vmatprep.subr.mxu0 0.0
    %4852 = vmatpush2.msra.mxu0 0.0
    %4853 = vmatprep.subr.mxu0 0.0
    %4854 = vmatpush2.msra.mxu0 0.0
    %4855 = vmatprep.subr.mxu0 0.0
    %4856 = vmatpush2.msra.mxu0 0.0
    %4857 = vmatprep.subr.mxu0 0.0
    %4858 = vmatpush2.msra.mxu0 0.0
    %4859 = vmatprep.subr.mxu0 0.0
    %4860 = vmatpush2.msra.mxu0 0.0
    %4861 = vmatprep.subr.mxu0 0.0
    %4862 = vmatpush2.msra.mxu0 0.0
    %4863 = vmatprep.subr.mxu0 0.0
    %4864 = vmatpush2.msra.mxu0 0.0
    %4865 = vmatprep.subr.mxu0 0.0
    %4866 = vmatpush2.msra.mxu0 0.0
    %4867 = vmatprep.subr.mxu0 0.0
    %4868 = vmatpush2.msra.mxu0 0.0
    %4869 = vmatprep.subr.mxu0 0.0
    %4870 = vmatpush2.msra.mxu0 0.0
    %4871 = vmatprep.subr.mxu0 0.0
    %4872 = vmatpush2.msra.mxu0 0.0
    %4873 = vmatprep.mubr.f32.mxu0 0.0
    %v4874 = vand.u32 %v2295, 4294901760
    %v4875 = vsub.f32 %v2295, %v4874
    %v4876 = vand.u32 %v4875, 4294901760
    %v4877 = vsub.f32 %v4875, %v4876
    %v4878 = vand.u32 %v4877, 4294901760
    %4879 = vmatmul.mubr.f32.gmra.mxu0 %v4878
    %v4880 = vpop.f32.mrf.mxu0
    %v4881 = vadd.f32 0.0, %v4880
    %v4882 = vpop.f32.mrf.mxu0
    %4883 = vmatprep.mubr.f32.mxu0 0.0
    %v4884 = vand.u32 %v2298, 4294901760
    %v4885 = vsub.f32 %v2298, %v4884
    %v4886 = vand.u32 %v4885, 4294901760
    %v4887 = vsub.f32 %v4885, %v4886
    %v4888 = vand.u32 %v4887, 4294901760
    %4889 = vmatmul.mubr.f32.gmra.mxu0 %v4888
    %v4890 = vpop.f32.mrf.mxu0
    %v4891 = vadd.f32 0.0, %v4890
    %v4892 = vpop.f32.mrf.mxu0
    %4893 = vmatprep.mubr.f32.mxu0 0.0
    %v4894 = vand.u32 %v2301, 4294901760
    %v4895 = vsub.f32 %v2301, %v4894
    %v4896 = vand.u32 %v4895, 4294901760
    %v4897 = vsub.f32 %v4895, %v4896
    %v4898 = vand.u32 %v4897, 4294901760
    %4899 = vmatmul.mubr.f32.gmra.mxu0 %v4898
    %v4900 = vpop.f32.mrf.mxu0
    %v4901 = vadd.f32 0.0, %v4900
    %v4902 = vpop.f32.mrf.mxu0
    %4903 = vmatprep.mubr.f32.mxu0 0.0
    %v4904 = vand.u32 %v2304, 4294901760
    %v4905 = vsub.f32 %v2304, %v4904
    %v4906 = vand.u32 %v4905, 4294901760
    %v4907 = vsub.f32 %v4905, %v4906
    %v4908 = vand.u32 %v4907, 4294901760
    %4909 = vmatmul.mubr.f32.gmra.mxu0 %v4908
    %v4910 = vpop.f32.mrf.mxu0
    %v4911 = vadd.f32 0.0, %v4910
    %v4912 = vpop.f32.mrf.mxu0
    %4913 = vdwg.mxu0
    %4914 = vmatprep.subr.mxu0 0.0
    %4915 = vmatpush1.msra.mxu0 0.0
    %4916 = vmatprep.subr.mxu0 0.0
    %4917 = vmatpush1.msra.mxu0 0.0
    %4918 = vmatprep.subr.mxu0 0.0
    %4919 = vmatpush1.msra.mxu0 0.0
    %4920 = vmatprep.subr.mxu0 0.0
    %4921 = vmatpush1.msra.mxu0 0.0
    %4922 = vmatprep.subr.mxu0 0.0
    %4923 = vmatpush1.msra.mxu0 0.0
    %4924 = vmatprep.subr.mxu0 0.0
    %4925 = vmatpush1.msra.mxu0 0.0
    %4926 = vmatprep.subr.mxu0 0.0
    %4927 = vmatpush1.msra.mxu0 0.0
    %4928 = vmatprep.subr.mxu0 0.0
    %4929 = vmatpush1.msra.mxu0 0.0
    %4930 = vmatprep.subr.mxu0 0.0
    %4931 = vmatpush1.msra.mxu0 0.0
    %4932 = vmatprep.subr.mxu0 0.0
    %4933 = vmatpush1.msra.mxu0 0.0
    %4934 = vmatprep.subr.mxu0 0.0
    %4935 = vmatpush1.msra.mxu0 0.0
    %4936 = vmatprep.subr.mxu0 0.0
    %4937 = vmatpush1.msra.mxu0 0.0
    %4938 = vmatprep.subr.mxu0 0.0
    %4939 = vmatpush1.msra.mxu0 0.0
    %4940 = vmatprep.subr.mxu0 0.0
    %4941 = vmatpush1.msra.mxu0 0.0
    %4942 = vmatprep.subr.mxu0 0.0
    %v4943 = vand.u32 %v4806, 4294901760
    %v4944 = vsub.f32 %v4806, %v4943
    %v4945 = vand.u32 %v4944, 4294901760
    %v4946 = vsub.f32 %v4944, %v4945
    %v4947 = vand.u32 %v4946, 4294901760
    %4948 = vmatpush1.msra.mxu0 %v4947
    %4949 = vmatprep.subr.mxu0 0.0
    %v4950 = vand.u32 %v4805, 4294901760
    %v4951 = vsub.f32 %v4805, %v4950
    %v4952 = vand.u32 %v4951, 4294901760
    %v4953 = vsub.f32 %v4951, %v4952
    %v4954 = vand.u32 %v4953, 4294901760
    %4955 = vmatpush1.msra.mxu0 %v4954
    %4956 = vmatprep.subr.mxu0 0.0
    %4957 = vmatpush2.msra.mxu0 0.0
    %4958 = vmatprep.subr.mxu0 0.0
    %4959 = vmatpush2.msra.mxu0 0.0
    %4960 = vmatprep.subr.mxu0 0.0
    %4961 = vmatpush2.msra.mxu0 0.0
    %4962 = vmatprep.subr.mxu0 0.0
    %4963 = vmatpush2.msra.mxu0 0.0
    %4964 = vmatprep.subr.mxu0 0.0
    %4965 = vmatpush2.msra.mxu0 0.0
    %4966 = vmatprep.subr.mxu0 0.0
    %4967 = vmatpush2.msra.mxu0 0.0
    %4968 = vmatprep.subr.mxu0 0.0
    %4969 = vmatpush2.msra.mxu0 0.0
    %4970 = vmatprep.subr.mxu0 0.0
    %4971 = vmatpush2.msra.mxu0 0.0
    %4972 = vmatprep.subr.mxu0 0.0
    %4973 = vmatpush2.msra.mxu0 0.0
    %4974 = vmatprep.subr.mxu0 0.0
    %4975 = vmatpush2.msra.mxu0 0.0
    %4976 = vmatprep.subr.mxu0 0.0
    %4977 = vmatpush2.msra.mxu0 0.0
    %4978 = vmatprep.subr.mxu0 0.0
    %4979 = vmatpush2.msra.mxu0 0.0
    %4980 = vmatprep.subr.mxu0 0.0
    %4981 = vmatpush2.msra.mxu0 0.0
    %4982 = vmatprep.subr.mxu0 0.0
    %4983 = vmatpush2.msra.mxu0 0.0
    %4984 = vmatprep.subr.mxu0 0.0
    %4985 = vmatpush2.msra.mxu0 0.0
    %4986 = vmatprep.subr.mxu0 0.0
    %4987 = vmatpush2.msra.mxu0 0.0
    %4988 = vmatprep.mubr.f32.mxu0 0.0
    %v4989 = vand.u32 %v2295, 4294901760
    %4990 = vmatmul.mubr.f32.gmra.mxu0 %v4989
    %v4991 = vpop.f32.mrf.mxu0
    %v4992 = vadd.f32 %v4881, %v4991
    %v4993 = vpop.f32.mrf.mxu0
    %4994 = vmatprep.mubr.f32.mxu0 0.0
    %v4995 = vand.u32 %v2298, 4294901760
    %4996 = vmatmul.mubr.f32.gmra.mxu0 %v4995
    %v4997 = vpop.f32.mrf.mxu0
    %v4998 = vadd.f32 %v4891, %v4997
    %v4999 = vpop.f32.mrf.mxu0
    %5000 = vmatprep.mubr.f32.mxu0 0.0
    %v5001 = vand.u32 %v2301, 4294901760
    %5002 = vmatmul.mubr.f32.gmra.mxu0 %v5001
    %v5003 = vpop.f32.mrf.mxu0
    %v5004 = vadd.f32 %v4901, %v5003
    %v5005 = vpop.f32.mrf.mxu0
    %5006 = vmatprep.mubr.f32.mxu0 0.0
    %v5007 = vand.u32 %v2304, 4294901760
    %5008 = vmatmul.mubr.f32.gmra.mxu0 %v5007
    %v5009 = vpop.f32.mrf.mxu0
    %v5010 = vadd.f32 %v4911, %v5009
    %v5011 = vpop.f32.mrf.mxu0
    %5012 = vdwg.mxu0
    %5013 = vmatprep.subr.mxu0 0.0
    %5014 = vmatpush1.msra.mxu0 0.0
    %5015 = vmatprep.subr.mxu0 0.0
    %5016 = vmatpush1.msra.mxu0 0.0
    %5017 = vmatprep.subr.mxu0 0.0
    %5018 = vmatpush1.msra.mxu0 0.0
    %5019 = vmatprep.subr.mxu0 0.0
    %5020 = vmatpush1.msra.mxu0 0.0
    %5021 = vmatprep.subr.mxu0 0.0
    %5022 = vmatpush1.msra.mxu0 0.0
    %5023 = vmatprep.subr.mxu0 0.0
    %5024 = vmatpush1.msra.mxu0 0.0
    %5025 = vmatprep.subr.mxu0 0.0
    %5026 = vmatpush1.msra.mxu0 0.0
    %5027 = vmatprep.subr.mxu0 0.0
    %5028 = vmatpush1.msra.mxu0 0.0
    %5029 = vmatprep.subr.mxu0 0.0
    %5030 = vmatpush1.msra.mxu0 0.0
    %5031 = vmatprep.subr.mxu0 0.0
    %5032 = vmatpush1.msra.mxu0 0.0
    %5033 = vmatprep.subr.mxu0 0.0
    %5034 = vmatpush1.msra.mxu0 0.0
    %5035 = vmatprep.subr.mxu0 0.0
    %5036 = vmatpush1.msra.mxu0 0.0
    %5037 = vmatprep.subr.mxu0 0.0
    %5038 = vmatpush1.msra.mxu0 0.0
    %5039 = vmatprep.subr.mxu0 0.0
    %5040 = vmatpush1.msra.mxu0 0.0
    %5041 = vmatprep.subr.mxu0 0.0
    %v5042 = vand.u32 %v4806, 4294901760
    %v5043 = vsub.f32 %v4806, %v5042
    %5044 = vmatpush1.msra.mxu0 %v5043
    %5045 = vmatprep.subr.mxu0 0.0
    %v5046 = vand.u32 %v4805, 4294901760
    %v5047 = vsub.f32 %v4805, %v5046
    %5048 = vmatpush1.msra.mxu0 %v5047
    %5049 = vmatprep.subr.mxu0 0.0
    %5050 = vmatpush2.msra.mxu0 0.0
    %5051 = vmatprep.subr.mxu0 0.0
    %5052 = vmatpush2.msra.mxu0 0.0
    %5053 = vmatprep.subr.mxu0 0.0
    %5054 = vmatpush2.msra.mxu0 0.0
    %5055 = vmatprep.subr.mxu0 0.0
    %5056 = vmatpush2.msra.mxu0 0.0
    %5057 = vmatprep.subr.mxu0 0.0
    %5058 = vmatpush2.msra.mxu0 0.0
    %5059 = vmatprep.subr.mxu0 0.0
    %5060 = vmatpush2.msra.mxu0 0.0
    %5061 = vmatprep.subr.mxu0 0.0
    %5062 = vmatpush2.msra.mxu0 0.0
    %5063 = vmatprep.subr.mxu0 0.0
    %5064 = vmatpush2.msra.mxu0 0.0
    %5065 = vmatprep.subr.mxu0 0.0
    %5066 = vmatpush2.msra.mxu0 0.0
    %5067 = vmatprep.subr.mxu0 0.0
    %5068 = vmatpush2.msra.mxu0 0.0
    %5069 = vmatprep.subr.mxu0 0.0
    %5070 = vmatpush2.msra.mxu0 0.0
    %5071 = vmatprep.subr.mxu0 0.0
    %5072 = vmatpush2.msra.mxu0 0.0
    %5073 = vmatprep.subr.mxu0 0.0
    %5074 = vmatpush2.msra.mxu0 0.0
    %5075 = vmatprep.subr.mxu0 0.0
    %5076 = vmatpush2.msra.mxu0 0.0
    %5077 = vmatprep.subr.mxu0 0.0
    %5078 = vmatpush2.msra.mxu0 0.0
    %5079 = vmatprep.subr.mxu0 0.0
    %5080 = vmatpush2.msra.mxu0 0.0
    %5081 = vmatprep.mubr.f32.mxu0 0.0
    %v5082 = vand.u32 %v2295, 4294901760
    %v5083 = vsub.f32 %v2295, %v5082
    %5084 = vmatmul.mubr.f32.gmra.mxu0 %v5083
    %v5085 = vpop.f32.mrf.mxu0
    %v5086 = vadd.f32 %v4992, %v5085
    %v5087 = vpop.f32.mrf.mxu0
    %5088 = vmatprep.mubr.f32.mxu0 0.0
    %v5089 = vand.u32 %v2298, 4294901760
    %v5090 = vsub.f32 %v2298, %v5089
    %5091 = vmatmul.mubr.f32.gmra.mxu0 %v5090
    %v5092 = vpop.f32.mrf.mxu0
    %v5093 = vadd.f32 %v4998, %v5092
    %v5094 = vpop.f32.mrf.mxu0
    %5095 = vmatprep.mubr.f32.mxu0 0.0
    %v5096 = vand.u32 %v2301, 4294901760
    %v5097 = vsub.f32 %v2301, %v5096
    %5098 = vmatmul.mubr.f32.gmra.mxu0 %v5097
    %v5099 = vpop.f32.mrf.mxu0
    %v5100 = vadd.f32 %v5004, %v5099
    %v5101 = vpop.f32.mrf.mxu0
    %5102 = vmatprep.mubr.f32.mxu0 0.0
    %v5103 = vand.u32 %v2304, 4294901760
    %v5104 = vsub.f32 %v2304, %v5103
    %5105 = vmatmul.mubr.f32.gmra.mxu0 %v5104
    %v5106 = vpop.f32.mrf.mxu0
    %v5107 = vadd.f32 %v5010, %v5106
    %v5108 = vpop.f32.mrf.mxu0
    %5109 = vdwg.mxu0
    %5110 = vmatprep.subr.mxu0 0.0
    %5111 = vmatpush1.msra.mxu0 0.0
    %5112 = vmatprep.subr.mxu0 0.0
    %5113 = vmatpush1.msra.mxu0 0.0
    %5114 = vmatprep.subr.mxu0 0.0
    %5115 = vmatpush1.msra.mxu0 0.0
    %5116 = vmatprep.subr.mxu0 0.0
    %5117 = vmatpush1.msra.mxu0 0.0
    %5118 = vmatprep.subr.mxu0 0.0
    %5119 = vmatpush1.msra.mxu0 0.0
    %5120 = vmatprep.subr.mxu0 0.0
    %5121 = vmatpush1.msra.mxu0 0.0
    %5122 = vmatprep.subr.mxu0 0.0
    %5123 = vmatpush1.msra.mxu0 0.0
    %5124 = vmatprep.subr.mxu0 0.0
    %5125 = vmatpush1.msra.mxu0 0.0
    %5126 = vmatprep.subr.mxu0 0.0
    %5127 = vmatpush1.msra.mxu0 0.0
    %5128 = vmatprep.subr.mxu0 0.0
    %5129 = vmatpush1.msra.mxu0 0.0
    %5130 = vmatprep.subr.mxu0 0.0
    %5131 = vmatpush1.msra.mxu0 0.0
    %5132 = vmatprep.subr.mxu0 0.0
    %5133 = vmatpush1.msra.mxu0 0.0
    %5134 = vmatprep.subr.mxu0 0.0
    %5135 = vmatpush1.msra.mxu0 0.0
    %5136 = vmatprep.subr.mxu0 0.0
    %5137 = vmatpush1.msra.mxu0 0.0
    %5138 = vmatprep.subr.mxu0 0.0
    %v5139 = vand.u32 %v4806, 4294901760
    %5140 = vmatpush1.msra.mxu0 %v5139
    %5141 = vmatprep.subr.mxu0 0.0
    %v5142 = vand.u32 %v4805, 4294901760
    %5143 = vmatpush1.msra.mxu0 %v5142
    %5144 = vmatprep.subr.mxu0 0.0
    %5145 = vmatpush2.msra.mxu0 0.0
    %5146 = vmatprep.subr.mxu0 0.0
    %5147 = vmatpush2.msra.mxu0 0.0
    %5148 = vmatprep.subr.mxu0 0.0
    %5149 = vmatpush2.msra.mxu0 0.0
    %5150 = vmatprep.subr.mxu0 0.0
    %5151 = vmatpush2.msra.mxu0 0.0
    %5152 = vmatprep.subr.mxu0 0.0
    %5153 = vmatpush2.msra.mxu0 0.0
    %5154 = vmatprep.subr.mxu0 0.0
    %5155 = vmatpush2.msra.mxu0 0.0
    %5156 = vmatprep.subr.mxu0 0.0
    %5157 = vmatpush2.msra.mxu0 0.0
    %5158 = vmatprep.subr.mxu0 0.0
    %5159 = vmatpush2.msra.mxu0 0.0
    %5160 = vmatprep.subr.mxu0 0.0
    %5161 = vmatpush2.msra.mxu0 0.0
    %5162 = vmatprep.subr.mxu0 0.0
    %5163 = vmatpush2.msra.mxu0 0.0
    %5164 = vmatprep.subr.mxu0 0.0
    %5165 = vmatpush2.msra.mxu0 0.0
    %5166 = vmatprep.subr.mxu0 0.0
    %5167 = vmatpush2.msra.mxu0 0.0
    %5168 = vmatprep.subr.mxu0 0.0
    %5169 = vmatpush2.msra.mxu0 0.0
    %5170 = vmatprep.subr.mxu0 0.0
    %5171 = vmatpush2.msra.mxu0 0.0
    %5172 = vmatprep.subr.mxu0 0.0
    %5173 = vmatpush2.msra.mxu0 0.0
    %5174 = vmatprep.subr.mxu0 0.0
    %5175 = vmatpush2.msra.mxu0 0.0
    %5176 = vmatprep.mubr.f32.mxu0 0.0
    %v5177 = vand.u32 %v2295, 4294901760
    %v5178 = vsub.f32 %v2295, %v5177
    %v5179 = vand.u32 %v5178, 4294901760
    %5180 = vmatmul.mubr.f32.gmra.mxu0 %v5179
    %v5181 = vpop.f32.mrf.mxu0
    %v5182 = vadd.f32 %v5086, %v5181
    %v5183 = vpop.f32.mrf.mxu0
    %5184 = vmatprep.mubr.f32.mxu0 0.0
    %v5185 = vand.u32 %v2298, 4294901760
    %v5186 = vsub.f32 %v2298, %v5185
    %v5187 = vand.u32 %v5186, 4294901760
    %5188 = vmatmul.mubr.f32.gmra.mxu0 %v5187
    %v5189 = vpop.f32.mrf.mxu0
    %v5190 = vadd.f32 %v5093, %v5189
    %v5191 = vpop.f32.mrf.mxu0
    %5192 = vmatprep.mubr.f32.mxu0 0.0
    %v5193 = vand.u32 %v2301, 4294901760
    %v5194 = vsub.f32 %v2301, %v5193
    %v5195 = vand.u32 %v5194, 4294901760
    %5196 = vmatmul.mubr.f32.gmra.mxu0 %v5195
    %v5197 = vpop.f32.mrf.mxu0
    %v5198 = vadd.f32 %v5100, %v5197
    %v5199 = vpop.f32.mrf.mxu0
    %5200 = vmatprep.mubr.f32.mxu0 0.0
    %v5201 = vand.u32 %v2304, 4294901760
    %v5202 = vsub.f32 %v2304, %v5201
    %v5203 = vand.u32 %v5202, 4294901760
    %5204 = vmatmul.mubr.f32.gmra.mxu0 %v5203
    %v5205 = vpop.f32.mrf.mxu0
    %v5206 = vadd.f32 %v5107, %v5205
    %v5207 = vpop.f32.mrf.mxu0
    %5208 = vdwg.mxu0
    %5209 = vmatprep.subr.mxu0 0.0
    %5210 = vmatpush1.msra.mxu0 0.0
    %5211 = vmatprep.subr.mxu0 0.0
    %5212 = vmatpush1.msra.mxu0 0.0
    %5213 = vmatprep.subr.mxu0 0.0
    %5214 = vmatpush1.msra.mxu0 0.0
    %5215 = vmatprep.subr.mxu0 0.0
    %5216 = vmatpush1.msra.mxu0 0.0
    %5217 = vmatprep.subr.mxu0 0.0
    %5218 = vmatpush1.msra.mxu0 0.0
    %5219 = vmatprep.subr.mxu0 0.0
    %5220 = vmatpush1.msra.mxu0 0.0
    %5221 = vmatprep.subr.mxu0 0.0
    %5222 = vmatpush1.msra.mxu0 0.0
    %5223 = vmatprep.subr.mxu0 0.0
    %5224 = vmatpush1.msra.mxu0 0.0
    %5225 = vmatprep.subr.mxu0 0.0
    %5226 = vmatpush1.msra.mxu0 0.0
    %5227 = vmatprep.subr.mxu0 0.0
    %5228 = vmatpush1.msra.mxu0 0.0
    %5229 = vmatprep.subr.mxu0 0.0
    %5230 = vmatpush1.msra.mxu0 0.0
    %5231 = vmatprep.subr.mxu0 0.0
    %5232 = vmatpush1.msra.mxu0 0.0
    %5233 = vmatprep.subr.mxu0 0.0
    %5234 = vmatpush1.msra.mxu0 0.0
    %5235 = vmatprep.subr.mxu0 0.0
    %5236 = vmatpush1.msra.mxu0 0.0
    %5237 = vmatprep.subr.mxu0 0.0
    %v5238 = vand.u32 %v4806, 4294901760
    %v5239 = vsub.f32 %v4806, %v5238
    %v5240 = vand.u32 %v5239, 4294901760
    %5241 = vmatpush1.msra.mxu0 %v5240
    %5242 = vmatprep.subr.mxu0 0.0
    %v5243 = vand.u32 %v4805, 4294901760
    %v5244 = vsub.f32 %v4805, %v5243
    %v5245 = vand.u32 %v5244, 4294901760
    %5246 = vmatpush1.msra.mxu0 %v5245
    %5247 = vmatprep.subr.mxu0 0.0
    %5248 = vmatpush2.msra.mxu0 0.0
    %5249 = vmatprep.subr.mxu0 0.0
    %5250 = vmatpush2.msra.mxu0 0.0
    %5251 = vmatprep.subr.mxu0 0.0
    %5252 = vmatpush2.msra.mxu0 0.0
    %5253 = vmatprep.subr.mxu0 0.0
    %5254 = vmatpush2.msra.mxu0 0.0
    %5255 = vmatprep.subr.mxu0 0.0
    %5256 = vmatpush2.msra.mxu0 0.0
    %5257 = vmatprep.subr.mxu0 0.0
    %5258 = vmatpush2.msra.mxu0 0.0
    %5259 = vmatprep.subr.mxu0 0.0
    %5260 = vmatpush2.msra.mxu0 0.0
    %5261 = vmatprep.subr.mxu0 0.0
    %5262 = vmatpush2.msra.mxu0 0.0
    %5263 = vmatprep.subr.mxu0 0.0
    %5264 = vmatpush2.msra.mxu0 0.0
    %5265 = vmatprep.subr.mxu0 0.0
    %5266 = vmatpush2.msra.mxu0 0.0
    %5267 = vmatprep.subr.mxu0 0.0
    %5268 = vmatpush2.msra.mxu0 0.0
    %5269 = vmatprep.subr.mxu0 0.0
    %5270 = vmatpush2.msra.mxu0 0.0
    %5271 = vmatprep.subr.mxu0 0.0
    %5272 = vmatpush2.msra.mxu0 0.0
    %5273 = vmatprep.subr.mxu0 0.0
    %5274 = vmatpush2.msra.mxu0 0.0
    %5275 = vmatprep.subr.mxu0 0.0
    %5276 = vmatpush2.msra.mxu0 0.0
    %5277 = vmatprep.subr.mxu0 0.0
    %5278 = vmatpush2.msra.mxu0 0.0
    %5279 = vmatprep.mubr.f32.mxu0 0.0
    %v5280 = vand.u32 %v2295, 4294901760
    %5281 = vmatmul.mubr.f32.gmra.mxu0 %v5280
    %v5282 = vpop.f32.mrf.mxu0
    %v5283 = vadd.f32 %v5182, %v5282
    %v5284 = vpop.f32.mrf.mxu0
    %5285 = vmatprep.mubr.f32.mxu0 0.0
    %v5286 = vand.u32 %v2298, 4294901760
    %5287 = vmatmul.mubr.f32.gmra.mxu0 %v5286
    %v5288 = vpop.f32.mrf.mxu0
    %v5289 = vadd.f32 %v5190, %v5288
    %v5290 = vpop.f32.mrf.mxu0
    %5291 = vmatprep.mubr.f32.mxu0 0.0
    %v5292 = vand.u32 %v2301, 4294901760
    %5293 = vmatmul.mubr.f32.gmra.mxu0 %v5292
    %v5294 = vpop.f32.mrf.mxu0
    %v5295 = vadd.f32 %v5198, %v5294
    %v5296 = vpop.f32.mrf.mxu0
    %5297 = vmatprep.mubr.f32.mxu0 0.0
    %v5298 = vand.u32 %v2304, 4294901760
    %5299 = vmatmul.mubr.f32.gmra.mxu0 %v5298
    %v5300 = vpop.f32.mrf.mxu0
    %v5301 = vadd.f32 %v5206, %v5300
    %v5302 = vpop.f32.mrf.mxu0
    %5303 = vdwg.mxu0
    %5304 = vmatprep.subr.mxu0 0.0
    %5305 = vmatpush1.msra.mxu0 0.0
    %5306 = vmatprep.subr.mxu0 0.0
    %5307 = vmatpush1.msra.mxu0 0.0
    %5308 = vmatprep.subr.mxu0 0.0
    %5309 = vmatpush1.msra.mxu0 0.0
    %5310 = vmatprep.subr.mxu0 0.0
    %5311 = vmatpush1.msra.mxu0 0.0
    %5312 = vmatprep.subr.mxu0 0.0
    %5313 = vmatpush1.msra.mxu0 0.0
    %5314 = vmatprep.subr.mxu0 0.0
    %5315 = vmatpush1.msra.mxu0 0.0
    %5316 = vmatprep.subr.mxu0 0.0
    %5317 = vmatpush1.msra.mxu0 0.0
    %5318 = vmatprep.subr.mxu0 0.0
    %5319 = vmatpush1.msra.mxu0 0.0
    %5320 = vmatprep.subr.mxu0 0.0
    %5321 = vmatpush1.msra.mxu0 0.0
    %5322 = vmatprep.subr.mxu0 0.0
    %5323 = vmatpush1.msra.mxu0 0.0
    %5324 = vmatprep.subr.mxu0 0.0
    %5325 = vmatpush1.msra.mxu0 0.0
    %5326 = vmatprep.subr.mxu0 0.0
    %5327 = vmatpush1.msra.mxu0 0.0
    %5328 = vmatprep.subr.mxu0 0.0
    %5329 = vmatpush1.msra.mxu0 0.0
    %5330 = vmatprep.subr.mxu0 0.0
    %5331 = vmatpush1.msra.mxu0 0.0
    %5332 = vmatprep.subr.mxu0 0.0
    %v5333 = vand.u32 %v4806, 4294901760
    %5334 = vmatpush1.msra.mxu0 %v5333
    %5335 = vmatprep.subr.mxu0 0.0
    %v5336 = vand.u32 %v4805, 4294901760
    %5337 = vmatpush1.msra.mxu0 %v5336
    %5338 = vmatprep.subr.mxu0 0.0
    %5339 = vmatpush2.msra.mxu0 0.0
    %5340 = vmatprep.subr.mxu0 0.0
    %5341 = vmatpush2.msra.mxu0 0.0
    %5342 = vmatprep.subr.mxu0 0.0
    %5343 = vmatpush2.msra.mxu0 0.0
    %5344 = vmatprep.subr.mxu0 0.0
    %5345 = vmatpush2.msra.mxu0 0.0
    %5346 = vmatprep.subr.mxu0 0.0
    %5347 = vmatpush2.msra.mxu0 0.0
    %5348 = vmatprep.subr.mxu0 0.0
    %5349 = vmatpush2.msra.mxu0 0.0
    %5350 = vmatprep.subr.mxu0 0.0
    %5351 = vmatpush2.msra.mxu0 0.0
    %5352 = vmatprep.subr.mxu0 0.0
    %5353 = vmatpush2.msra.mxu0 0.0
    %5354 = vmatprep.subr.mxu0 0.0
    %5355 = vmatpush2.msra.mxu0 0.0
    %5356 = vmatprep.subr.mxu0 0.0
    %5357 = vmatpush2.msra.mxu0 0.0
    %5358 = vmatprep.subr.mxu0 0.0
    %5359 = vmatpush2.msra.mxu0 0.0
    %5360 = vmatprep.subr.mxu0 0.0
    %5361 = vmatpush2.msra.mxu0 0.0
    %5362 = vmatprep.subr.mxu0 0.0
    %5363 = vmatpush2.msra.mxu0 0.0
    %5364 = vmatprep.subr.mxu0 0.0
    %5365 = vmatpush2.msra.mxu0 0.0
    %5366 = vmatprep.subr.mxu0 0.0
    %5367 = vmatpush2.msra.mxu0 0.0
    %5368 = vmatprep.subr.mxu0 0.0
    %5369 = vmatpush2.msra.mxu0 0.0
    %5370 = vmatprep.mubr.f32.mxu0 0.0
    %v5371 = vand.u32 %v2295, 4294901760
    %5372 = vmatmul.mubr.f32.gmra.mxu0 %v5371
    %v5373 = vpop.f32.mrf.mxu0
    %v5374 = vadd.f32 %v5283, %v5373
    %v5375 = vpop.f32.mrf.mxu0
    %5376 = vmatprep.mubr.f32.mxu0 0.0
    %v5377 = vand.u32 %v2298, 4294901760
    %5378 = vmatmul.mubr.f32.gmra.mxu0 %v5377
    %v5379 = vpop.f32.mrf.mxu0
    %v5380 = vadd.f32 %v5289, %v5379
    %v5381 = vpop.f32.mrf.mxu0
    %5382 = vmatprep.mubr.f32.mxu0 0.0
    %v5383 = vand.u32 %v2301, 4294901760
    %5384 = vmatmul.mubr.f32.gmra.mxu0 %v5383
    %v5385 = vpop.f32.mrf.mxu0
    %v5386 = vadd.f32 %v5295, %v5385
    %v5387 = vpop.f32.mrf.mxu0
    %5388 = vmatprep.mubr.f32.mxu0 0.0
    %v5389 = vand.u32 %v2304, 4294901760
    %5390 = vmatmul.mubr.f32.gmra.mxu0 %v5389
    %v5391 = vpop.f32.mrf.mxu0
    %v5392 = vadd.f32 %v5301, %v5391
    %v5393 = vpop.f32.mrf.mxu0
    %5394 = vdwg.mxu0
    %v5395 = vmul.f32 %v5374, %v2899
    %v5396 = vmul.f32 %v5380, %v2901
    %v5397 = vmul.f32 %v5386, %v2903
    %v5398 = vmul.f32 %v5392, %v2905
    %v5399 = vxor.u32 %v5395, 2147483648
    %v5400 = vxor.u32 %v5396, 2147483648
    %v5401 = vxor.u32 %v5397, 2147483648
    %v5402 = vxor.u32 %v5398, 2147483648
    %v5403 = vmul.f32 %v5399, 1.442695
    %v5404 = vpow.pop %v5403
    %v5405 = vmul.f32 %v5400, 1.442695
    %v5406 = vpow.pop %v5405
    %v5407 = vmul.f32 %v5401, 1.442695
    %v5408 = vpow.pop %v5407
    %v5409 = vmul.f32 %v5402, 1.442695
    %v5410 = vpow.pop %v5409
    %v5411 = vadd.f32 %v5404, 1.0
    %v5412 = vadd.f32 %v5406, 1.0
    %v5413 = vadd.f32 %v5408, 1.0
    %v5414 = vadd.f32 %v5410, 1.0
    %v5415 = vrcp.pop %v5411
    %v5416 = vmul.f32 1.0, %v5415
    %v5417 = vrcp.pop %v5412
    %v5418 = vmul.f32 1.0, %v5417
    %v5419 = vrcp.pop %v5413
    %v5420 = vmul.f32 1.0, %v5419
    %v5421 = vrcp.pop %v5414
    %v5422 = vmul.f32 1.0, %v5421
    %5424 = vset.pattern.permute.xlu0 8
    %5425 = vperm.xlu0 %5424, %v5416
    %v5426 = vpop.permute.xlu0 %5425
    %5429 = vset.pattern.permute.xlu0 8
    %5430 = vperm.xlu0 %5429, %v5418
    %v5431 = vpop.permute.xlu0 %5430
    %5434 = vset.pattern.permute.xlu0 8
    %5435 = vperm.xlu0 %5434, %v5420
    %v5436 = vpop.permute.xlu0 %5435
    %5439 = vset.pattern.permute.xlu0 8
    %5440 = vperm.xlu0 %5439, %v5422
    %v5441 = vpop.permute.xlu0 %5440
    %v5443 = vmul.f32 %v5374, %v5426
    %v5444 = vmul.f32 %v5380, %v5431
    %v5445 = vmul.f32 %v5386, %v5436
    %v5446 = vmul.f32 %v5392, %v5441
    %5447 = vmatprep.subr.mxu0 0.0
    %5448 = vmatpush1.msra.mxu0 0.0
    %5449 = vmatprep.subr.mxu0 0.0
    %5450 = vmatpush1.msra.mxu0 0.0
    %5451 = vmatprep.subr.mxu0 0.0
    %5452 = vmatpush1.msra.mxu0 0.0
    %5453 = vmatprep.subr.mxu0 0.0
    %5454 = vmatpush1.msra.mxu0 0.0
    %5455 = vmatprep.subr.mxu0 0.0
    %5456 = vmatpush1.msra.mxu0 0.0
    %5457 = vmatprep.subr.mxu0 0.0
    %5458 = vmatpush1.msra.mxu0 0.0
    %5459 = vmatprep.subr.mxu0 0.0
    %5460 = vmatpush1.msra.mxu0 0.0
    %5461 = vmatprep.subr.mxu0 0.0
    %5462 = vmatpush1.msra.mxu0 0.0
    %5463 = vmatprep.subr.mxu0 0.0
    %5464 = vmatpush1.msra.mxu0 0.0
    %5465 = vmatprep.subr.mxu0 0.0
    %5466 = vmatpush1.msra.mxu0 0.0
    %5467 = vmatprep.subr.mxu0 0.0
    %5468 = vmatpush1.msra.mxu0 0.0
    %5469 = vmatprep.subr.mxu0 0.0
    %5470 = vmatpush1.msra.mxu0 0.0
    %5471 = vmatprep.subr.mxu0 0.0
    %v5472 = vand.u32 %v5446, 4294901760
    %5473 = vmatpush1.msra.mxu0 %v5472
    %5474 = vmatprep.subr.mxu0 0.0
    %v5475 = vand.u32 %v5445, 4294901760
    %5476 = vmatpush1.msra.mxu0 %v5475
    %5477 = vmatprep.subr.mxu0 0.0
    %v5478 = vand.u32 %v5444, 4294901760
    %5479 = vmatpush1.msra.mxu0 %v5478
    %5480 = vmatprep.subr.mxu0 0.0
    %v5481 = vand.u32 %v5443, 4294901760
    %5482 = vmatpush1.msra.mxu0 %v5481
    %5483 = vmatprep.subr.mxu0 0.0
    %5484 = vmatpush2.msra.mxu0 0.0
    %5485 = vmatprep.subr.mxu0 0.0
    %5486 = vmatpush2.msra.mxu0 0.0
    %5487 = vmatprep.subr.mxu0 0.0
    %5488 = vmatpush2.msra.mxu0 0.0
    %5489 = vmatprep.subr.mxu0 0.0
    %5490 = vmatpush2.msra.mxu0 0.0
    %5491 = vmatprep.subr.mxu0 0.0
    %5492 = vmatpush2.msra.mxu0 0.0
    %5493 = vmatprep.subr.mxu0 0.0
    %5494 = vmatpush2.msra.mxu0 0.0
    %5495 = vmatprep.subr.mxu0 0.0
    %5496 = vmatpush2.msra.mxu0 0.0
    %5497 = vmatprep.subr.mxu0 0.0
    %5498 = vmatpush2.msra.mxu0 0.0
    %5499 = vmatprep.subr.mxu0 0.0
    %5500 = vmatpush2.msra.mxu0 0.0
    %5501 = vmatprep.subr.mxu0 0.0
    %5502 = vmatpush2.msra.mxu0 0.0
    %5503 = vmatprep.subr.mxu0 0.0
    %5504 = vmatpush2.msra.mxu0 0.0
    %5505 = vmatprep.subr.mxu0 0.0
    %5506 = vmatpush2.msra.mxu0 0.0
    %5507 = vmatprep.subr.mxu0 0.0
    %5508 = vmatpush2.msra.mxu0 0.0
    %5509 = vmatprep.subr.mxu0 0.0
    %5510 = vmatpush2.msra.mxu0 0.0
    %5511 = vmatprep.subr.mxu0 0.0
    %5512 = vmatpush2.msra.mxu0 0.0
    %5513 = vmatprep.subr.mxu0 0.0
    %5514 = vmatpush2.msra.mxu0 0.0
    %5515 = vmatprep.mubr.f32.mxu0 0.0
    %v5516 = vand.u32 %v2964, 4294901760
    %v5517 = vsub.f32 %v2964, %v5516
    %v5518 = vand.u32 %v5517, 4294901760
    %v5519 = vsub.f32 %v5517, %v5518
    %v5520 = vand.u32 %v5519, 4294901760
    %5521 = vmatmul.mubr.f32.gmra.mxu0 %v5520
    %v5522 = vpop.f32.mrf.mxu0
    %v5523 = vadd.f32 0.0, %v5522
    %v5524 = vpop.f32.mrf.mxu0
    %5525 = vmatprep.mubr.f32.mxu0 0.0
    %v5526 = vand.u32 %v2967, 4294901760
    %v5527 = vsub.f32 %v2967, %v5526
    %v5528 = vand.u32 %v5527, 4294901760
    %v5529 = vsub.f32 %v5527, %v5528
    %v5530 = vand.u32 %v5529, 4294901760
    %5531 = vmatmul.mubr.f32.gmra.mxu0 %v5530
    %v5532 = vpop.f32.mrf.mxu0
    %v5533 = vpop.f32.mrf.mxu0
    %5534 = vdwg.mxu0
    %5535 = vmatprep.subr.mxu0 0.0
    %5536 = vmatpush1.msra.mxu0 0.0
    %5537 = vmatprep.subr.mxu0 0.0
    %5538 = vmatpush1.msra.mxu0 0.0
    %5539 = vmatprep.subr.mxu0 0.0
    %5540 = vmatpush1.msra.mxu0 0.0
    %5541 = vmatprep.subr.mxu0 0.0
    %5542 = vmatpush1.msra.mxu0 0.0
    %5543 = vmatprep.subr.mxu0 0.0
    %5544 = vmatpush1.msra.mxu0 0.0
    %5545 = vmatprep.subr.mxu0 0.0
    %5546 = vmatpush1.msra.mxu0 0.0
    %5547 = vmatprep.subr.mxu0 0.0
    %5548 = vmatpush1.msra.mxu0 0.0
    %5549 = vmatprep.subr.mxu0 0.0
    %5550 = vmatpush1.msra.mxu0 0.0
    %5551 = vmatprep.subr.mxu0 0.0
    %5552 = vmatpush1.msra.mxu0 0.0
    %5553 = vmatprep.subr.mxu0 0.0
    %5554 = vmatpush1.msra.mxu0 0.0
    %5555 = vmatprep.subr.mxu0 0.0
    %5556 = vmatpush1.msra.mxu0 0.0
    %5557 = vmatprep.subr.mxu0 0.0
    %5558 = vmatpush1.msra.mxu0 0.0
    %5559 = vmatprep.subr.mxu0 0.0
    %v5560 = vand.u32 %v5446, 4294901760
    %v5561 = vsub.f32 %v5446, %v5560
    %v5562 = vand.u32 %v5561, 4294901760
    %v5563 = vsub.f32 %v5561, %v5562
    %v5564 = vand.u32 %v5563, 4294901760
    %5565 = vmatpush1.msra.mxu0 %v5564
    %5566 = vmatprep.subr.mxu0 0.0
    %v5567 = vand.u32 %v5445, 4294901760
    %v5568 = vsub.f32 %v5445, %v5567
    %v5569 = vand.u32 %v5568, 4294901760
    %v5570 = vsub.f32 %v5568, %v5569
    %v5571 = vand.u32 %v5570, 4294901760
    %5572 = vmatpush1.msra.mxu0 %v5571
    %5573 = vmatprep.subr.mxu0 0.0
    %v5574 = vand.u32 %v5444, 4294901760
    %v5575 = vsub.f32 %v5444, %v5574
    %v5576 = vand.u32 %v5575, 4294901760
    %v5577 = vsub.f32 %v5575, %v5576
    %v5578 = vand.u32 %v5577, 4294901760
    %5579 = vmatpush1.msra.mxu0 %v5578
    %5580 = vmatprep.subr.mxu0 0.0
    %v5581 = vand.u32 %v5443, 4294901760
    %v5582 = vsub.f32 %v5443, %v5581
    %v5583 = vand.u32 %v5582, 4294901760
    %v5584 = vsub.f32 %v5582, %v5583
    %v5585 = vand.u32 %v5584, 4294901760
    %5586 = vmatpush1.msra.mxu0 %v5585
    %5587 = vmatprep.subr.mxu0 0.0
    %5588 = vmatpush2.msra.mxu0 0.0
    %5589 = vmatprep.subr.mxu0 0.0
    %5590 = vmatpush2.msra.mxu0 0.0
    %5591 = vmatprep.subr.mxu0 0.0
    %5592 = vmatpush2.msra.mxu0 0.0
    %5593 = vmatprep.subr.mxu0 0.0
    %5594 = vmatpush2.msra.mxu0 0.0
    %5595 = vmatprep.subr.mxu0 0.0
    %5596 = vmatpush2.msra.mxu0 0.0
    %5597 = vmatprep.subr.mxu0 0.0
    %5598 = vmatpush2.msra.mxu0 0.0
    %5599 = vmatprep.subr.mxu0 0.0
    %5600 = vmatpush2.msra.mxu0 0.0
    %5601 = vmatprep.subr.mxu0 0.0
    %5602 = vmatpush2.msra.mxu0 0.0
    %5603 = vmatprep.subr.mxu0 0.0
    %5604 = vmatpush2.msra.mxu0 0.0
    %5605 = vmatprep.subr.mxu0 0.0
    %5606 = vmatpush2.msra.mxu0 0.0
    %5607 = vmatprep.subr.mxu0 0.0
    %5608 = vmatpush2.msra.mxu0 0.0
    %5609 = vmatprep.subr.mxu0 0.0
    %5610 = vmatpush2.msra.mxu0 0.0
    %5611 = vmatprep.subr.mxu0 0.0
    %5612 = vmatpush2.msra.mxu0 0.0
    %5613 = vmatprep.subr.mxu0 0.0
    %5614 = vmatpush2.msra.mxu0 0.0
    %5615 = vmatprep.subr.mxu0 0.0
    %5616 = vmatpush2.msra.mxu0 0.0
    %5617 = vmatprep.subr.mxu0 0.0
    %5618 = vmatpush2.msra.mxu0 0.0
    %5619 = vmatprep.mubr.f32.mxu0 0.0
    %v5620 = vand.u32 %v2964, 4294901760
    %5621 = vmatmul.mubr.f32.gmra.mxu0 %v5620
    %v5622 = vpop.f32.mrf.mxu0
    %v5623 = vadd.f32 %v5523, %v5622
    %v5624 = vpop.f32.mrf.mxu0
    %5625 = vmatprep.mubr.f32.mxu0 0.0
    %v5626 = vand.u32 %v2967, 4294901760
    %5627 = vmatmul.mubr.f32.gmra.mxu0 %v5626
    %v5628 = vpop.f32.mrf.mxu0
    %v5629 = vpop.f32.mrf.mxu0
    %5630 = vdwg.mxu0
    %5631 = vmatprep.subr.mxu0 0.0
    %5632 = vmatpush1.msra.mxu0 0.0
    %5633 = vmatprep.subr.mxu0 0.0
    %5634 = vmatpush1.msra.mxu0 0.0
    %5635 = vmatprep.subr.mxu0 0.0
    %5636 = vmatpush1.msra.mxu0 0.0
    %5637 = vmatprep.subr.mxu0 0.0
    %5638 = vmatpush1.msra.mxu0 0.0
    %5639 = vmatprep.subr.mxu0 0.0
    %5640 = vmatpush1.msra.mxu0 0.0
    %5641 = vmatprep.subr.mxu0 0.0
    %5642 = vmatpush1.msra.mxu0 0.0
    %5643 = vmatprep.subr.mxu0 0.0
    %5644 = vmatpush1.msra.mxu0 0.0
    %5645 = vmatprep.subr.mxu0 0.0
    %5646 = vmatpush1.msra.mxu0 0.0
    %5647 = vmatprep.subr.mxu0 0.0
    %5648 = vmatpush1.msra.mxu0 0.0
    %5649 = vmatprep.subr.mxu0 0.0
    %5650 = vmatpush1.msra.mxu0 0.0
    %5651 = vmatprep.subr.mxu0 0.0
    %5652 = vmatpush1.msra.mxu0 0.0
    %5653 = vmatprep.subr.mxu0 0.0
    %5654 = vmatpush1.msra.mxu0 0.0
    %5655 = vmatprep.subr.mxu0 0.0
    %v5656 = vand.u32 %v5446, 4294901760
    %v5657 = vsub.f32 %v5446, %v5656
    %5658 = vmatpush1.msra.mxu0 %v5657
    %5659 = vmatprep.subr.mxu0 0.0
    %v5660 = vand.u32 %v5445, 4294901760
    %v5661 = vsub.f32 %v5445, %v5660
    %5662 = vmatpush1.msra.mxu0 %v5661
    %5663 = vmatprep.subr.mxu0 0.0
    %v5664 = vand.u32 %v5444, 4294901760
    %v5665 = vsub.f32 %v5444, %v5664
    %5666 = vmatpush1.msra.mxu0 %v5665
    %5667 = vmatprep.subr.mxu0 0.0
    %v5668 = vand.u32 %v5443, 4294901760
    %v5669 = vsub.f32 %v5443, %v5668
    %5670 = vmatpush1.msra.mxu0 %v5669
    %5671 = vmatprep.subr.mxu0 0.0
    %5672 = vmatpush2.msra.mxu0 0.0
    %5673 = vmatprep.subr.mxu0 0.0
    %5674 = vmatpush2.msra.mxu0 0.0
    %5675 = vmatprep.subr.mxu0 0.0
    %5676 = vmatpush2.msra.mxu0 0.0
    %5677 = vmatprep.subr.mxu0 0.0
    %5678 = vmatpush2.msra.mxu0 0.0
    %5679 = vmatprep.subr.mxu0 0.0
    %5680 = vmatpush2.msra.mxu0 0.0
    %5681 = vmatprep.subr.mxu0 0.0
    %5682 = vmatpush2.msra.mxu0 0.0
    %5683 = vmatprep.subr.mxu0 0.0
    %5684 = vmatpush2.msra.mxu0 0.0
    %5685 = vmatprep.subr.mxu0 0.0
    %5686 = vmatpush2.msra.mxu0 0.0
    %5687 = vmatprep.subr.mxu0 0.0
    %5688 = vmatpush2.msra.mxu0 0.0
    %5689 = vmatprep.subr.mxu0 0.0
    %5690 = vmatpush2.msra.mxu0 0.0
    %5691 = vmatprep.subr.mxu0 0.0
    %5692 = vmatpush2.msra.mxu0 0.0
    %5693 = vmatprep.subr.mxu0 0.0
    %5694 = vmatpush2.msra.mxu0 0.0
    %5695 = vmatprep.subr.mxu0 0.0
    %5696 = vmatpush2.msra.mxu0 0.0
    %5697 = vmatprep.subr.mxu0 0.0
    %5698 = vmatpush2.msra.mxu0 0.0
    %5699 = vmatprep.subr.mxu0 0.0
    %5700 = vmatpush2.msra.mxu0 0.0
    %5701 = vmatprep.subr.mxu0 0.0
    %5702 = vmatpush2.msra.mxu0 0.0
    %5703 = vmatprep.mubr.f32.mxu0 0.0
    %v5704 = vand.u32 %v2964, 4294901760
    %v5705 = vsub.f32 %v2964, %v5704
    %5706 = vmatmul.mubr.f32.gmra.mxu0 %v5705
    %v5707 = vpop.f32.mrf.mxu0
    %v5708 = vadd.f32 %v5623, %v5707
    %v5709 = vpop.f32.mrf.mxu0
    %5710 = vmatprep.mubr.f32.mxu0 0.0
    %v5711 = vand.u32 %v2967, 4294901760
    %v5712 = vsub.f32 %v2967, %v5711
    %5713 = vmatmul.mubr.f32.gmra.mxu0 %v5712
    %v5714 = vpop.f32.mrf.mxu0
    %v5715 = vpop.f32.mrf.mxu0
    %5716 = vdwg.mxu0
    %5717 = vmatprep.subr.mxu0 0.0
    %5718 = vmatpush1.msra.mxu0 0.0
    %5719 = vmatprep.subr.mxu0 0.0
    %5720 = vmatpush1.msra.mxu0 0.0
    %5721 = vmatprep.subr.mxu0 0.0
    %5722 = vmatpush1.msra.mxu0 0.0
    %5723 = vmatprep.subr.mxu0 0.0
    %5724 = vmatpush1.msra.mxu0 0.0
    %5725 = vmatprep.subr.mxu0 0.0
    %5726 = vmatpush1.msra.mxu0 0.0
    %5727 = vmatprep.subr.mxu0 0.0
    %5728 = vmatpush1.msra.mxu0 0.0
    %5729 = vmatprep.subr.mxu0 0.0
    %5730 = vmatpush1.msra.mxu0 0.0
    %5731 = vmatprep.subr.mxu0 0.0
    %5732 = vmatpush1.msra.mxu0 0.0
    %5733 = vmatprep.subr.mxu0 0.0
    %5734 = vmatpush1.msra.mxu0 0.0
    %5735 = vmatprep.subr.mxu0 0.0
    %5736 = vmatpush1.msra.mxu0 0.0
    %5737 = vmatprep.subr.mxu0 0.0
    %5738 = vmatpush1.msra.mxu0 0.0
    %5739 = vmatprep.subr.mxu0 0.0
    %5740 = vmatpush1.msra.mxu0 0.0
    %5741 = vmatprep.subr.mxu0 0.0
    %v5742 = vand.u32 %v5446, 4294901760
    %5743 = vmatpush1.msra.mxu0 %v5742
    %5744 = vmatprep.subr.mxu0 0.0
    %v5745 = vand.u32 %v5445, 4294901760
    %5746 = vmatpush1.msra.mxu0 %v5745
    %5747 = vmatprep.subr.mxu0 0.0
    %v5748 = vand.u32 %v5444, 4294901760
    %5749 = vmatpush1.msra.mxu0 %v5748
    %5750 = vmatprep.subr.mxu0 0.0
    %v5751 = vand.u32 %v5443, 4294901760
    %5752 = vmatpush1.msra.mxu0 %v5751
    %5753 = vmatprep.subr.mxu0 0.0
    %5754 = vmatpush2.msra.mxu0 0.0
    %5755 = vmatprep.subr.mxu0 0.0
    %5756 = vmatpush2.msra.mxu0 0.0
    %5757 = vmatprep.subr.mxu0 0.0
    %5758 = vmatpush2.msra.mxu0 0.0
    %5759 = vmatprep.subr.mxu0 0.0
    %5760 = vmatpush2.msra.mxu0 0.0
    %5761 = vmatprep.subr.mxu0 0.0
    %5762 = vmatpush2.msra.mxu0 0.0
    %5763 = vmatprep.subr.mxu0 0.0
    %5764 = vmatpush2.msra.mxu0 0.0
    %5765 = vmatprep.subr.mxu0 0.0
    %5766 = vmatpush2.msra.mxu0 0.0
    %5767 = vmatprep.subr.mxu0 0.0
    %5768 = vmatpush2.msra.mxu0 0.0
    %5769 = vmatprep.subr.mxu0 0.0
    %5770 = vmatpush2.msra.mxu0 0.0
    %5771 = vmatprep.subr.mxu0 0.0
    %5772 = vmatpush2.msra.mxu0 0.0
    %5773 = vmatprep.subr.mxu0 0.0
    %5774 = vmatpush2.msra.mxu0 0.0
    %5775 = vmatprep.subr.mxu0 0.0
    %5776 = vmatpush2.msra.mxu0 0.0
    %5777 = vmatprep.subr.mxu0 0.0
    %5778 = vmatpush2.msra.mxu0 0.0
    %5779 = vmatprep.subr.mxu0 0.0
    %5780 = vmatpush2.msra.mxu0 0.0
    %5781 = vmatprep.subr.mxu0 0.0
    %5782 = vmatpush2.msra.mxu0 0.0
    %5783 = vmatprep.subr.mxu0 0.0
    %5784 = vmatpush2.msra.mxu0 0.0
    %5785 = vmatprep.mubr.f32.mxu0 0.0
    %v5786 = vand.u32 %v2964, 4294901760
    %v5787 = vsub.f32 %v2964, %v5786
    %v5788 = vand.u32 %v5787, 4294901760
    %5789 = vmatmul.mubr.f32.gmra.mxu0 %v5788
    %v5790 = vpop.f32.mrf.mxu0
    %v5791 = vadd.f32 %v5708, %v5790
    %v5792 = vpop.f32.mrf.mxu0
    %5793 = vmatprep.mubr.f32.mxu0 0.0
    %v5794 = vand.u32 %v2967, 4294901760
    %v5795 = vsub.f32 %v2967, %v5794
    %v5796 = vand.u32 %v5795, 4294901760
    %5797 = vmatmul.mubr.f32.gmra.mxu0 %v5796
    %v5798 = vpop.f32.mrf.mxu0
    %v5799 = vpop.f32.mrf.mxu0
    %5800 = vdwg.mxu0
    %5801 = vmatprep.subr.mxu0 0.0
    %5802 = vmatpush1.msra.mxu0 0.0
    %5803 = vmatprep.subr.mxu0 0.0
    %5804 = vmatpush1.msra.mxu0 0.0
    %5805 = vmatprep.subr.mxu0 0.0
    %5806 = vmatpush1.msra.mxu0 0.0
    %5807 = vmatprep.subr.mxu0 0.0
    %5808 = vmatpush1.msra.mxu0 0.0
    %5809 = vmatprep.subr.mxu0 0.0
    %5810 = vmatpush1.msra.mxu0 0.0
    %5811 = vmatprep.subr.mxu0 0.0
    %5812 = vmatpush1.msra.mxu0 0.0
    %5813 = vmatprep.subr.mxu0 0.0
    %5814 = vmatpush1.msra.mxu0 0.0
    %5815 = vmatprep.subr.mxu0 0.0
    %5816 = vmatpush1.msra.mxu0 0.0
    %5817 = vmatprep.subr.mxu0 0.0
    %5818 = vmatpush1.msra.mxu0 0.0
    %5819 = vmatprep.subr.mxu0 0.0
    %5820 = vmatpush1.msra.mxu0 0.0
    %5821 = vmatprep.subr.mxu0 0.0
    %5822 = vmatpush1.msra.mxu0 0.0
    %5823 = vmatprep.subr.mxu0 0.0
    %5824 = vmatpush1.msra.mxu0 0.0
    %5825 = vmatprep.subr.mxu0 0.0
    %v5826 = vand.u32 %v5446, 4294901760
    %v5827 = vsub.f32 %v5446, %v5826
    %v5828 = vand.u32 %v5827, 4294901760
    %5829 = vmatpush1.msra.mxu0 %v5828
    %5830 = vmatprep.subr.mxu0 0.0
    %v5831 = vand.u32 %v5445, 4294901760
    %v5832 = vsub.f32 %v5445, %v5831
    %v5833 = vand.u32 %v5832, 4294901760
    %5834 = vmatpush1.msra.mxu0 %v5833
    %5835 = vmatprep.subr.mxu0 0.0
    %v5836 = vand.u32 %v5444, 4294901760
    %v5837 = vsub.f32 %v5444, %v5836
    %v5838 = vand.u32 %v5837, 4294901760
    %5839 = vmatpush1.msra.mxu0 %v5838
    %5840 = vmatprep.subr.mxu0 0.0
    %v5841 = vand.u32 %v5443, 4294901760
    %v5842 = vsub.f32 %v5443, %v5841
    %v5843 = vand.u32 %v5842, 4294901760
    %5844 = vmatpush1.msra.mxu0 %v5843
    %5845 = vmatprep.subr.mxu0 0.0
    %5846 = vmatpush2.msra.mxu0 0.0
    %5847 = vmatprep.subr.mxu0 0.0
    %5848 = vmatpush2.msra.mxu0 0.0
    %5849 = vmatprep.subr.mxu0 0.0
    %5850 = vmatpush2.msra.mxu0 0.0
    %5851 = vmatprep.subr.mxu0 0.0
    %5852 = vmatpush2.msra.mxu0 0.0
    %5853 = vmatprep.subr.mxu0 0.0
    %5854 = vmatpush2.msra.mxu0 0.0
    %5855 = vmatprep.subr.mxu0 0.0
    %5856 = vmatpush2.msra.mxu0 0.0
    %5857 = vmatprep.subr.mxu0 0.0
    %5858 = vmatpush2.msra.mxu0 0.0
    %5859 = vmatprep.subr.mxu0 0.0
    %5860 = vmatpush2.msra.mxu0 0.0
    %5861 = vmatprep.subr.mxu0 0.0
    %5862 = vmatpush2.msra.mxu0 0.0
    %5863 = vmatprep.subr.mxu0 0.0
    %5864 = vmatpush2.msra.mxu0 0.0
    %5865 = vmatprep.subr.mxu0 0.0
    %5866 = vmatpush2.msra.mxu0 0.0
    %5867 = vmatprep.subr.mxu0 0.0
    %5868 = vmatpush2.msra.mxu0 0.0
    %5869 = vmatprep.subr.mxu0 0.0
    %5870 = vmatpush2.msra.mxu0 0.0
    %5871 = vmatprep.subr.mxu0 0.0
    %5872 = vmatpush2.msra.mxu0 0.0
    %5873 = vmatprep.subr.mxu0 0.0
    %5874 = vmatpush2.msra.mxu0 0.0
    %5875 = vmatprep.subr.mxu0 0.0
    %5876 = vmatpush2.msra.mxu0 0.0
    %5877 = vmatprep.mubr.f32.mxu0 0.0
    %v5878 = vand.u32 %v2964, 4294901760
    %5879 = vmatmul.mubr.f32.gmra.mxu0 %v5878
    %v5880 = vpop.f32.mrf.mxu0
    %v5881 = vadd.f32 %v5791, %v5880
    %v5882 = vpop.f32.mrf.mxu0
    %5883 = vmatprep.mubr.f32.mxu0 0.0
    %v5884 = vand.u32 %v2967, 4294901760
    %5885 = vmatmul.mubr.f32.gmra.mxu0 %v5884
    %v5886 = vpop.f32.mrf.mxu0
    %v5887 = vpop.f32.mrf.mxu0
    %5888 = vdwg.mxu0
    %5889 = vmatprep.subr.mxu0 0.0
    %5890 = vmatpush1.msra.mxu0 0.0
    %5891 = vmatprep.subr.mxu0 0.0
    %5892 = vmatpush1.msra.mxu0 0.0
    %5893 = vmatprep.subr.mxu0 0.0
    %5894 = vmatpush1.msra.mxu0 0.0
    %5895 = vmatprep.subr.mxu0 0.0
    %5896 = vmatpush1.msra.mxu0 0.0
    %5897 = vmatprep.subr.mxu0 0.0
    %5898 = vmatpush1.msra.mxu0 0.0
    %5899 = vmatprep.subr.mxu0 0.0
    %5900 = vmatpush1.msra.mxu0 0.0
    %5901 = vmatprep.subr.mxu0 0.0
    %5902 = vmatpush1.msra.mxu0 0.0
    %5903 = vmatprep.subr.mxu0 0.0
    %5904 = vmatpush1.msra.mxu0 0.0
    %5905 = vmatprep.subr.mxu0 0.0
    %5906 = vmatpush1.msra.mxu0 0.0
    %5907 = vmatprep.subr.mxu0 0.0
    %5908 = vmatpush1.msra.mxu0 0.0
    %5909 = vmatprep.subr.mxu0 0.0
    %5910 = vmatpush1.msra.mxu0 0.0
    %5911 = vmatprep.subr.mxu0 0.0
    %5912 = vmatpush1.msra.mxu0 0.0
    %5913 = vmatprep.subr.mxu0 0.0
    %v5914 = vand.u32 %v5446, 4294901760
    %5915 = vmatpush1.msra.mxu0 %v5914
    %5916 = vmatprep.subr.mxu0 0.0
    %v5917 = vand.u32 %v5445, 4294901760
    %5918 = vmatpush1.msra.mxu0 %v5917
    %5919 = vmatprep.subr.mxu0 0.0
    %v5920 = vand.u32 %v5444, 4294901760
    %5921 = vmatpush1.msra.mxu0 %v5920
    %5922 = vmatprep.subr.mxu0 0.0
    %v5923 = vand.u32 %v5443, 4294901760
    %5924 = vmatpush1.msra.mxu0 %v5923
    %5925 = vmatprep.subr.mxu0 0.0
    %5926 = vmatpush2.msra.mxu0 0.0
    %5927 = vmatprep.subr.mxu0 0.0
    %5928 = vmatpush2.msra.mxu0 0.0
    %5929 = vmatprep.subr.mxu0 0.0
    %5930 = vmatpush2.msra.mxu0 0.0
    %5931 = vmatprep.subr.mxu0 0.0
    %5932 = vmatpush2.msra.mxu0 0.0
    %5933 = vmatprep.subr.mxu0 0.0
    %5934 = vmatpush2.msra.mxu0 0.0
    %5935 = vmatprep.subr.mxu0 0.0
    %5936 = vmatpush2.msra.mxu0 0.0
    %5937 = vmatprep.subr.mxu0 0.0
    %5938 = vmatpush2.msra.mxu0 0.0
    %5939 = vmatprep.subr.mxu0 0.0
    %5940 = vmatpush2.msra.mxu0 0.0
    %5941 = vmatprep.subr.mxu0 0.0
    %5942 = vmatpush2.msra.mxu0 0.0
    %5943 = vmatprep.subr.mxu0 0.0
    %5944 = vmatpush2.msra.mxu0 0.0
    %5945 = vmatprep.subr.mxu0 0.0
    %5946 = vmatpush2.msra.mxu0 0.0
    %5947 = vmatprep.subr.mxu0 0.0
    %5948 = vmatpush2.msra.mxu0 0.0
    %5949 = vmatprep.subr.mxu0 0.0
    %5950 = vmatpush2.msra.mxu0 0.0
    %5951 = vmatprep.subr.mxu0 0.0
    %5952 = vmatpush2.msra.mxu0 0.0
    %5953 = vmatprep.subr.mxu0 0.0
    %5954 = vmatpush2.msra.mxu0 0.0
    %5955 = vmatprep.subr.mxu0 0.0
    %5956 = vmatpush2.msra.mxu0 0.0
    %5957 = vmatprep.mubr.f32.mxu0 0.0
    %v5958 = vand.u32 %v2964, 4294901760
    %5959 = vmatmul.mubr.f32.gmra.mxu0 %v5958
    %v5960 = vpop.f32.mrf.mxu0
    %v5961 = vadd.f32 %v5881, %v5960
    %v5962 = vpop.f32.mrf.mxu0
    %5963 = vmatprep.mubr.f32.mxu0 0.0
    %v5964 = vand.u32 %v2967, 4294901760
    %5965 = vmatmul.mubr.f32.gmra.mxu0 %v5964
    %v5966 = vpop.f32.mrf.mxu0
    %v5967 = vpop.f32.mrf.mxu0
    %5968 = vdwg.mxu0
    %v5969 = vmul.f32 %v5961, %v3499
    %v5970 = vmul.f32 %v4778, %v3506
    %v5971 = vadd.f32 %v5969, %v5970
    %v5972 = vmul.f32 %v4796, %v3515
    %v5973 = vadd.f32 %v5971, %v5972
    %v5974 = vadd.f32 %v5973, %v3524
    %v5975 = vxor.u32 %v5974, 2147483648
    %v5976 = vmul.f32 %v5975, 1.442695
    %v5977 = vpow.pop %v5976
    %v5978 = vadd.f32 %v5977, 1.0
    %v5979 = vrcp.pop %v5978
    %v5980 = vmul.f32 1.0, %v5979
    %v5981 = vsub.f32 1.0, %v5980
    %v5982 = vmul.f32 %v5981, %v4778
    %v5983 = vmul.f32 %v4796, %v5980
    %v5984 = vmul.f32 %v5983, %v5961
    %v5985 = vadd.f32 %v5982, %v5984
    %vm5986 = vcmask 57344
    %5987 = vst.msk [vmem:[#allocation2] sm:$0x1] %vm5986, %v5985
    // Predicated region
    $region22: #{tpu_custom_call.1} parent=1 // pred_check
      _
    $region23: #{tpu_custom_call.1} parent=1 // pred_check_branch
      %5989 = sbr.rel (0) target = $region25
    $region24: #{tpu_custom_call.1} parent=1 // pred_region
      %s5991 = ssub.s32 16, 16
      %5992 = vsyncadd [#allocation3], %s5991
      %s5994 = sshll.u32 [#allocation2], 4
      %s5995 = int_to_ptr.vmem [resolvable:$true] %s5994
      %5997 = dma.vmem_to_hbm [thread:$0]  %s5995, 16, %s5, [#allocation3]
    $region25: #{tpu_custom_call.1} parent=1 // pred_fallthru
      _
    // Predicated region
    $region26: #{tpu_custom_call.1} parent=1 // pred_check
      _
    $region27: #{tpu_custom_call.1} parent=1 // pred_check_branch
      %5999 = sbr.rel (0) target = $region29
    $region28: #{tpu_custom_call.1} parent=1 // pred_region
      %6000 = dma.done [#allocation3], 16
    $region29: #{tpu_custom_call.1} parent=1 // pred_fallthru
      _
    %6001 = vsyncpa [#allocation3], 1

</llo_original>
